<compile_context>
chip_gen: v6e
topology: v6e:2x2x1
jax: 0.10.0
libtpu: 0.0.40
codegen_flags: <defaults>
</compile_context>

<pallas_src>
import functools

import jax
import jax.numpy as jnp
from jax.experimental import pallas as pl
from jax.experimental.pallas import tpu as pltpu


def _round_up(x, m):
    return (x + m - 1) // m * m


def encoder_pool_kernel(mask_ref, x_ref,
                        wqkv_ref, bqkv_ref, wo_ref, bo_ref,
                        ln1g_ref, ln1b_ref,
                        w1_ref, b1_ref, w2_ref, b2_ref,
                        ln2g_ref, ln2b_ref,
                        out_ref, *, hidden_real):
    TB, S, Hp = x_ref.shape          # sequences/block, seq len, padded hidden
    M = TB * S                       # rows fed to the dense matmuls

    x = x_ref[...].reshape(M, Hp)    # f32 activations (residual path stays f32)
    x_bf = x.astype(jnp.bfloat16)    # bf16 MXU operand
    m3 = mask_ref[...]               # (TB, 1, S), 1.0 = real token, 0.0 = pad

    # Grid-invariant pieces, computed once per program.
    mask_bias = (m3 - 1.0) * 1e9                               # (TB, 1, S)
    col_mask = (jax.lax.broadcasted_iota(jnp.int32, (1, Hp), 1)
                < hidden_real).astype(jnp.float32)             # real-H columns
    inv_h = 1.0 / float(hidden_real)
    scale = 1.0 / float(hidden_real) ** 0.5

    # ---- fused QKV projection: one MXU pass with N = 3*Hp (bf16 in, f32 acc)
    qkv = jnp.dot(x_bf, wqkv_ref[...],
                  preferred_element_type=jnp.float32) + bqkv_ref[...]
    q = qkv[:, :Hp].reshape(TB, S, Hp)
    k = qkv[:, Hp:2 * Hp].reshape(TB, S, Hp)
    v = qkv[:, 2 * Hp:].reshape(TB, S, Hp)

    # ---- attention scores: contract last dims directly (no k.T transpose)
    s = jnp.einsum('bqd,bkd->bqk',
                   q.astype(jnp.bfloat16), k.astype(jnp.bfloat16),
                   preferred_element_type=jnp.float32)
    s = s * scale + mask_bias                                  # mask pad keys

    # ---- softmax in f32; denominator reciprocal on the EUP
    smax = jnp.max(s, axis=-1, keepdims=True)
    p = jnp.exp(s - smax)
    p = p * pl.reciprocal(jnp.sum(p, axis=-1, keepdims=True), approx=True)

    ctx = jnp.einsum('bqk,bkd->bqd',
                     p.astype(jnp.bfloat16), v.astype(jnp.bfloat16),
                     preferred_element_type=jnp.float32).reshape(M, Hp)
    attn_out = jnp.dot(ctx.astype(jnp.bfloat16), wo_ref[...],
                       preferred_element_type=jnp.float32) + bo_ref[...]

    # ---- residual + LayerNorm (f32 stats over the real H columns only)
    def layer_norm(h, g, b):
        mu = jnp.sum(h, axis=-1, keepdims=True) * inv_h
        d = (h - mu) * col_mask
        var = jnp.sum(d * d, axis=-1, keepdims=True) * inv_h
        return d * jax.lax.rsqrt(var + 1e-5) * g + b

    h1 = layer_norm(x + attn_out, ln1g_ref[...], ln1b_ref[...])

    # ---- feed-forward (GELU): bf16 MXU operands, f32 accumulators
    f = jnp.dot(h1.astype(jnp.bfloat16), w1_ref[...],
                preferred_element_type=jnp.float32) + b1_ref[...]
    # TODO(synk): PyTorch nn.GELU defaults to the exact erf form; the tanh
    # approximation is kept here (EUP-friendly), differing only at ~1e-3.
    f = jax.nn.gelu(f, approximate=True)
    ffn = jnp.dot(f.astype(jnp.bfloat16), w2_ref[...],
                  preferred_element_type=jnp.float32) + b2_ref[...]

    h2 = layer_norm(h1 + ffn, ln2g_ref[...], ln2b_ref[...])

    # ---- masked mean pooling over the sequence
    h2_b = h2.reshape(TB, S, Hp)
    pooled = jnp.einsum('bqs,bsh->bqh', m3, h2_b,
                        preferred_element_type=jnp.float32).reshape(TB, Hp)
    counts = jnp.sum(m3, axis=-1)                              # (TB, 1)
    # Guard all-pad rows (0/0 -> NaN in the reference); the per-row scale
    # cancels in the L2 normalize so the approximate reciprocal is harmless.
    pooled = pooled * pl.reciprocal(jnp.maximum(counts, 1.0), approx=True)

    # ---- F.normalize(pooled, p=2, dim=1) with eps = 1e-12 (rsqrt on EUP)
    ss = jnp.sum(pooled * pooled, axis=-1, keepdims=True)
    out_ref[0] = pooled * jax.lax.rsqrt(jnp.maximum(ss, 1e-24))


def model_forward(ids, params, *, block_batch=None, interpret=False):
    """Returns (logits_norm, goutputs_norm) like Model.forward in eval mode."""
    B, S = ids.shape
    H = params["emb"].shape[1]
    F = params["w1"].shape[1]
    Hp = _round_up(H, 128)
    Fp = _round_up(F, 128)

    # Sequences per grid step: batch rows so matmuls see M = TB*S, but keep
    # >= 2 grid steps when possible so both v7x TensorCores get work.
    if block_batch is None:
        block_batch = max(1, B // 2)
    TB = max(1, min(int(block_batch), B))
    while TB > 1 and TB * S > 1024:          # keep the row block VMEM-friendly
        TB //= 2
    while B % TB:
        TB -= 1

    f32, bf16 = jnp.float32, jnp.bfloat16

    def pad2(w, r, c):
        return jnp.pad(w, ((0, r - w.shape[0]), (0, c - w.shape[1])))

    # Zero-padded, bf16-cast, QKV-fused weights (padding is exact, see kernel).
    wqkv = jnp.concatenate([pad2(params["wq"], Hp, Hp),
                            pad2(params["wk"], Hp, Hp),
                            pad2(params["wv"], Hp, Hp)], axis=1).astype(bf16)
    bqkv = jnp.concatenate([pad2(params["bq"], 1, Hp),
                            pad2(params["bk"], 1, Hp),
                            pad2(params["bv"], 1, Hp)], axis=1).astype(f32)
    wo = pad2(params["wo"], Hp, Hp).astype(bf16)
    bo = pad2(params["bo"], 1, Hp).astype(f32)
    ln1g = pad2(params["ln1g"], 1, Hp).astype(f32)
    ln1b = pad2(params["ln1b"], 1, Hp).astype(f32)
    w1 = pad2(params["w1"], Hp, Fp).astype(bf16)
    b1 = pad2(params["b1"], 1, Fp).astype(f32)
    w2 = pad2(params["w2"], Fp, Hp).astype(bf16)
    b2 = pad2(params["b2"], 1, Hp).astype(f32)
    ln2g = pad2(params["ln2g"], 1, Hp).astype(f32)
    ln2b = pad2(params["ln2b"], 1, Hp).astype(f32)
    weights = (wqkv, bqkv, wo, bo, ln1g, ln1b, w1, b1, w2, b2, ln2g, ln2b)

    # attention_mask = ids.ne(1); embedding gather stays in XLA (glue).
    mask = (ids != 1).astype(f32).reshape(B, 1, S)             # (B, 1, S)
    emb_p = jnp.pad(params["emb"], ((0, 0), (0, Hp - H)))
    x = emb_p[ids].astype(f32)                                 # (B, S, Hp)

    # Explicit VMEM budget with headroom (v7x only has 64 MiB total).
    weight_bytes = sum(int(w.size) * w.dtype.itemsize for w in weights)
    act_bytes = 4 * TB * S * (2 * Hp + 3 * Hp + Fp + 3 * S) + 4 * TB * Hp
    vmem_limit = int(min(96 * 2**20,
                         max(32 * 2**20, 2 * weight_bytes + 4 * act_bytes)))

    kernel = functools.partial(encoder_pool_kernel, hidden_real=H)
    n_blocks = B // TB

    def build(weight_pipeline_mode):
        def wspec(shape):
            if weight_pipeline_mode is None:
                return pl.BlockSpec(shape, lambda i: (0, 0))
            return pl.BlockSpec(shape, lambda i: (0, 0),
                                pipeline_mode=weight_pipeline_mode)

        grid_spec = pltpu.PrefetchScalarGridSpec(
            num_scalar_prefetch=0,
            grid=(n_blocks,),
            in_specs=[
                pl.BlockSpec((TB, 1, S), lambda i: (i, 0, 0)),    # mask
                pl.BlockSpec((TB, S, Hp), lambda i: (i, 0, 0)),   # embeddings
                wspec((Hp, 3 * Hp)), wspec((1, 3 * Hp)),          # fused QKV
                wspec((Hp, Hp)), wspec((1, Hp)),                  # out proj
                wspec((1, Hp)), wspec((1, Hp)),                   # LN1
                wspec((Hp, Fp)), wspec((1, Fp)),                  # FFN in
                wspec((Fp, Hp)), wspec((1, Hp)),                  # FFN out
                wspec((1, Hp)), wspec((1, Hp)),                   # LN2
            ],
            out_specs=pl.BlockSpec((1, TB, Hp), lambda i: (i, 0, 0)),
        )
        return pl.pallas_call(
            kernel,
            out_shape=jax.ShapeDtypeStruct((n_blocks, TB, Hp), jnp.float32),
            grid_spec=grid_spec,
            compiler_params=pltpu.CompilerParams(
                dimension_semantics=("parallel",),
                vmem_limit_bytes=vmem_limit),
            interpret=interpret,
        )

    try:
        # Grid-invariant weights: single-buffered to halve their VMEM cost.
        pooled = build(pl.Buffered(buffer_count=1))(mask, x, *weights)
    except Exception:
        # Fallback: this JAX build does not accept pipeline_mode on top-level
        # pallas_call BlockSpecs; default double buffering (same results).
        pooled = build(None)(mask, x, *weights)

    pooled = pooled.reshape(B, Hp)[:, :H]
    # Dropout (p=0.4 vs p=0.1 swap) is a deterministic no-op in eval mode, so
    # both encoder passes agree and we return the same normalized vector twice.
    return pooled, pooled


def init_params(key, vocab, H, F):
    ks = jax.random.split(key, 8)
    s = 0.02
    f32 = jnp.float32
    return {
        "emb": s * jax.random.normal(ks[0], (vocab, H), f32),
        "wq": s * jax.random.normal(ks[1], (H, H), f32),
        "bq": jnp.zeros((1, H), f32),
        "wk": s * jax.random.normal(ks[2], (H, H), f32),
        "bk": jnp.zeros((1, H), f32),
        "wv": s * jax.random.normal(ks[3], (H, H), f32),
        "bv": jnp.zeros((1, H), f32),
        "wo": s * jax.random.normal(ks[4], (H, H), f32),
        "bo": jnp.zeros((1, H), f32),
        "ln1g": jnp.ones((1, H), f32),
        "ln1b": jnp.zeros((1, H), f32),
        "w1": s * jax.random.normal(ks[5], (H, F), f32),
        "b1": jnp.zeros((1, F), f32),
        "w2": s * jax.random.normal(ks[6], (F, H), f32),
        "b2": jnp.zeros((1, H), f32),
        "ln2g": jnp.ones((1, H), f32),
        "ln2b": jnp.zeros((1, H), f32),
    }


if __name__ == "__main__":
    B, S, H, F, VOCAB = 2, 8, 32, 64, 50

    key = jax.random.PRNGKey(0)
    k_ids, k_params = jax.random.split(key)

    params = init_params(k_params, VOCAB, H, F)

    # token ids in [2, VOCAB); pad id == 1; pad the tail of the second sequence
    ids = jax.random.randint(k_ids, (B, S), 2, VOCAB, dtype=jnp.int32)
    ids = ids.at[1, S - 3:].set(1)

    logits_n, goutputs_n = model_forward(ids, params)
    jax.block_until_ready((logits_n, goutputs_n))

    assert logits_n.shape == (B, H) and goutputs_n.shape == (B, H)
    # L2 norm of each row should be ~1.0
    norms = jnp.sqrt(jnp.sum(logits_n * logits_n, axis=1))
    assert jnp.allclose(norms, 1.0, atol=1e-4)
    assert bool(jnp.all(jnp.isfinite(logits_n)))

    print("KERNEL_OK")
</pallas_src>

<mosaic_0001>
module attributes {stable_mosaic.version = 11 : i64} {
  func.func @encoder_pool_kernel(%arg0: i32, %arg1: memref<1x1x8xf32, #tpu.memory_space<vmem>>, %arg2: memref<1x8x128xf32, #tpu.memory_space<vmem>>, %arg3: memref<128x384xbf16, #tpu.memory_space<vmem>>, %arg4: memref<1x384xf32, #tpu.memory_space<vmem>>, %arg5: memref<128x128xbf16, #tpu.memory_space<vmem>>, %arg6: memref<1x128xf32, #tpu.memory_space<vmem>>, %arg7: memref<1x128xf32, #tpu.memory_space<vmem>>, %arg8: memref<1x128xf32, #tpu.memory_space<vmem>>, %arg9: memref<128x128xbf16, #tpu.memory_space<vmem>>, %arg10: memref<1x128xf32, #tpu.memory_space<vmem>>, %arg11: memref<128x128xbf16, #tpu.memory_space<vmem>>, %arg12: memref<1x128xf32, #tpu.memory_space<vmem>>, %arg13: memref<1x128xf32, #tpu.memory_space<vmem>>, %arg14: memref<1x128xf32, #tpu.memory_space<vmem>>, %arg15: memref<1x1x128xf32, #tpu.memory_space<vmem>>) attributes {dimension_semantics = [#tpu.dimension_semantics<parallel>], iteration_bounds = array<i64: 2>, scalar_prefetch = 0 : i64, scratch_operands = 0 : i64, tpu.core_type = #tpu.core_type<tc>, window_params = [{transform_indices = @transform_0, window_bounds = array<i64: 1, 1, 8>}, {transform_indices = @transform_1, window_bounds = array<i64: 1, 8, 128>}, {pipeline_mode = #tpu.pipeline_mode<synchronous>, transform_indices = @transform_2, window_bounds = array<i64: 128, 384>}, {pipeline_mode = #tpu.pipeline_mode<synchronous>, transform_indices = @transform_3, window_bounds = array<i64: 1, 384>}, {pipeline_mode = #tpu.pipeline_mode<synchronous>, transform_indices = @transform_4, window_bounds = array<i64: 128, 128>}, {pipeline_mode = #tpu.pipeline_mode<synchronous>, transform_indices = @transform_5, window_bounds = array<i64: 1, 128>}, {pipeline_mode = #tpu.pipeline_mode<synchronous>, transform_indices = @transform_6, window_bounds = array<i64: 1, 128>}, {pipeline_mode = #tpu.pipeline_mode<synchronous>, transform_indices = @transform_7, window_bounds = array<i64: 1, 128>}, {pipeline_mode = #tpu.pipeline_mode<synchronous>, transform_indices = @transform_8, window_bounds = array<i64: 128, 128>}, {pipeline_mode = #tpu.pipeline_mode<synchronous>, transform_indices = @transform_9, window_bounds = array<i64: 1, 128>}, {pipeline_mode = #tpu.pipeline_mode<synchronous>, transform_indices = @transform_10, window_bounds = array<i64: 128, 128>}, {pipeline_mode = #tpu.pipeline_mode<synchronous>, transform_indices = @transform_11, window_bounds = array<i64: 1, 128>}, {pipeline_mode = #tpu.pipeline_mode<synchronous>, transform_indices = @transform_12, window_bounds = array<i64: 1, 128>}, {pipeline_mode = #tpu.pipeline_mode<synchronous>, transform_indices = @transform_13, window_bounds = array<i64: 1, 128>}, {transform_indices = @transform_14, window_bounds = array<i64: 1, 1, 128>}]} {
    %c0 = arith.constant 0 : index
    %c0_0 = arith.constant 0 : index
    %c0_1 = arith.constant 0 : index
    %0 = vector.load %arg2[%c0, %c0_0, %c0_1] : memref<1x8x128xf32, #tpu.memory_space<vmem>>, vector<1x8x128xf32>
    %1 = vector.shape_cast %0 : vector<1x8x128xf32> to vector<8x128xf32>
    %2 = arith.truncf %1 : vector<8x128xf32> to vector<8x128xbf16>
    %c0_2 = arith.constant 0 : index
    %c0_3 = arith.constant 0 : index
    %c0_4 = arith.constant 0 : index
    %3 = vector.load %arg1[%c0_2, %c0_3, %c0_4] : memref<1x1x8xf32, #tpu.memory_space<vmem>>, vector<1x1x8xf32>
    %cst = arith.constant 1.000000e+00 : f32
    %4 = vector.broadcast %cst : f32 to vector<1x1x8xf32>
    %5 = arith.subf %3, %4 : vector<1x1x8xf32>
    %cst_5 = arith.constant 1.000000e+09 : f32
    %6 = vector.broadcast %cst_5 : f32 to vector<1x1x8xf32>
    %7 = arith.mulf %5, %6 : vector<1x1x8xf32>
    %8 = tpu.iota {dimensions = array<i32: 1>} : vector<1x128xi32>
    %c32_i32 = arith.constant 32 : i32
    %9 = vector.broadcast %c32_i32 : i32 to vector<1x128xi32>
    %10 = arith.cmpi slt, %8, %9 : vector<1x128xi32>
    %11 = arith.extui %10 : vector<1x128xi1> to vector<1x128xi32>
    %12 = arith.sitofp %11 : vector<1x128xi32> to vector<1x128xf32>
    %c0_6 = arith.constant 0 : index
    %c0_7 = arith.constant 0 : index
    %13 = vector.load %arg3[%c0_6, %c0_7] : memref<128x384xbf16, #tpu.memory_space<vmem>>, vector<128x384xbf16>
    %cst_8 = arith.constant dense<0.000000e+00> : vector<8x384xf32>
    %14 = tpu.matmul %2, %13, %cst_8 {dimension_numbers = #tpu.dot_dimension_numbers<[1], [0], [0], [1], [0, 0, 1, 1], [], []>} : vector<8x128xbf16>, vector<128x384xbf16>, vector<8x384xf32> -> vector<8x384xf32>
    %c0_9 = arith.constant 0 : index
    %c0_10 = arith.constant 0 : index
    %15 = vector.load %arg4[%c0_9, %c0_10] : memref<1x384xf32, #tpu.memory_space<vmem>>, vector<1x384xf32>
    %16 = vector.broadcast %15 : vector<1x384xf32> to vector<8x384xf32>
    %17 = arith.addf %14, %16 : vector<8x384xf32>
    %18 = vector.extract_strided_slice %17 {offsets = [0, 0], sizes = [8, 128], strides = [1, 1]} : vector<8x384xf32> to vector<8x128xf32>
    %19 = vector.shape_cast %18 : vector<8x128xf32> to vector<1x8x128xf32>
    %20 = vector.extract_strided_slice %17 {offsets = [0, 128], sizes = [8, 128], strides = [1, 1]} : vector<8x384xf32> to vector<8x128xf32>
    %21 = vector.shape_cast %20 : vector<8x128xf32> to vector<1x8x128xf32>
    %22 = vector.extract_strided_slice %17 {offsets = [0, 256], sizes = [8, 128], strides = [1, 1]} : vector<8x384xf32> to vector<8x128xf32>
    %23 = vector.shape_cast %22 : vector<8x128xf32> to vector<1x8x128xf32>
    %24 = arith.truncf %19 : vector<1x8x128xf32> to vector<1x8x128xbf16>
    %25 = arith.truncf %21 : vector<1x8x128xf32> to vector<1x8x128xbf16>
    "tpu.trace_start"() <{level = 10 : i32, message = "bqd,bkd->bqk"}> : () -> ()
    %cst_11 = arith.constant dense<0.000000e+00> : vector<1x8x8xf32>
    %26 = tpu.matmul %24, %25, %cst_11 {dimension_numbers = #tpu.dot_dimension_numbers<[2], [2], [1], [1], [0, 0, 0, 1, 1, 1], [0], [0]>} : vector<1x8x128xbf16>, vector<1x8x128xbf16>, vector<1x8x8xf32> -> vector<1x8x8xf32>
    "tpu.trace_stop"() : () -> ()
    %cst_12 = arith.constant 0.176776692 : f32
    %27 = vector.broadcast %cst_12 : f32 to vector<1x8x8xf32>
    %28 = arith.mulf %26, %27 : vector<1x8x8xf32>
    %29 = vector.broadcast %7 : vector<1x1x8xf32> to vector<1x8x8xf32>
    %30 = arith.addf %28, %29 : vector<1x8x8xf32>
    %cst_13 = arith.constant dense<0xFF800000> : vector<1x8xf32>
    %31 = vector.multi_reduction <maximumf>, %30, %cst_13 [2] : vector<1x8x8xf32> to vector<1x8xf32>
    %32 = vector.shape_cast %31 : vector<1x8xf32> to vector<1x8x1xf32>
    %33 = vector.broadcast %32 : vector<1x8x1xf32> to vector<1x8x8xf32>
    %34 = arith.subf %30, %33 : vector<1x8x8xf32>
    %35 = math.exp %34 : vector<1x8x8xf32>
    %cst_14 = arith.constant dense<0.000000e+00> : vector<1x8xf32>
    %36 = vector.multi_reduction <add>, %35, %cst_14 [2] : vector<1x8x8xf32> to vector<1x8xf32>
    %37 = vector.shape_cast %36 : vector<1x8xf32> to vector<1x8x1xf32>
    %38 = tpu.reciprocal %37 {approx = true} : vector<1x8x1xf32> -> vector<1x8x1xf32>
    %39 = vector.broadcast %38 : vector<1x8x1xf32> to vector<1x8x8xf32>
    %40 = arith.mulf %35, %39 : vector<1x8x8xf32>
    %41 = arith.truncf %40 : vector<1x8x8xf32> to vector<1x8x8xbf16>
    %42 = arith.truncf %23 : vector<1x8x128xf32> to vector<1x8x128xbf16>
    "tpu.trace_start"() <{level = 10 : i32, message = "bqk,bkd->bqd"}> : () -> ()
    %cst_15 = arith.constant dense<0.000000e+00> : vector<1x8x128xf32>
    %43 = tpu.matmul %41, %42, %cst_15 {dimension_numbers = #tpu.dot_dimension_numbers<[2], [1], [1], [2], [0, 0, 0, 1, 1, 2], [0], [0]>} : vector<1x8x8xbf16>, vector<1x8x128xbf16>, vector<1x8x128xf32> -> vector<1x8x128xf32>
    "tpu.trace_stop"() : () -> ()
    %44 = vector.shape_cast %43 : vector<1x8x128xf32> to vector<8x128xf32>
    %45 = arith.truncf %44 : vector<8x128xf32> to vector<8x128xbf16>
    %c0_16 = arith.constant 0 : index
    %c0_17 = arith.constant 0 : index
    %46 = vector.load %arg5[%c0_16, %c0_17] : memref<128x128xbf16, #tpu.memory_space<vmem>>, vector<128x128xbf16>
    %cst_18 = arith.constant dense<0.000000e+00> : vector<8x128xf32>
    %47 = tpu.matmul %45, %46, %cst_18 {dimension_numbers = #tpu.dot_dimension_numbers<[1], [0], [0], [1], [0, 0, 1, 1], [], []>} : vector<8x128xbf16>, vector<128x128xbf16>, vector<8x128xf32> -> vector<8x128xf32>
    %c0_19 = arith.constant 0 : index
    %c0_20 = arith.constant 0 : index
    %48 = vector.load %arg6[%c0_19, %c0_20] : memref<1x128xf32, #tpu.memory_space<vmem>>, vector<1x128xf32>
    %49 = vector.broadcast %48 : vector<1x128xf32> to vector<8x128xf32>
    %50 = arith.addf %47, %49 : vector<8x128xf32>
    %51 = arith.addf %1, %50 : vector<8x128xf32>
    %c0_21 = arith.constant 0 : index
    %c0_22 = arith.constant 0 : index
    %52 = vector.load %arg7[%c0_21, %c0_22] : memref<1x128xf32, #tpu.memory_space<vmem>>, vector<1x128xf32>
    %c0_23 = arith.constant 0 : index
    %c0_24 = arith.constant 0 : index
    %53 = vector.load %arg8[%c0_23, %c0_24] : memref<1x128xf32, #tpu.memory_space<vmem>>, vector<1x128xf32>
    %cst_25 = arith.constant dense<0.000000e+00> : vector<8xf32>
    %54 = vector.multi_reduction <add>, %51, %cst_25 [1] : vector<8x128xf32> to vector<8xf32>
    %55 = vector.shape_cast %54 : vector<8xf32> to vector<8x1xf32>
    %cst_26 = arith.constant 3.125000e-02 : f32
    %56 = vector.broadcast %cst_26 : f32 to vector<8x1xf32>
    %57 = arith.mulf %55, %56 : vector<8x1xf32>
    %58 = vector.broadcast %57 : vector<8x1xf32> to vector<8x128xf32>
    %59 = arith.subf %51, %58 : vector<8x128xf32>
    %60 = vector.broadcast %12 : vector<1x128xf32> to vector<8x128xf32>
    %61 = arith.mulf %59, %60 : vector<8x128xf32>
    %62 = arith.mulf %61, %61 : vector<8x128xf32>
    %cst_27 = arith.constant dense<0.000000e+00> : vector<8xf32>
    %63 = vector.multi_reduction <add>, %62, %cst_27 [1] : vector<8x128xf32> to vector<8xf32>
    %64 = vector.shape_cast %63 : vector<8xf32> to vector<8x1xf32>
    %cst_28 = arith.constant 3.125000e-02 : f32
    %65 = vector.broadcast %cst_28 : f32 to vector<8x1xf32>
    %66 = arith.mulf %64, %65 : vector<8x1xf32>
    %cst_29 = arith.constant 9.99999974E-6 : f32
    %67 = vector.broadcast %cst_29 : f32 to vector<8x1xf32>
    %68 = arith.addf %66, %67 : vector<8x1xf32>
    %69 = math.rsqrt %68 : vector<8x1xf32>
    %70 = vector.broadcast %69 : vector<8x1xf32> to vector<8x128xf32>
    %71 = arith.mulf %61, %70 : vector<8x128xf32>
    %72 = vector.broadcast %52 : vector<1x128xf32> to vector<8x128xf32>
    %73 = arith.mulf %71, %72 : vector<8x128xf32>
    %74 = vector.broadcast %53 : vector<1x128xf32> to vector<8x128xf32>
    %75 = arith.addf %73, %74 : vector<8x128xf32>
    %76 = arith.truncf %75 : vector<8x128xf32> to vector<8x128xbf16>
    %c0_30 = arith.constant 0 : index
    %c0_31 = arith.constant 0 : index
    %77 = vector.load %arg9[%c0_30, %c0_31] : memref<128x128xbf16, #tpu.memory_space<vmem>>, vector<128x128xbf16>
    %cst_32 = arith.constant dense<0.000000e+00> : vector<8x128xf32>
    %78 = tpu.matmul %76, %77, %cst_32 {dimension_numbers = #tpu.dot_dimension_numbers<[1], [0], [0], [1], [0, 0, 1, 1], [], []>} : vector<8x128xbf16>, vector<128x128xbf16>, vector<8x128xf32> -> vector<8x128xf32>
    %c0_33 = arith.constant 0 : index
    %c0_34 = arith.constant 0 : index
    %79 = vector.load %arg10[%c0_33, %c0_34] : memref<1x128xf32, #tpu.memory_space<vmem>>, vector<1x128xf32>
    %80 = vector.broadcast %79 : vector<1x128xf32> to vector<8x128xf32>
    %81 = arith.addf %78, %80 : vector<8x128xf32>
    %82 = arith.mulf %81, %81 : vector<8x128xf32>
    %83 = arith.mulf %81, %82 : vector<8x128xf32>
    %cst_35 = arith.constant 4.471500e-02 : f32
    %84 = vector.broadcast %cst_35 : f32 to vector<8x128xf32>
    %85 = arith.mulf %84, %83 : vector<8x128xf32>
    %86 = arith.addf %81, %85 : vector<8x128xf32>
    %cst_36 = arith.constant 0.797884583 : f32
    %87 = vector.broadcast %cst_36 : f32 to vector<8x128xf32>
    %88 = arith.mulf %87, %86 : vector<8x128xf32>
    %89 = math.tanh %88 : vector<8x128xf32>
    %cst_37 = arith.constant 1.000000e+00 : f32
    %90 = vector.broadcast %cst_37 : f32 to vector<8x128xf32>
    %91 = arith.addf %90, %89 : vector<8x128xf32>
    %cst_38 = arith.constant 5.000000e-01 : f32
    %92 = vector.broadcast %cst_38 : f32 to vector<8x128xf32>
    %93 = arith.mulf %92, %91 : vector<8x128xf32>
    %94 = arith.mulf %81, %93 : vector<8x128xf32>
    %95 = arith.truncf %94 : vector<8x128xf32> to vector<8x128xbf16>
    %c0_39 = arith.constant 0 : index
    %c0_40 = arith.constant 0 : index
    %96 = vector.load %arg11[%c0_39, %c0_40] : memref<128x128xbf16, #tpu.memory_space<vmem>>, vector<128x128xbf16>
    %cst_41 = arith.constant dense<0.000000e+00> : vector<8x128xf32>
    %97 = tpu.matmul %95, %96, %cst_41 {dimension_numbers = #tpu.dot_dimension_numbers<[1], [0], [0], [1], [0, 0, 1, 1], [], []>} : vector<8x128xbf16>, vector<128x128xbf16>, vector<8x128xf32> -> vector<8x128xf32>
    %c0_42 = arith.constant 0 : index
    %c0_43 = arith.constant 0 : index
    %98 = vector.load %arg12[%c0_42, %c0_43] : memref<1x128xf32, #tpu.memory_space<vmem>>, vector<1x128xf32>
    %99 = vector.broadcast %98 : vector<1x128xf32> to vector<8x128xf32>
    %100 = arith.addf %97, %99 : vector<8x128xf32>
    %101 = arith.addf %75, %100 : vector<8x128xf32>
    %c0_44 = arith.constant 0 : index
    %c0_45 = arith.constant 0 : index
    %102 = vector.load %arg13[%c0_44, %c0_45] : memref<1x128xf32, #tpu.memory_space<vmem>>, vector<1x128xf32>
    %c0_46 = arith.constant 0 : index
    %c0_47 = arith.constant 0 : index
    %103 = vector.load %arg14[%c0_46, %c0_47] : memref<1x128xf32, #tpu.memory_space<vmem>>, vector<1x128xf32>
    %cst_48 = arith.constant dense<0.000000e+00> : vector<8xf32>
    %104 = vector.multi_reduction <add>, %101, %cst_48 [1] : vector<8x128xf32> to vector<8xf32>
    %105 = vector.shape_cast %104 : vector<8xf32> to vector<8x1xf32>
    %cst_49 = arith.constant 3.125000e-02 : f32
    %106 = vector.broadcast %cst_49 : f32 to vector<8x1xf32>
    %107 = arith.mulf %105, %106 : vector<8x1xf32>
    %108 = vector.broadcast %107 : vector<8x1xf32> to vector<8x128xf32>
    %109 = arith.subf %101, %108 : vector<8x128xf32>
    %110 = vector.broadcast %12 : vector<1x128xf32> to vector<8x128xf32>
    %111 = arith.mulf %109, %110 : vector<8x128xf32>
    %112 = arith.mulf %111, %111 : vector<8x128xf32>
    %cst_50 = arith.constant dense<0.000000e+00> : vector<8xf32>
    %113 = vector.multi_reduction <add>, %112, %cst_50 [1] : vector<8x128xf32> to vector<8xf32>
    %114 = vector.shape_cast %113 : vector<8xf32> to vector<8x1xf32>
    %cst_51 = arith.constant 3.125000e-02 : f32
    %115 = vector.broadcast %cst_51 : f32 to vector<8x1xf32>
    %116 = arith.mulf %114, %115 : vector<8x1xf32>
    %cst_52 = arith.constant 9.99999974E-6 : f32
    %117 = vector.broadcast %cst_52 : f32 to vector<8x1xf32>
    %118 = arith.addf %116, %117 : vector<8x1xf32>
    %119 = math.rsqrt %118 : vector<8x1xf32>
    %120 = vector.broadcast %119 : vector<8x1xf32> to vector<8x128xf32>
    %121 = arith.mulf %111, %120 : vector<8x128xf32>
    %122 = vector.broadcast %102 : vector<1x128xf32> to vector<8x128xf32>
    %123 = arith.mulf %121, %122 : vector<8x128xf32>
    %124 = vector.broadcast %103 : vector<1x128xf32> to vector<8x128xf32>
    %125 = arith.addf %123, %124 : vector<8x128xf32>
    %126 = vector.shape_cast %125 : vector<8x128xf32> to vector<1x8x128xf32>
    "tpu.trace_start"() <{level = 10 : i32, message = "bqs,bsh->bqh"}> : () -> ()
    %cst_53 = arith.constant dense<0.000000e+00> : vector<1x1x128xf32>
    %127 = tpu.matmul %3, %126, %cst_53 {dimension_numbers = #tpu.dot_dimension_numbers<[2], [1], [1], [2], [0, 0, 0, 1, 1, 2], [0], [0]>} : vector<1x1x8xf32>, vector<1x8x128xf32>, vector<1x1x128xf32> -> vector<1x1x128xf32>
    "tpu.trace_stop"() : () -> ()
    %128 = vector.shape_cast %127 : vector<1x1x128xf32> to vector<1x128xf32>
    %cst_54 = arith.constant dense<0.000000e+00> : vector<1x1xf32>
    %129 = vector.multi_reduction <add>, %3, %cst_54 [2] : vector<1x1x8xf32> to vector<1x1xf32>
    %cst_55 = arith.constant 1.000000e+00 : f32
    %130 = vector.broadcast %cst_55 : f32 to vector<1x1xf32>
    %131 = arith.maximumf %129, %130 : vector<1x1xf32>
    %132 = tpu.reciprocal %131 {approx = true} : vector<1x1xf32> -> vector<1x1xf32>
    %133 = vector.broadcast %132 : vector<1x1xf32> to vector<1x128xf32>
    %134 = arith.mulf %128, %133 : vector<1x128xf32>
    %135 = arith.mulf %134, %134 : vector<1x128xf32>
    %cst_56 = arith.constant dense<0.000000e+00> : vector<1xf32>
    %136 = vector.multi_reduction <add>, %135, %cst_56 [1] : vector<1x128xf32> to vector<1xf32>
    %137 = vector.shape_cast %136 : vector<1xf32> to vector<1x1xf32>
    %cst_57 = arith.constant 1.000000e-24 : f32
    %138 = vector.broadcast %cst_57 : f32 to vector<1x1xf32>
    %139 = arith.maximumf %137, %138 : vector<1x1xf32>
    %140 = math.rsqrt %139 : vector<1x1xf32>
    %141 = vector.broadcast %140 : vector<1x1xf32> to vector<1x128xf32>
    %142 = arith.mulf %134, %141 : vector<1x128xf32>
    %c0_58 = arith.constant 0 : index
    %c0_59 = arith.constant 0 : index
    %c0_60 = arith.constant 0 : index
    %143 = vector.load %arg15[%c0_58, %c0_59, %c0_60] : memref<1x1x128xf32, #tpu.memory_space<vmem>>, vector<1x1x128xf32>
    %144 = vector.shape_cast %143 : vector<1x1x128xf32> to vector<1x128xf32>
    %145 = vector.shape_cast %142 : vector<1x128xf32> to vector<1x1x128xf32>
    tpu.vector_store %arg15[%c0_58, %c0_59, %c0_60], %145 {strides = array<i32>} : memref<1x1x128xf32, #tpu.memory_space<vmem>>, vector<1x1x128xf32>,
    return
  }
  func.func @transform_0(%arg0: i32) -> (i32, i32, i32) {
    %c0_i32 = arith.constant 0 : i32
    %c0_i32_0 = arith.constant 0 : i32
    %c0_i32_1 = arith.constant 0 : i32
    return %arg0, %c0_i32, %c0_i32_0 : i32, i32, i32
  }
  func.func @transform_1(%arg0: i32) -> (i32, i32, i32) {
    %c0_i32 = arith.constant 0 : i32
    %c0_i32_0 = arith.constant 0 : i32
    %c0_i32_1 = arith.constant 0 : i32
    return %arg0, %c0_i32, %c0_i32_0 : i32, i32, i32
  }
  func.func @transform_2(%arg0: i32) -> (i32, i32) {
    %c0_i32 = arith.constant 0 : i32
    %c0_i32_0 = arith.constant 0 : i32
    %c0_i32_1 = arith.constant 0 : i32
    return %c0_i32, %c0_i32_0 : i32, i32
  }
  func.func @transform_3(%arg0: i32) -> (i32, i32) {
    %c0_i32 = arith.constant 0 : i32
    %c0_i32_0 = arith.constant 0 : i32
    %c0_i32_1 = arith.constant 0 : i32
    return %c0_i32, %c0_i32_0 : i32, i32
  }
  func.func @transform_4(%arg0: i32) -> (i32, i32) {
    %c0_i32 = arith.constant 0 : i32
    %c0_i32_0 = arith.constant 0 : i32
    %c0_i32_1 = arith.constant 0 : i32
    return %c0_i32, %c0_i32_0 : i32, i32
  }
  func.func @transform_5(%arg0: i32) -> (i32, i32) {
    %c0_i32 = arith.constant 0 : i32
    %c0_i32_0 = arith.constant 0 : i32
    %c0_i32_1 = arith.constant 0 : i32
    return %c0_i32, %c0_i32_0 : i32, i32
  }
  func.func @transform_6(%arg0: i32) -> (i32, i32) {
    %c0_i32 = arith.constant 0 : i32
    %c0_i32_0 = arith.constant 0 : i32
    %c0_i32_1 = arith.constant 0 : i32
    return %c0_i32, %c0_i32_0 : i32, i32
  }
  func.func @transform_7(%arg0: i32) -> (i32, i32) {
    %c0_i32 = arith.constant 0 : i32
    %c0_i32_0 = arith.constant 0 : i32
    %c0_i32_1 = arith.constant 0 : i32
    return %c0_i32, %c0_i32_0 : i32, i32
  }
  func.func @transform_8(%arg0: i32) -> (i32, i32) {
    %c0_i32 = arith.constant 0 : i32
    %c0_i32_0 = arith.constant 0 : i32
    %c0_i32_1 = arith.constant 0 : i32
    return %c0_i32, %c0_i32_0 : i32, i32
  }
  func.func @transform_9(%arg0: i32) -> (i32, i32) {
    %c0_i32 = arith.constant 0 : i32
    %c0_i32_0 = arith.constant 0 : i32
    %c0_i32_1 = arith.constant 0 : i32
    return %c0_i32, %c0_i32_0 : i32, i32
  }
  func.func @transform_10(%arg0: i32) -> (i32, i32) {
    %c0_i32 = arith.constant 0 : i32
    %c0_i32_0 = arith.constant 0 : i32
    %c0_i32_1 = arith.constant 0 : i32
    return %c0_i32, %c0_i32_0 : i32, i32
  }
  func.func @transform_11(%arg0: i32) -> (i32, i32) {
    %c0_i32 = arith.constant 0 : i32
    %c0_i32_0 = arith.constant 0 : i32
    %c0_i32_1 = arith.constant 0 : i32
    return %c0_i32, %c0_i32_0 : i32, i32
  }
  func.func @transform_12(%arg0: i32) -> (i32, i32) {
    %c0_i32 = arith.constant 0 : i32
    %c0_i32_0 = arith.constant 0 : i32
    %c0_i32_1 = arith.constant 0 : i32
    return %c0_i32, %c0_i32_0 : i32, i32
  }
  func.func @transform_13(%arg0: i32) -> (i32, i32) {
    %c0_i32 = arith.constant 0 : i32
    %c0_i32_0 = arith.constant 0 : i32
    %c0_i32_1 = arith.constant 0 : i32
    return %c0_i32, %c0_i32_0 : i32, i32
  }
  func.func @transform_14(%arg0: i32) -> (i32, i32, i32) {
    %c0_i32 = arith.constant 0 : i32
    %c0_i32_0 = arith.constant 0 : i32
    %c0_i32_1 = arith.constant 0 : i32
    return %arg0, %c0_i32, %c0_i32_0 : i32, i32, i32
  }
}

module attributes {stable_mosaic.version = 11 : i64} {
  func.func @encoder_pool_kernel(%arg0: i32, %arg1: memref<1x1x8xf32, #tpu.memory_space<vmem>>, %arg2: memref<1x8x128xf32, #tpu.memory_space<vmem>>, %arg3: memref<128x384xbf16, #tpu.memory_space<vmem>>, %arg4: memref<1x384xf32, #tpu.memory_space<vmem>>, %arg5: memref<128x128xbf16, #tpu.memory_space<vmem>>, %arg6: memref<1x128xf32, #tpu.memory_space<vmem>>, %arg7: memref<1x128xf32, #tpu.memory_space<vmem>>, %arg8: memref<1x128xf32, #tpu.memory_space<vmem>>, %arg9: memref<128x128xbf16, #tpu.memory_space<vmem>>, %arg10: memref<1x128xf32, #tpu.memory_space<vmem>>, %arg11: memref<128x128xbf16, #tpu.memory_space<vmem>>, %arg12: memref<1x128xf32, #tpu.memory_space<vmem>>, %arg13: memref<1x128xf32, #tpu.memory_space<vmem>>, %arg14: memref<1x128xf32, #tpu.memory_space<vmem>>, %arg15: memref<1x1x128xf32, #tpu.memory_space<vmem>>) attributes {dimension_semantics = [#tpu.dimension_semantics<parallel>], iteration_bounds = array<i64: 2>, scalar_prefetch = 0 : i64, scratch_operands = 0 : i64, tpu.core_type = #tpu.core_type<tc>, window_params = [{transform_indices = @transform_0, window_bounds = array<i64: 1, 1, 8>}, {transform_indices = @transform_1, window_bounds = array<i64: 1, 8, 128>}, {pipeline_mode = #tpu.pipeline_mode<synchronous>, transform_indices = @transform_2, window_bounds = array<i64: 128, 384>}, {pipeline_mode = #tpu.pipeline_mode<synchronous>, transform_indices = @transform_3, window_bounds = array<i64: 1, 384>}, {pipeline_mode = #tpu.pipeline_mode<synchronous>, transform_indices = @transform_4, window_bounds = array<i64: 128, 128>}, {pipeline_mode = #tpu.pipeline_mode<synchronous>, transform_indices = @transform_5, window_bounds = array<i64: 1, 128>}, {pipeline_mode = #tpu.pipeline_mode<synchronous>, transform_indices = @transform_6, window_bounds = array<i64: 1, 128>}, {pipeline_mode = #tpu.pipeline_mode<synchronous>, transform_indices = @transform_7, window_bounds = array<i64: 1, 128>}, {pipeline_mode = #tpu.pipeline_mode<synchronous>, transform_indices = @transform_8, window_bounds = array<i64: 128, 128>}, {pipeline_mode = #tpu.pipeline_mode<synchronous>, transform_indices = @transform_9, window_bounds = array<i64: 1, 128>}, {pipeline_mode = #tpu.pipeline_mode<synchronous>, transform_indices = @transform_10, window_bounds = array<i64: 128, 128>}, {pipeline_mode = #tpu.pipeline_mode<synchronous>, transform_indices = @transform_11, window_bounds = array<i64: 1, 128>}, {pipeline_mode = #tpu.pipeline_mode<synchronous>, transform_indices = @transform_12, window_bounds = array<i64: 1, 128>}, {pipeline_mode = #tpu.pipeline_mode<synchronous>, transform_indices = @transform_13, window_bounds = array<i64: 1, 128>}, {transform_indices = @transform_14, window_bounds = array<i64: 1, 1, 128>}]} {
    %c0 = arith.constant 0 : index
    %c0_0 = arith.constant 0 : index
    %c0_1 = arith.constant 0 : index
    %0 = vector.load %arg2[%c0, %c0_0, %c0_1] : memref<1x8x128xf32, #tpu.memory_space<vmem>>, vector<1x8x128xf32>
    %1 = vector.shape_cast %0 : vector<1x8x128xf32> to vector<8x128xf32>
    %2 = arith.truncf %1 : vector<8x128xf32> to vector<8x128xbf16>
    %c0_2 = arith.constant 0 : index
    %c0_3 = arith.constant 0 : index
    %c0_4 = arith.constant 0 : index
    %3 = vector.load %arg1[%c0_2, %c0_3, %c0_4] : memref<1x1x8xf32, #tpu.memory_space<vmem>>, vector<1x1x8xf32>
    %cst = arith.constant 1.000000e+00 : f32
    %4 = vector.broadcast %cst : f32 to vector<1x1x8xf32>
    %5 = arith.subf %3, %4 : vector<1x1x8xf32>
    %cst_5 = arith.constant 1.000000e+09 : f32
    %6 = vector.broadcast %cst_5 : f32 to vector<1x1x8xf32>
    %7 = arith.mulf %5, %6 : vector<1x1x8xf32>
    %8 = tpu.iota {dimensions = array<i32: 1>} : vector<1x128xi32>
    %c32_i32 = arith.constant 32 : i32
    %9 = vector.broadcast %c32_i32 : i32 to vector<1x128xi32>
    %10 = arith.cmpi slt, %8, %9 : vector<1x128xi32>
    %11 = arith.extui %10 : vector<1x128xi1> to vector<1x128xi32>
    %12 = arith.sitofp %11 : vector<1x128xi32> to vector<1x128xf32>
    %c0_6 = arith.constant 0 : index
    %c0_7 = arith.constant 0 : index
    %13 = vector.load %arg3[%c0_6, %c0_7] : memref<128x384xbf16, #tpu.memory_space<vmem>>, vector<128x384xbf16>
    %cst_8 = arith.constant dense<0.000000e+00> : vector<8x384xf32>
    %14 = tpu.matmul %2, %13, %cst_8 {dimension_numbers = #tpu.dot_dimension_numbers<[1], [0], [0], [1], [0, 0, 1, 1], [], []>} : vector<8x128xbf16>, vector<128x384xbf16>, vector<8x384xf32> -> vector<8x384xf32>
    %c0_9 = arith.constant 0 : index
    %c0_10 = arith.constant 0 : index
    %15 = vector.load %arg4[%c0_9, %c0_10] : memref<1x384xf32, #tpu.memory_space<vmem>>, vector<1x384xf32>
    %16 = vector.broadcast %15 : vector<1x384xf32> to vector<8x384xf32>
    %17 = arith.addf %14, %16 : vector<8x384xf32>
    %18 = vector.extract_strided_slice %17 {offsets = [0, 0], sizes = [8, 128], strides = [1, 1]} : vector<8x384xf32> to vector<8x128xf32>
    %19 = vector.shape_cast %18 : vector<8x128xf32> to vector<1x8x128xf32>
    %20 = vector.extract_strided_slice %17 {offsets = [0, 128], sizes = [8, 128], strides = [1, 1]} : vector<8x384xf32> to vector<8x128xf32>
    %21 = vector.shape_cast %20 : vector<8x128xf32> to vector<1x8x128xf32>
    %22 = vector.extract_strided_slice %17 {offsets = [0, 256], sizes = [8, 128], strides = [1, 1]} : vector<8x384xf32> to vector<8x128xf32>
    %23 = vector.shape_cast %22 : vector<8x128xf32> to vector<1x8x128xf32>
    %24 = arith.truncf %19 : vector<1x8x128xf32> to vector<1x8x128xbf16>
    %25 = arith.truncf %21 : vector<1x8x128xf32> to vector<1x8x128xbf16>
    "tpu.trace_start"() <{level = 10 : i32, message = "bqd,bkd->bqk"}> : () -> ()
    %cst_11 = arith.constant dense<0.000000e+00> : vector<1x8x8xf32>
    %26 = tpu.matmul %24, %25, %cst_11 {dimension_numbers = #tpu.dot_dimension_numbers<[2], [2], [1], [1], [0, 0, 0, 1, 1, 1], [0], [0]>} : vector<1x8x128xbf16>, vector<1x8x128xbf16>, vector<1x8x8xf32> -> vector<1x8x8xf32>
    "tpu.trace_stop"() : () -> ()
    %cst_12 = arith.constant 0.176776692 : f32
    %27 = vector.broadcast %cst_12 : f32 to vector<1x8x8xf32>
    %28 = arith.mulf %26, %27 : vector<1x8x8xf32>
    %29 = vector.broadcast %7 : vector<1x1x8xf32> to vector<1x8x8xf32>
    %30 = arith.addf %28, %29 : vector<1x8x8xf32>
    %cst_13 = arith.constant dense<0xFF800000> : vector<1x8xf32>
    %31 = vector.multi_reduction <maximumf>, %30, %cst_13 [2] : vector<1x8x8xf32> to vector<1x8xf32>
    %32 = vector.shape_cast %31 : vector<1x8xf32> to vector<1x8x1xf32>
    %33 = vector.broadcast %32 : vector<1x8x1xf32> to vector<1x8x8xf32>
    %34 = arith.subf %30, %33 : vector<1x8x8xf32>
    %35 = math.exp %34 : vector<1x8x8xf32>
    %cst_14 = arith.constant dense<0.000000e+00> : vector<1x8xf32>
    %36 = vector.multi_reduction <add>, %35, %cst_14 [2] : vector<1x8x8xf32> to vector<1x8xf32>
    %37 = vector.shape_cast %36 : vector<1x8xf32> to vector<1x8x1xf32>
    %38 = tpu.reciprocal %37 {approx = true} : vector<1x8x1xf32> -> vector<1x8x1xf32>
    %39 = vector.broadcast %38 : vector<1x8x1xf32> to vector<1x8x8xf32>
    %40 = arith.mulf %35, %39 : vector<1x8x8xf32>
    %41 = arith.truncf %40 : vector<1x8x8xf32> to vector<1x8x8xbf16>
    %42 = arith.truncf %23 : vector<1x8x128xf32> to vector<1x8x128xbf16>
    "tpu.trace_start"() <{level = 10 : i32, message = "bqk,bkd->bqd"}> : () -> ()
    %cst_15 = arith.constant dense<0.000000e+00> : vector<1x8x128xf32>
    %43 = tpu.matmul %41, %42, %cst_15 {dimension_numbers = #tpu.dot_dimension_numbers<[2], [1], [1], [2], [0, 0, 0, 1, 1, 2], [0], [0]>} : vector<1x8x8xbf16>, vector<1x8x128xbf16>, vector<1x8x128xf32> -> vector<1x8x128xf32>
    "tpu.trace_stop"() : () -> ()
    %44 = vector.shape_cast %43 : vector<1x8x128xf32> to vector<8x128xf32>
    %45 = arith.truncf %44 : vector<8x128xf32> to vector<8x128xbf16>
    %c0_16 = arith.constant 0 : index
    %c0_17 = arith.constant 0 : index
    %46 = vector.load %arg5[%c0_16, %c0_17] : memref<128x128xbf16, #tpu.memory_space<vmem>>, vector<128x128xbf16>
    %cst_18 = arith.constant dense<0.000000e+00> : vector<8x128xf32>
    %47 = tpu.matmul %45, %46, %cst_18 {dimension_numbers = #tpu.dot_dimension_numbers<[1], [0], [0], [1], [0, 0, 1, 1], [], []>} : vector<8x128xbf16>, vector<128x128xbf16>, vector<8x128xf32> -> vector<8x128xf32>
    %c0_19 = arith.constant 0 : index
    %c0_20 = arith.constant 0 : index
    %48 = vector.load %arg6[%c0_19, %c0_20] : memref<1x128xf32, #tpu.memory_space<vmem>>, vector<1x128xf32>
    %49 = vector.broadcast %48 : vector<1x128xf32> to vector<8x128xf32>
    %50 = arith.addf %47, %49 : vector<8x128xf32>
    %51 = arith.addf %1, %50 : vector<8x128xf32>
    %c0_21 = arith.constant 0 : index
    %c0_22 = arith.constant 0 : index
    %52 = vector.load %arg7[%c0_21, %c0_22] : memref<1x128xf32, #tpu.memory_space<vmem>>, vector<1x128xf32>
    %c0_23 = arith.constant 0 : index
    %c0_24 = arith.constant 0 : index
    %53 = vector.load %arg8[%c0_23, %c0_24] : memref<1x128xf32, #tpu.memory_space<vmem>>, vector<1x128xf32>
    %cst_25 = arith.constant dense<0.000000e+00> : vector<8xf32>
    %54 = vector.multi_reduction <add>, %51, %cst_25 [1] : vector<8x128xf32> to vector<8xf32>
    %55 = vector.shape_cast %54 : vector<8xf32> to vector<8x1xf32>
    %cst_26 = arith.constant 3.125000e-02 : f32
    %56 = vector.broadcast %cst_26 : f32 to vector<8x1xf32>
    %57 = arith.mulf %55, %56 : vector<8x1xf32>
    %58 = vector.broadcast %57 : vector<8x1xf32> to vector<8x128xf32>
    %59 = arith.subf %51, %58 : vector<8x128xf32>
    %60 = vector.broadcast %12 : vector<1x128xf32> to vector<8x128xf32>
    %61 = arith.mulf %59, %60 : vector<8x128xf32>
    %62 = arith.mulf %61, %61 : vector<8x128xf32>
    %cst_27 = arith.constant dense<0.000000e+00> : vector<8xf32>
    %63 = vector.multi_reduction <add>, %62, %cst_27 [1] : vector<8x128xf32> to vector<8xf32>
    %64 = vector.shape_cast %63 : vector<8xf32> to vector<8x1xf32>
    %cst_28 = arith.constant 3.125000e-02 : f32
    %65 = vector.broadcast %cst_28 : f32 to vector<8x1xf32>
    %66 = arith.mulf %64, %65 : vector<8x1xf32>
    %cst_29 = arith.constant 9.99999974E-6 : f32
    %67 = vector.broadcast %cst_29 : f32 to vector<8x1xf32>
    %68 = arith.addf %66, %67 : vector<8x1xf32>
    %69 = math.rsqrt %68 : vector<8x1xf32>
    %70 = vector.broadcast %69 : vector<8x1xf32> to vector<8x128xf32>
    %71 = arith.mulf %61, %70 : vector<8x128xf32>
    %72 = vector.broadcast %52 : vector<1x128xf32> to vector<8x128xf32>
    %73 = arith.mulf %71, %72 : vector<8x128xf32>
    %74 = vector.broadcast %53 : vector<1x128xf32> to vector<8x128xf32>
    %75 = arith.addf %73, %74 : vector<8x128xf32>
    %76 = arith.truncf %75 : vector<8x128xf32> to vector<8x128xbf16>
    %c0_30 = arith.constant 0 : index
    %c0_31 = arith.constant 0 : index
    %77 = vector.load %arg9[%c0_30, %c0_31] : memref<128x128xbf16, #tpu.memory_space<vmem>>, vector<128x128xbf16>
    %cst_32 = arith.constant dense<0.000000e+00> : vector<8x128xf32>
    %78 = tpu.matmul %76, %77, %cst_32 {dimension_numbers = #tpu.dot_dimension_numbers<[1], [0], [0], [1], [0, 0, 1, 1], [], []>} : vector<8x128xbf16>, vector<128x128xbf16>, vector<8x128xf32> -> vector<8x128xf32>
    %c0_33 = arith.constant 0 : index
    %c0_34 = arith.constant 0 : index
    %79 = vector.load %arg10[%c0_33, %c0_34] : memref<1x128xf32, #tpu.memory_space<vmem>>, vector<1x128xf32>
    %80 = vector.broadcast %79 : vector<1x128xf32> to vector<8x128xf32>
    %81 = arith.addf %78, %80 : vector<8x128xf32>
    %82 = arith.mulf %81, %81 : vector<8x128xf32>
    %83 = arith.mulf %81, %82 : vector<8x128xf32>
    %cst_35 = arith.constant 4.471500e-02 : f32
    %84 = vector.broadcast %cst_35 : f32 to vector<8x128xf32>
    %85 = arith.mulf %84, %83 : vector<8x128xf32>
    %86 = arith.addf %81, %85 : vector<8x128xf32>
    %cst_36 = arith.constant 0.797884583 : f32
    %87 = vector.broadcast %cst_36 : f32 to vector<8x128xf32>
    %88 = arith.mulf %87, %86 : vector<8x128xf32>
    %89 = math.tanh %88 : vector<8x128xf32>
    %cst_37 = arith.constant 1.000000e+00 : f32
    %90 = vector.broadcast %cst_37 : f32 to vector<8x128xf32>
    %91 = arith.addf %90, %89 : vector<8x128xf32>
    %cst_38 = arith.constant 5.000000e-01 : f32
    %92 = vector.broadcast %cst_38 : f32 to vector<8x128xf32>
    %93 = arith.mulf %92, %91 : vector<8x128xf32>
    %94 = arith.mulf %81, %93 : vector<8x128xf32>
    %95 = arith.truncf %94 : vector<8x128xf32> to vector<8x128xbf16>
    %c0_39 = arith.constant 0 : index
    %c0_40 = arith.constant 0 : index
    %96 = vector.load %arg11[%c0_39, %c0_40] : memref<128x128xbf16, #tpu.memory_space<vmem>>, vector<128x128xbf16>
    %cst_41 = arith.constant dense<0.000000e+00> : vector<8x128xf32>
    %97 = tpu.matmul %95, %96, %cst_41 {dimension_numbers = #tpu.dot_dimension_numbers<[1], [0], [0], [1], [0, 0, 1, 1], [], []>} : vector<8x128xbf16>, vector<128x128xbf16>, vector<8x128xf32> -> vector<8x128xf32>
    %c0_42 = arith.constant 0 : index
    %c0_43 = arith.constant 0 : index
    %98 = vector.load %arg12[%c0_42, %c0_43] : memref<1x128xf32, #tpu.memory_space<vmem>>, vector<1x128xf32>
    %99 = vector.broadcast %98 : vector<1x128xf32> to vector<8x128xf32>
    %100 = arith.addf %97, %99 : vector<8x128xf32>
    %101 = arith.addf %75, %100 : vector<8x128xf32>
    %c0_44 = arith.constant 0 : index
    %c0_45 = arith.constant 0 : index
    %102 = vector.load %arg13[%c0_44, %c0_45] : memref<1x128xf32, #tpu.memory_space<vmem>>, vector<1x128xf32>
    %c0_46 = arith.constant 0 : index
    %c0_47 = arith.constant 0 : index
    %103 = vector.load %arg14[%c0_46, %c0_47] : memref<1x128xf32, #tpu.memory_space<vmem>>, vector<1x128xf32>
    %cst_48 = arith.constant dense<0.000000e+00> : vector<8xf32>
    %104 = vector.multi_reduction <add>, %101, %cst_48 [1] : vector<8x128xf32> to vector<8xf32>
    %105 = vector.shape_cast %104 : vector<8xf32> to vector<8x1xf32>
    %cst_49 = arith.constant 3.125000e-02 : f32
    %106 = vector.broadcast %cst_49 : f32 to vector<8x1xf32>
    %107 = arith.mulf %105, %106 : vector<8x1xf32>
    %108 = vector.broadcast %107 : vector<8x1xf32> to vector<8x128xf32>
    %109 = arith.subf %101, %108 : vector<8x128xf32>
    %110 = vector.broadcast %12 : vector<1x128xf32> to vector<8x128xf32>
    %111 = arith.mulf %109, %110 : vector<8x128xf32>
    %112 = arith.mulf %111, %111 : vector<8x128xf32>
    %cst_50 = arith.constant dense<0.000000e+00> : vector<8xf32>
    %113 = vector.multi_reduction <add>, %112, %cst_50 [1] : vector<8x128xf32> to vector<8xf32>
    %114 = vector.shape_cast %113 : vector<8xf32> to vector<8x1xf32>
    %cst_51 = arith.constant 3.125000e-02 : f32
    %115 = vector.broadcast %cst_51 : f32 to vector<8x1xf32>
    %116 = arith.mulf %114, %115 : vector<8x1xf32>
    %cst_52 = arith.constant 9.99999974E-6 : f32
    %117 = vector.broadcast %cst_52 : f32 to vector<8x1xf32>
    %118 = arith.addf %116, %117 : vector<8x1xf32>
    %119 = math.rsqrt %118 : vector<8x1xf32>
    %120 = vector.broadcast %119 : vector<8x1xf32> to vector<8x128xf32>
    %121 = arith.mulf %111, %120 : vector<8x128xf32>
    %122 = vector.broadcast %102 : vector<1x128xf32> to vector<8x128xf32>
    %123 = arith.mulf %121, %122 : vector<8x128xf32>
    %124 = vector.broadcast %103 : vector<1x128xf32> to vector<8x128xf32>
    %125 = arith.addf %123, %124 : vector<8x128xf32>
    %126 = vector.shape_cast %125 : vector<8x128xf32> to vector<1x8x128xf32>
    "tpu.trace_start"() <{level = 10 : i32, message = "bqs,bsh->bqh"}> : () -> ()
    %cst_53 = arith.constant dense<0.000000e+00> : vector<1x1x128xf32>
    %127 = tpu.matmul %3, %126, %cst_53 {dimension_numbers = #tpu.dot_dimension_numbers<[2], [1], [1], [2], [0, 0, 0, 1, 1, 2], [0], [0]>} : vector<1x1x8xf32>, vector<1x8x128xf32>, vector<1x1x128xf32> -> vector<1x1x128xf32>
    "tpu.trace_stop"() : () -> ()
    %128 = vector.shape_cast %127 : vector<1x1x128xf32> to vector<1x128xf32>
    %cst_54 = arith.constant dense<0.000000e+00> : vector<1x1xf32>
    %129 = vector.multi_reduction <add>, %3, %cst_54 [2] : vector<1x1x8xf32> to vector<1x1xf32>
    %cst_55 = arith.constant 1.000000e+00 : f32
    %130 = vector.broadcast %cst_55 : f32 to vector<1x1xf32>
    %131 = arith.maximumf %129, %130 : vector<1x1xf32>
    %132 = tpu.reciprocal %131 {approx = true} : vector<1x1xf32> -> vector<1x1xf32>
    %133 = vector.broadcast %132 : vector<1x1xf32> to vector<1x128xf32>
    %134 = arith.mulf %128, %133 : vector<1x128xf32>
    %135 = arith.mulf %134, %134 : vector<1x128xf32>
    %cst_56 = arith.constant dense<0.000000e+00> : vector<1xf32>
    %136 = vector.multi_reduction <add>, %135, %cst_56 [1] : vector<1x128xf32> to vector<1xf32>
    %137 = vector.shape_cast %136 : vector<1xf32> to vector<1x1xf32>
    %cst_57 = arith.constant 1.000000e-24 : f32
    %138 = vector.broadcast %cst_57 : f32 to vector<1x1xf32>
    %139 = arith.maximumf %137, %138 : vector<1x1xf32>
    %140 = math.rsqrt %139 : vector<1x1xf32>
    %141 = vector.broadcast %140 : vector<1x1xf32> to vector<1x128xf32>
    %142 = arith.mulf %134, %141 : vector<1x128xf32>
    %c0_58 = arith.constant 0 : index
    %c0_59 = arith.constant 0 : index
    %c0_60 = arith.constant 0 : index
    %143 = vector.load %arg15[%c0_58, %c0_59, %c0_60] : memref<1x1x128xf32, #tpu.memory_space<vmem>>, vector<1x1x128xf32>
    %144 = vector.shape_cast %143 : vector<1x1x128xf32> to vector<1x128xf32>
    %145 = vector.shape_cast %142 : vector<1x128xf32> to vector<1x1x128xf32>
    tpu.vector_store %arg15[%c0_58, %c0_59, %c0_60], %145 {strides = array<i32>} : memref<1x1x128xf32, #tpu.memory_space<vmem>>, vector<1x1x128xf32>,
    return
  }
  func.func @transform_0(%arg0: i32) -> (i32, i32, i32) {
    %c0_i32 = arith.constant 0 : i32
    %c0_i32_0 = arith.constant 0 : i32
    %c0_i32_1 = arith.constant 0 : i32
    return %arg0, %c0_i32, %c0_i32_0 : i32, i32, i32
  }
  func.func @transform_1(%arg0: i32) -> (i32, i32, i32) {
    %c0_i32 = arith.constant 0 : i32
    %c0_i32_0 = arith.constant 0 : i32
    %c0_i32_1 = arith.constant 0 : i32
    return %arg0, %c0_i32, %c0_i32_0 : i32, i32, i32
  }
  func.func @transform_2(%arg0: i32) -> (i32, i32) {
    %c0_i32 = arith.constant 0 : i32
    %c0_i32_0 = arith.constant 0 : i32
    %c0_i32_1 = arith.constant 0 : i32
    return %c0_i32, %c0_i32_0 : i32, i32
  }
  func.func @transform_3(%arg0: i32) -> (i32, i32) {
    %c0_i32 = arith.constant 0 : i32
    %c0_i32_0 = arith.constant 0 : i32
    %c0_i32_1 = arith.constant 0 : i32
    return %c0_i32, %c0_i32_0 : i32, i32
  }
  func.func @transform_4(%arg0: i32) -> (i32, i32) {
    %c0_i32 = arith.constant 0 : i32
    %c0_i32_0 = arith.constant 0 : i32
    %c0_i32_1 = arith.constant 0 : i32
    return %c0_i32, %c0_i32_0 : i32, i32
  }
  func.func @transform_5(%arg0: i32) -> (i32, i32) {
    %c0_i32 = arith.constant 0 : i32
    %c0_i32_0 = arith.constant 0 : i32
    %c0_i32_1 = arith.constant 0 : i32
    return %c0_i32, %c0_i32_0 : i32, i32
  }
  func.func @transform_6(%arg0: i32) -> (i32, i32) {
    %c0_i32 = arith.constant 0 : i32
    %c0_i32_0 = arith.constant 0 : i32
    %c0_i32_1 = arith.constant 0 : i32
    return %c0_i32, %c0_i32_0 : i32, i32
  }
  func.func @transform_7(%arg0: i32) -> (i32, i32) {
    %c0_i32 = arith.constant 0 : i32
    %c0_i32_0 = arith.constant 0 : i32
    %c0_i32_1 = arith.constant 0 : i32
    return %c0_i32, %c0_i32_0 : i32, i32
  }
  func.func @transform_8(%arg0: i32) -> (i32, i32) {
    %c0_i32 = arith.constant 0 : i32
    %c0_i32_0 = arith.constant 0 : i32
    %c0_i32_1 = arith.constant 0 : i32
    return %c0_i32, %c0_i32_0 : i32, i32
  }
  func.func @transform_9(%arg0: i32) -> (i32, i32) {
    %c0_i32 = arith.constant 0 : i32
    %c0_i32_0 = arith.constant 0 : i32
    %c0_i32_1 = arith.constant 0 : i32
    return %c0_i32, %c0_i32_0 : i32, i32
  }
  func.func @transform_10(%arg0: i32) -> (i32, i32) {
    %c0_i32 = arith.constant 0 : i32
    %c0_i32_0 = arith.constant 0 : i32
    %c0_i32_1 = arith.constant 0 : i32
    return %c0_i32, %c0_i32_0 : i32, i32
  }
  func.func @transform_11(%arg0: i32) -> (i32, i32) {
    %c0_i32 = arith.constant 0 : i32
    %c0_i32_0 = arith.constant 0 : i32
    %c0_i32_1 = arith.constant 0 : i32
    return %c0_i32, %c0_i32_0 : i32, i32
  }
  func.func @transform_12(%arg0: i32) -> (i32, i32) {
    %c0_i32 = arith.constant 0 : i32
    %c0_i32_0 = arith.constant 0 : i32
    %c0_i32_1 = arith.constant 0 : i32
    return %c0_i32, %c0_i32_0 : i32, i32
  }
  func.func @transform_13(%arg0: i32) -> (i32, i32) {
    %c0_i32 = arith.constant 0 : i32
    %c0_i32_0 = arith.constant 0 : i32
    %c0_i32_1 = arith.constant 0 : i32
    return %c0_i32, %c0_i32_0 : i32, i32
  }
  func.func @transform_14(%arg0: i32) -> (i32, i32, i32) {
    %c0_i32 = arith.constant 0 : i32
    %c0_i32_0 = arith.constant 0 : i32
    %c0_i32_1 = arith.constant 0 : i32
    return %arg0, %c0_i32, %c0_i32_0 : i32, i32, i32
  }
}

</mosaic_0001>

<llo_original>
// kernel: tpu_custom_call.1
$region0: #{tpu_custom_call.1}
  #allocation0 [shape = 'u32[]', space=smem, size = 0x4, offset = 0x4, fixed_abs, tag = 'smem constant byte address 0x4 - core index']
  #allocation1 [shape = 'u32[144,128]{1,0:T(1,128)}', space=vmem, size = 0x12000, scoped, tag = 'internal scratch']
  %s0 = inlined_call_operand.hbm [shape: f32[2,1,8], index: 0, kind: input, shape index: {}]
  %s1 = inlined_call_operand.hbm [shape: f32[2,8,128], index: 1, kind: input, shape index: {}]
  %s2 = inlined_call_operand.hbm [shape: bf16[128,384], index: 2, kind: input, shape index: {}]
  %s3 = inlined_call_operand.vmem [shape: f32[1,384], index: 3, kind: input, shape index: {}]
  %s4 = inlined_call_operand.hbm [shape: bf16[128,128], index: 4, kind: input, shape index: {}]
  %s5 = inlined_call_operand.vmem [shape: f32[1,128], index: 5, kind: input, shape index: {}]
  %s6 = inlined_call_operand.vmem [shape: f32[1,128], index: 6, kind: input, shape index: {}]
  %s7 = inlined_call_operand.vmem [shape: f32[1,128], index: 7, kind: input, shape index: {}]
  %s8 = inlined_call_operand.hbm [shape: bf16[128,128], index: 8, kind: input, shape index: {}]
  %s9 = inlined_call_operand.vmem [shape: f32[1,128], index: 9, kind: input, shape index: {}]
  %s10 = inlined_call_operand.hbm [shape: bf16[128,128], index: 10, kind: input, shape index: {}]
  %s11 = inlined_call_operand.vmem [shape: f32[1,128], index: 11, kind: input, shape index: {}]
  %s12 = inlined_call_operand.vmem [shape: f32[1,128], index: 12, kind: input, shape index: {}]
  %s13 = inlined_call_operand.vmem [shape: f32[1,128], index: 13, kind: input, shape index: {}]
  %s14 = inlined_call_operand.hbm [shape: f32[2,1,128], index: 14, kind: output, shape index: {}]
  %s15 = sld [smem:[#allocation0]]
  $region113: #{tpu_custom_call.1} parent=0
    _
  %s17 = ssub.s32 1, %s15
  %s18 = scalar_select 0, %s17, %s15
  $region1: #{tpu_custom_call.1} parent=0
    #allocation2 [shape = 'u8[1024]{0}', space=vmem, size = 0x400, scoped, tag = 'input window, operand 0']
    #allocation3 [shape = 's32[2]{0}', space=sflag, size = 0x8, scoped, tag = 'scoped memory for tpu_custom_call.1']
    #allocation4 [shape = 's32[2]{0}', space=sflag, size = 0x8, scoped, tag = 'scoped memory for tpu_custom_call.1']
    #allocation5 [shape = 'u8[8192]{0}', space=vmem, size = 0x2000, scoped, tag = 'input window, operand 1']
    #allocation6 [shape = 's32[2]{0}', space=sflag, size = 0x8, scoped, tag = 'scoped memory for tpu_custom_call.1']
    #allocation7 [shape = 'u8[98304]{0}', space=vmem, size = 0x18000, scoped, tag = 'input window, operand 2, single buffered']
    #allocation8 [shape = 'u8[32768]{0}', space=vmem, size = 0x8000, scoped, tag = 'input window, operand 4, single buffered']
    #allocation9 [shape = 's32[1]{0}', space=sflag, size = 0x4, scoped, tag = 'scoped memory for tpu_custom_call.1']
    #allocation10 [shape = 'u8[32768]{0}', space=vmem, size = 0x8000, scoped, tag = 'input window, operand 8, single buffered']
    #allocation11 [shape = 'u8[32768]{0}', space=vmem, size = 0x8000, scoped, tag = 'input window, operand 10, single buffered']
    #allocation12 [shape = 's32[1]{0}', space=sflag, size = 0x4, scoped, tag = 'scoped memory for tpu_custom_call.1']
    #allocation13 [shape = 'u8[1024]{0}', space=vmem, size = 0x400, scoped, tag = 'output window, operand 0']
    %19 = vsyncpa [#allocation3], 0
    %s20 = scalar_lea.sflag [#allocation3], 1
    %21 = vsyncpa %s20, 0
    %22 = vsyncpa [#allocation6], 0
    %s23 = scalar_lea.sflag [#allocation6], 1
    %24 = vsyncpa %s23, 0
    %25 = vsyncpa [#allocation9], 0
    %26 = vsyncpa [#allocation12], 0
    %27 = vsyncpa [#allocation4], 0
    %s28 = scalar_lea.sflag [#allocation4], 1
    %29 = vsyncpa %s28, 0
    loop: start=0, step=1, limit=4
    $region2: #{tpu_custom_call.1} parent=1 // loop_pre_header
      _
    $region3: #{tpu_custom_call.1} parent=1 // loop_header
      %s31 = sphi 0, %s35
      %p32 = scmp.ge.s32.totalorder %s31, 4
      %s41 = sphi 0, %s43
      %s44 = sphi 0, %s41
      %s45 = sphi 0, %s44
      %s61 = sphi 0, %s45
      %s67 = sphi 0, %s69
      %s70 = sphi 0, %s67
      %s71 = sphi 0, %s70
      %s87 = sphi 0, %s71
      %s91 = sphi 0, %s91
      %s93 = sphi 0, %s91
      %s94 = sphi 0, %s93
      %s108 = sphi 0, %s94
      %s112 = sphi 0, %s112
      %s114 = sphi 0, %s112
      %s115 = sphi 0, %s114
      %s129 = sphi 0, %s115
      %s133 = sphi 0, %s133
      %s135 = sphi 0, %s133
      %s136 = sphi 0, %s135
      %s150 = sphi 0, %s136
      %s154 = sphi 0, %s154
      %s156 = sphi 0, %s154
      %s157 = sphi 0, %s156
      %s171 = sphi 0, %s157
      %s175 = sphi 0, %s175
      %s177 = sphi 0, %s175
      %s178 = sphi 0, %s177
      %s192 = sphi 0, %s178
      %s196 = sphi 0, %s196
      %s198 = sphi 0, %s196
      %s199 = sphi 0, %s198
      %s213 = sphi 0, %s199
      %s217 = sphi 0, %s217
      %s219 = sphi 0, %s217
      %s220 = sphi 0, %s219
      %s234 = sphi 0, %s220
      %s238 = sphi 0, %s238
      %s240 = sphi 0, %s238
      %s241 = sphi 0, %s240
      %s255 = sphi 0, %s241
      %s259 = sphi 0, %s259
      %s261 = sphi 0, %s259
      %s262 = sphi 0, %s261
      %s276 = sphi 0, %s262
      %s280 = sphi 0, %s280
      %s282 = sphi 0, %s280
      %s283 = sphi 0, %s282
      %s297 = sphi 0, %s283
      %s301 = sphi 0, %s301
      %s303 = sphi 0, %s301
      %s304 = sphi 0, %s303
      %s318 = sphi 0, %s304
      %s322 = sphi 0, %s322
      %s324 = sphi 0, %s322
      %s325 = sphi 0, %s324
      %s339 = sphi 0, %s325
      %s345 = sphi 0, %s347
      %s348 = sphi 0, %s345
      %s349 = sphi 0, %s348
      %s365 = sphi 0, %s349
    $region4: #{tpu_custom_call.1} parent=1 // loop_header_branch
      %34 = sbr.rel (%p32) target = $region8
    $region5: #{tpu_custom_call.1} parent=1 // loop_body
      %s36 = ssub.s32 %s31, 1
      %s37 = ssub.s32 %s31, 2
      %s38 = sadd.s32 %s31, 1
      %s39 = ssub.s32 %s31, %s38
      %p40 = scmp.eq.s32.totalorder %s39, 0
      %s42 = sadd.s32 %s41, 1
      %s43 = scalar_select %p40, %s41, %s42
      %p46 = pneg %p40
      %p47 = scmp.eq.s32.totalorder %s31, 1
      %p48 = por %p46, %p47
      %p49 = scmp.ne.s32.totalorder %s41, %s44
      %p50 = scmp.eq.s32.totalorder %s31, 0
      %p51 = por %p49, %p50
      %p52 = scmp.ne.s32.totalorder %s41, %s44
      %p53 = scmp.eq.s32.totalorder %s36, 1
      %p54 = por %p52, %p53
      %p55 = scmp.ne.s32.totalorder %s44, %s45
      %p56 = scmp.eq.s32.totalorder %s36, 0
      %p57 = por %p55, %p56
      %p58 = scmp.ne.s32.totalorder %s44, %s45
      %p59 = scmp.eq.s32.totalorder %s37, 1
      %p60 = por %p58, %p59
      %p62 = scmp.ne.s32.totalorder %s45, %s61
      %p63 = scmp.eq.s32.totalorder %s37, 0
      %p64 = por %p62, %p63
      %s65 = ssub.s32 %s31, %s38
      %p66 = scmp.eq.s32.totalorder %s65, 0
      %s68 = sadd.s32 %s67, 1
      %s69 = scalar_select %p66, %s67, %s68
      %p72 = pneg %p66
      %p73 = scmp.eq.s32.totalorder %s31, 1
      %p74 = por %p72, %p73
      %p75 = scmp.ne.s32.totalorder %s67, %s70
      %p76 = scmp.eq.s32.totalorder %s31, 0
      %p77 = por %p75, %p76
      %p78 = scmp.ne.s32.totalorder %s67, %s70
      %p79 = scmp.eq.s32.totalorder %s36, 1
      %p80 = por %p78, %p79
      %p81 = scmp.ne.s32.totalorder %s70, %s71
      %p82 = scmp.eq.s32.totalorder %s36, 0
      %p83 = por %p81, %p82
      %p84 = scmp.ne.s32.totalorder %s70, %s71
      %p85 = scmp.eq.s32.totalorder %s37, 1
      %p86 = por %p84, %p85
      %p88 = scmp.ne.s32.totalorder %s71, %s87
      %p89 = scmp.eq.s32.totalorder %s37, 0
      %p90 = por %p88, %p89
      %s92 = sadd.s32 %s91, 1
      %p95 = scmp.eq.s32.totalorder %s31, 1
      %p96 = scmp.ne.s32.totalorder %s91, %s93
      %p97 = scmp.eq.s32.totalorder %s31, 0
      %p98 = por %p96, %p97
      %p99 = scmp.ne.s32.totalorder %s91, %s93
      %p100 = scmp.eq.s32.totalorder %s36, 1
      %p101 = por %p99, %p100
      %p102 = scmp.ne.s32.totalorder %s93, %s94
      %p103 = scmp.eq.s32.totalorder %s36, 0
      %p104 = por %p102, %p103
      %p105 = scmp.ne.s32.totalorder %s93, %s94
      %p106 = scmp.eq.s32.totalorder %s37, 1
      %p107 = por %p105, %p106
      %p109 = scmp.ne.s32.totalorder %s94, %s108
      %p110 = scmp.eq.s32.totalorder %s37, 0
      %p111 = por %p109, %p110
      %s113 = sadd.s32 %s112, 1
      %p116 = scmp.eq.s32.totalorder %s31, 1
      %p117 = scmp.ne.s32.totalorder %s112, %s114
      %p118 = scmp.eq.s32.totalorder %s31, 0
      %p119 = por %p117, %p118
      %p120 = scmp.ne.s32.totalorder %s112, %s114
      %p121 = scmp.eq.s32.totalorder %s36, 1
      %p122 = por %p120, %p121
      %p123 = scmp.ne.s32.totalorder %s114, %s115
      %p124 = scmp.eq.s32.totalorder %s36, 0
      %p125 = por %p123, %p124
      %p126 = scmp.ne.s32.totalorder %s114, %s115
      %p127 = scmp.eq.s32.totalorder %s37, 1
      %p128 = por %p126, %p127
      %p130 = scmp.ne.s32.totalorder %s115, %s129
      %p131 = scmp.eq.s32.totalorder %s37, 0
      %p132 = por %p130, %p131
      %s134 = sadd.s32 %s133, 1
      %p137 = scmp.eq.s32.totalorder %s31, 1
      %p138 = scmp.ne.s32.totalorder %s133, %s135
      %p139 = scmp.eq.s32.totalorder %s31, 0
      %p140 = por %p138, %p139
      %p141 = scmp.ne.s32.totalorder %s133, %s135
      %p142 = scmp.eq.s32.totalorder %s36, 1
      %p143 = por %p141, %p142
      %p144 = scmp.ne.s32.totalorder %s135, %s136
      %p145 = scmp.eq.s32.totalorder %s36, 0
      %p146 = por %p144, %p145
      %p147 = scmp.ne.s32.totalorder %s135, %s136
      %p148 = scmp.eq.s32.totalorder %s37, 1
      %p149 = por %p147, %p148
      %p151 = scmp.ne.s32.totalorder %s136, %s150
      %p152 = scmp.eq.s32.totalorder %s37, 0
      %p153 = por %p151, %p152
      %s155 = sadd.s32 %s154, 1
      %p158 = scmp.eq.s32.totalorder %s31, 1
      %p159 = scmp.ne.s32.totalorder %s154, %s156
      %p160 = scmp.eq.s32.totalorder %s31, 0
      %p161 = por %p159, %p160
      %p162 = scmp.ne.s32.totalorder %s154, %s156
      %p163 = scmp.eq.s32.totalorder %s36, 1
      %p164 = por %p162, %p163
      %p165 = scmp.ne.s32.totalorder %s156, %s157
      %p166 = scmp.eq.s32.totalorder %s36, 0
      %p167 = por %p165, %p166
      %p168 = scmp.ne.s32.totalorder %s156, %s157
      %p169 = scmp.eq.s32.totalorder %s37, 1
      %p170 = por %p168, %p169
      %p172 = scmp.ne.s32.totalorder %s157, %s171
      %p173 = scmp.eq.s32.totalorder %s37, 0
      %p174 = por %p172, %p173
      %s176 = sadd.s32 %s175, 1
      %p179 = scmp.eq.s32.totalorder %s31, 1
      %p180 = scmp.ne.s32.totalorder %s175, %s177
      %p181 = scmp.eq.s32.totalorder %s31, 0
      %p182 = por %p180, %p181
      %p183 = scmp.ne.s32.totalorder %s175, %s177
      %p184 = scmp.eq.s32.totalorder %s36, 1
      %p185 = por %p183, %p184
      %p186 = scmp.ne.s32.totalorder %s177, %s178
      %p187 = scmp.eq.s32.totalorder %s36, 0
      %p188 = por %p186, %p187
      %p189 = scmp.ne.s32.totalorder %s177, %s178
      %p190 = scmp.eq.s32.totalorder %s37, 1
      %p191 = por %p189, %p190
      %p193 = scmp.ne.s32.totalorder %s178, %s192
      %p194 = scmp.eq.s32.totalorder %s37, 0
      %p195 = por %p193, %p194
      %s197 = sadd.s32 %s196, 1
      %p200 = scmp.eq.s32.totalorder %s31, 1
      %p201 = scmp.ne.s32.totalorder %s196, %s198
      %p202 = scmp.eq.s32.totalorder %s31, 0
      %p203 = por %p201, %p202
      %p204 = scmp.ne.s32.totalorder %s196, %s198
      %p205 = scmp.eq.s32.totalorder %s36, 1
      %p206 = por %p204, %p205
      %p207 = scmp.ne.s32.totalorder %s198, %s199
      %p208 = scmp.eq.s32.totalorder %s36, 0
      %p209 = por %p207, %p208
      %p210 = scmp.ne.s32.totalorder %s198, %s199
      %p211 = scmp.eq.s32.totalorder %s37, 1
      %p212 = por %p210, %p211
      %p214 = scmp.ne.s32.totalorder %s199, %s213
      %p215 = scmp.eq.s32.totalorder %s37, 0
      %p216 = por %p214, %p215
      %s218 = sadd.s32 %s217, 1
      %p221 = scmp.eq.s32.totalorder %s31, 1
      %p222 = scmp.ne.s32.totalorder %s217, %s219
      %p223 = scmp.eq.s32.totalorder %s31, 0
      %p224 = por %p222, %p223
      %p225 = scmp.ne.s32.totalorder %s217, %s219
      %p226 = scmp.eq.s32.totalorder %s36, 1
      %p227 = por %p225, %p226
      %p228 = scmp.ne.s32.totalorder %s219, %s220
      %p229 = scmp.eq.s32.totalorder %s36, 0
      %p230 = por %p228, %p229
      %p231 = scmp.ne.s32.totalorder %s219, %s220
      %p232 = scmp.eq.s32.totalorder %s37, 1
      %p233 = por %p231, %p232
      %p235 = scmp.ne.s32.totalorder %s220, %s234
      %p236 = scmp.eq.s32.totalorder %s37, 0
      %p237 = por %p235, %p236
      %s239 = sadd.s32 %s238, 1
      %p242 = scmp.eq.s32.totalorder %s31, 1
      %p243 = scmp.ne.s32.totalorder %s238, %s240
      %p244 = scmp.eq.s32.totalorder %s31, 0
      %p245 = por %p243, %p244
      %p246 = scmp.ne.s32.totalorder %s238, %s240
      %p247 = scmp.eq.s32.totalorder %s36, 1
      %p248 = por %p246, %p247
      %p249 = scmp.ne.s32.totalorder %s240, %s241
      %p250 = scmp.eq.s32.totalorder %s36, 0
      %p251 = por %p249, %p250
      %p252 = scmp.ne.s32.totalorder %s240, %s241
      %p253 = scmp.eq.s32.totalorder %s37, 1
      %p254 = por %p252, %p253
      %p256 = scmp.ne.s32.totalorder %s241, %s255
      %p257 = scmp.eq.s32.totalorder %s37, 0
      %p258 = por %p256, %p257
      %s260 = sadd.s32 %s259, 1
      %p263 = scmp.eq.s32.totalorder %s31, 1
      %p264 = scmp.ne.s32.totalorder %s259, %s261
      %p265 = scmp.eq.s32.totalorder %s31, 0
      %p266 = por %p264, %p265
      %p267 = scmp.ne.s32.totalorder %s259, %s261
      %p268 = scmp.eq.s32.totalorder %s36, 1
      %p269 = por %p267, %p268
      %p270 = scmp.ne.s32.totalorder %s261, %s262
      %p271 = scmp.eq.s32.totalorder %s36, 0
      %p272 = por %p270, %p271
      %p273 = scmp.ne.s32.totalorder %s261, %s262
      %p274 = scmp.eq.s32.totalorder %s37, 1
      %p275 = por %p273, %p274
      %p277 = scmp.ne.s32.totalorder %s262, %s276
      %p278 = scmp.eq.s32.totalorder %s37, 0
      %p279 = por %p277, %p278
      %s281 = sadd.s32 %s280, 1
      %p284 = scmp.eq.s32.totalorder %s31, 1
      %p285 = scmp.ne.s32.totalorder %s280, %s282
      %p286 = scmp.eq.s32.totalorder %s31, 0
      %p287 = por %p285, %p286
      %p288 = scmp.ne.s32.totalorder %s280, %s282
      %p289 = scmp.eq.s32.totalorder %s36, 1
      %p290 = por %p288, %p289
      %p291 = scmp.ne.s32.totalorder %s282, %s283
      %p292 = scmp.eq.s32.totalorder %s36, 0
      %p293 = por %p291, %p292
      %p294 = scmp.ne.s32.totalorder %s282, %s283
      %p295 = scmp.eq.s32.totalorder %s37, 1
      %p296 = por %p294, %p295
      %p298 = scmp.ne.s32.totalorder %s283, %s297
      %p299 = scmp.eq.s32.totalorder %s37, 0
      %p300 = por %p298, %p299
      %s302 = sadd.s32 %s301, 1
      %p305 = scmp.eq.s32.totalorder %s31, 1
      %p306 = scmp.ne.s32.totalorder %s301, %s303
      %p307 = scmp.eq.s32.totalorder %s31, 0
      %p308 = por %p306, %p307
      %p309 = scmp.ne.s32.totalorder %s301, %s303
      %p310 = scmp.eq.s32.totalorder %s36, 1
      %p311 = por %p309, %p310
      %p312 = scmp.ne.s32.totalorder %s303, %s304
      %p313 = scmp.eq.s32.totalorder %s36, 0
      %p314 = por %p312, %p313
      %p315 = scmp.ne.s32.totalorder %s303, %s304
      %p316 = scmp.eq.s32.totalorder %s37, 1
      %p317 = por %p315, %p316
      %p319 = scmp.ne.s32.totalorder %s304, %s318
      %p320 = scmp.eq.s32.totalorder %s37, 0
      %p321 = por %p319, %p320
      %s323 = sadd.s32 %s322, 1
      %p326 = scmp.eq.s32.totalorder %s31, 1
      %p327 = scmp.ne.s32.totalorder %s322, %s324
      %p328 = scmp.eq.s32.totalorder %s31, 0
      %p329 = por %p327, %p328
      %p330 = scmp.ne.s32.totalorder %s322, %s324
      %p331 = scmp.eq.s32.totalorder %s36, 1
      %p332 = por %p330, %p331
      %p333 = scmp.ne.s32.totalorder %s324, %s325
      %p334 = scmp.eq.s32.totalorder %s36, 0
      %p335 = por %p333, %p334
      %p336 = scmp.ne.s32.totalorder %s324, %s325
      %p337 = scmp.eq.s32.totalorder %s37, 1
      %p338 = por %p336, %p337
      %p340 = scmp.ne.s32.totalorder %s325, %s339
      %p341 = scmp.eq.s32.totalorder %s37, 0
      %p342 = por %p340, %p341
      %s343 = ssub.s32 %s31, %s38
      %p344 = scmp.eq.s32.totalorder %s343, 0
      %s346 = sadd.s32 %s345, 1
      %s347 = scalar_select %p344, %s345, %s346
      %p350 = pneg %p344
      %p351 = scmp.eq.s32.totalorder %s31, 1
      %p352 = por %p350, %p351
      %p353 = scmp.ne.s32.totalorder %s345, %s348
      %p354 = scmp.eq.s32.totalorder %s31, 0
      %p355 = por %p353, %p354
      %p356 = scmp.ne.s32.totalorder %s345, %s348
      %p357 = scmp.eq.s32.totalorder %s36, 1
      %p358 = por %p356, %p357
      %p359 = scmp.ne.s32.totalorder %s348, %s349
      %p360 = scmp.eq.s32.totalorder %s36, 0
      %p361 = por %p359, %p360
      %p362 = scmp.ne.s32.totalorder %s348, %s349
      %p363 = scmp.eq.s32.totalorder %s37, 1
      %p364 = por %p362, %p363
      %p366 = scmp.ne.s32.totalorder %s349, %s365
      %p367 = scmp.eq.s32.totalorder %s37, 0
      %p368 = por %p366, %p367
      %p369 = scmp.le.s32.totalorder 1, %s31
      %p370 = scmp.lt.s32.totalorder %s31, 3
      %p371 = pnand %p369, %p370
      %p372 = pneg %p371
      // Predicated region
      $region9: #{tpu_custom_call.1} parent=5 // pred_check
        _
      $region10: #{tpu_custom_call.1} parent=5 // pred_check_branch
        %374 = sbr.rel (%p371) target = $region12
      $region11: #{tpu_custom_call.1} parent=5 // pred_region
        %s375 = ssub.s32 %s31, 1
        // Predicated region
        $region13: #{tpu_custom_call.1} parent=11 // pred_check
          %p376 = pneg %p104
        $region14: #{tpu_custom_call.1} parent=11 // pred_check_branch
          %378 = sbr.rel (%p376) target = $region16
        $region15: #{tpu_custom_call.1} parent=11 // pred_region
          %s380 = ssub.s32 3072, 3072
          %381 = vsyncadd [#allocation6], %s380
          %s382 = sshll.u32 [#allocation7], 4
          %s383 = int_to_ptr.vmem [resolvable:$true] %s382
          %388 = dma.hbm_to_vmem [thread:$0]  %s2, 3072, %s383, [#allocation6], 192, 192, 12
        $region16: #{tpu_custom_call.1} parent=11 // pred_fallthru
          _
        // Predicated region
        $region17: #{tpu_custom_call.1} parent=11 // pred_check
          %p389 = pneg %p125
        $region18: #{tpu_custom_call.1} parent=11 // pred_check_branch
          %391 = sbr.rel (%p389) target = $region20
        $region19: #{tpu_custom_call.1} parent=11 // pred_region
          _
        $region20: #{tpu_custom_call.1} parent=11 // pred_fallthru
          _
        // Predicated region
        $region21: #{tpu_custom_call.1} parent=11 // pred_check
          %p392 = pneg %p146
        $region22: #{tpu_custom_call.1} parent=11 // pred_check_branch
          %394 = sbr.rel (%p392) target = $region24
        $region23: #{tpu_custom_call.1} parent=11 // pred_region
          %s396 = ssub.s32 1024, 1024
          %397 = vsyncadd [#allocation9], %s396
          %s398 = sshll.u32 [#allocation8], 4
          %s399 = int_to_ptr.vmem [resolvable:$true] %s398
          %404 = dma.hbm_to_vmem [thread:$0]  %s4, 1024, %s399, [#allocation9], 64, 64, 4
        $region24: #{tpu_custom_call.1} parent=11 // pred_fallthru
          _
        // Predicated region
        $region25: #{tpu_custom_call.1} parent=11 // pred_check
          %p405 = pneg %p167
        $region26: #{tpu_custom_call.1} parent=11 // pred_check_branch
          %407 = sbr.rel (%p405) target = $region28
        $region27: #{tpu_custom_call.1} parent=11 // pred_region
          _
        $region28: #{tpu_custom_call.1} parent=11 // pred_fallthru
          _
        // Predicated region
        $region29: #{tpu_custom_call.1} parent=11 // pred_check
          %p408 = pneg %p188
        $region30: #{tpu_custom_call.1} parent=11 // pred_check_branch
          %410 = sbr.rel (%p408) target = $region32
        $region31: #{tpu_custom_call.1} parent=11 // pred_region
          _
        $region32: #{tpu_custom_call.1} parent=11 // pred_fallthru
          _
        // Predicated region
        $region33: #{tpu_custom_call.1} parent=11 // pred_check
          %p411 = pneg %p209
        $region34: #{tpu_custom_call.1} parent=11 // pred_check_branch
          %413 = sbr.rel (%p411) target = $region36
        $region35: #{tpu_custom_call.1} parent=11 // pred_region
          _
        $region36: #{tpu_custom_call.1} parent=11 // pred_fallthru
          _
        // Predicated region
        $region37: #{tpu_custom_call.1} parent=11 // pred_check
          %p414 = pneg %p230
        $region38: #{tpu_custom_call.1} parent=11 // pred_check_branch
          %416 = sbr.rel (%p414) target = $region40
        $region39: #{tpu_custom_call.1} parent=11 // pred_region
          %s418 = ssub.s32 1024, 1024
          %419 = vsyncadd [#allocation9], %s418
          %s420 = sshll.u32 [#allocation10], 4
          %s421 = int_to_ptr.vmem [resolvable:$true] %s420
          %426 = dma.hbm_to_vmem [thread:$0]  %s8, 1024, %s421, [#allocation9], 64, 64, 4
        $region40: #{tpu_custom_call.1} parent=11 // pred_fallthru
          _
        // Predicated region
        $region41: #{tpu_custom_call.1} parent=11 // pred_check
          %p427 = pneg %p251
        $region42: #{tpu_custom_call.1} parent=11 // pred_check_branch
          %429 = sbr.rel (%p427) target = $region44
        $region43: #{tpu_custom_call.1} parent=11 // pred_region
          _
        $region44: #{tpu_custom_call.1} parent=11 // pred_fallthru
          _
        // Predicated region
        $region45: #{tpu_custom_call.1} parent=11 // pred_check
          %p430 = pneg %p272
        $region46: #{tpu_custom_call.1} parent=11 // pred_check_branch
          %432 = sbr.rel (%p430) target = $region48
        $region47: #{tpu_custom_call.1} parent=11 // pred_region
          %s434 = ssub.s32 1024, 1024
          %435 = vsyncadd [#allocation12], %s434
          %s436 = sshll.u32 [#allocation11], 4
          %s437 = int_to_ptr.vmem [resolvable:$true] %s436
          %442 = dma.hbm_to_vmem [thread:$0]  %s10, 1024, %s437, [#allocation12], 64, 64, 4
        $region48: #{tpu_custom_call.1} parent=11 // pred_fallthru
          _
        // Predicated region
        $region49: #{tpu_custom_call.1} parent=11 // pred_check
          %p443 = pneg %p293
        $region50: #{tpu_custom_call.1} parent=11 // pred_check_branch
          %445 = sbr.rel (%p443) target = $region52
        $region51: #{tpu_custom_call.1} parent=11 // pred_region
          _
        $region52: #{tpu_custom_call.1} parent=11 // pred_fallthru
          _
        // Predicated region
        $region53: #{tpu_custom_call.1} parent=11 // pred_check
          %p446 = pneg %p314
        $region54: #{tpu_custom_call.1} parent=11 // pred_check_branch
          %448 = sbr.rel (%p446) target = $region56
        $region55: #{tpu_custom_call.1} parent=11 // pred_region
          _
        $region56: #{tpu_custom_call.1} parent=11 // pred_fallthru
          _
        // Predicated region
        $region57: #{tpu_custom_call.1} parent=11 // pred_check
          %p449 = pneg %p335
        $region58: #{tpu_custom_call.1} parent=11 // pred_check_branch
          %451 = sbr.rel (%p449) target = $region60
        $region59: #{tpu_custom_call.1} parent=11 // pred_region
          _
        $region60: #{tpu_custom_call.1} parent=11 // pred_fallthru
          _
      $region12: #{tpu_custom_call.1} parent=5 // pred_fallthru
        _
      %p452 = scmp.lt.s32.totalorder %s31, 2
      // Predicated region
      $region61: #{tpu_custom_call.1} parent=5 // pred_check
        %p453 = pneg %p452
      $region62: #{tpu_custom_call.1} parent=5 // pred_check_branch
        %455 = sbr.rel (%p453) target = $region64
      $region63: #{tpu_custom_call.1} parent=5 // pred_region
        // Predicated region
        $region65: #{tpu_custom_call.1} parent=63 // pred_check
          %p456 = pneg %p51
        $region66: #{tpu_custom_call.1} parent=63 // pred_check_branch
          %458 = sbr.rel (%p456) target = $region68
        $region67: #{tpu_custom_call.1} parent=63 // pred_region
          %s459 = sand.u32 %s41, 1
          %s460 = scalar_lea.sflag [#allocation3], %s459
          %s461 = sand.u32 %s41, 1
          %s462 = scalar_lea.vmem [#allocation2], %s461
          %s464 = ssub.s32 16, 16
          %465 = vsyncadd %s460, %s464
          %s466 = smul.addr %s31, 16
          %s467 = scalar_lea.hbm %s0, %s466
          %s469 = sshll.u32 %s462, 4
          %s470 = int_to_ptr.vmem [resolvable:$true] %s469
          %472 = dma.hbm_to_vmem [thread:$0]  %s467, 16, %s470, %s460
        $region68: #{tpu_custom_call.1} parent=63 // pred_fallthru
          _
        // Predicated region
        $region69: #{tpu_custom_call.1} parent=63 // pred_check
          %p473 = pneg %p77
        $region70: #{tpu_custom_call.1} parent=63 // pred_check_branch
          %475 = sbr.rel (%p473) target = $region72
        $region71: #{tpu_custom_call.1} parent=63 // pred_region
          %s476 = sand.u32 %s31, 1
          %s477 = scalar_lea.sflag [#allocation6], %s476
          %s478 = sand.u32 %s67, 1
          %s479 = smul.addr %s478, 8
          %s480 = scalar_lea.vmem [#allocation5], %s479
          %s482 = ssub.s32 128, 128
          %483 = vsyncadd %s477, %s482
          %s484 = smul.addr %s31, 128
          %s485 = scalar_lea.hbm %s1, %s484
          %s487 = sshll.u32 %s480, 4
          %s488 = int_to_ptr.vmem [resolvable:$true] %s487
          %490 = dma.hbm_to_vmem [thread:$0]  %s485, 128, %s488, %s477
        $region72: #{tpu_custom_call.1} parent=63 // pred_fallthru
          _
      $region64: #{tpu_custom_call.1} parent=5 // pred_fallthru
        _
      %p491 = scmp.le.s32.totalorder 1, %s31
      %p492 = scmp.lt.s32.totalorder %s31, 3
      %p493 = pnand %p491, %p492
      %p494 = pneg %p493
      // Predicated region
      $region73: #{tpu_custom_call.1} parent=5 // pred_check
        _
      $region74: #{tpu_custom_call.1} parent=5 // pred_check_branch
        %496 = sbr.rel (%p493) target = $region76
      $region75: #{tpu_custom_call.1} parent=5 // pred_region
        %s497 = ssub.s32 %s31, 1
        %s498 = sand.u32 %s44, 1
        %s499 = scalar_lea.sflag [#allocation3], %s498
        %s500 = sand.u32 %s44, 1
        %s501 = scalar_lea.vmem [#allocation2], %s500
        // Predicated region
        $region77: #{tpu_custom_call.1} parent=75 // pred_check
          %p502 = pneg %p57
        $region78: #{tpu_custom_call.1} parent=75 // pred_check_branch
          %504 = sbr.rel (%p502) target = $region80
        $region79: #{tpu_custom_call.1} parent=75 // pred_region
          %505 = dma.done %s499, 16
        $region80: #{tpu_custom_call.1} parent=75 // pred_fallthru
          _
        %s506 = sand.u32 %s36, 1
        %s507 = scalar_lea.sflag [#allocation6], %s506
        %s508 = sand.u32 %s70, 1
        %s509 = smul.addr %s508, 8
        %s510 = scalar_lea.vmem [#allocation5], %s509
        // Predicated region
        $region81: #{tpu_custom_call.1} parent=75 // pred_check
          %p511 = pneg %p83
        $region82: #{tpu_custom_call.1} parent=75 // pred_check_branch
          %513 = sbr.rel (%p511) target = $region84
        $region83: #{tpu_custom_call.1} parent=75 // pred_region
          %514 = dma.done %s507, 128
        $region84: #{tpu_custom_call.1} parent=75 // pred_fallthru
          _
        // Predicated region
        $region85: #{tpu_custom_call.1} parent=75 // pred_check
          %p515 = pneg %p104
        $region86: #{tpu_custom_call.1} parent=75 // pred_check_branch
          %517 = sbr.rel (%p515) target = $region88
        $region87: #{tpu_custom_call.1} parent=75 // pred_region
          %518 = dma.done [#allocation6], 3072
        $region88: #{tpu_custom_call.1} parent=75 // pred_fallthru
          _
        // Predicated region
        $region89: #{tpu_custom_call.1} parent=75 // pred_check
          %p519 = pneg %p146
        $region90: #{tpu_custom_call.1} parent=75 // pred_check_branch
          %521 = sbr.rel (%p519) target = $region92
        $region91: #{tpu_custom_call.1} parent=75 // pred_region
          %522 = dma.done [#allocation9], 1024
        $region92: #{tpu_custom_call.1} parent=75 // pred_fallthru
          _
        // Predicated region
        $region93: #{tpu_custom_call.1} parent=75 // pred_check
          %p523 = pneg %p230
        $region94: #{tpu_custom_call.1} parent=75 // pred_check_branch
          %525 = sbr.rel (%p523) target = $region96
        $region95: #{tpu_custom_call.1} parent=75 // pred_region
          %526 = dma.done [#allocation9], 1024
        $region96: #{tpu_custom_call.1} parent=75 // pred_fallthru
          _
        // Predicated region
        $region97: #{tpu_custom_call.1} parent=75 // pred_check
          %p527 = pneg %p272
        $region98: #{tpu_custom_call.1} parent=75 // pred_check_branch
          %529 = sbr.rel (%p527) target = $region100
        $region99: #{tpu_custom_call.1} parent=75 // pred_region
          %530 = dma.done [#allocation12], 1024
        $region100: #{tpu_custom_call.1} parent=75 // pred_fallthru
          _
        %s531 = sand.u32 %s44, 1
        %s532 = scalar_lea.sflag [#allocation3], %s531
        %s533 = sand.u32 %s44, 1
        %s534 = scalar_lea.vmem [#allocation2], %s533
        %p535 = pneg %p57
        %p536 = pneg %p54
        %s537 = sand.u32 %s36, 1
        %s538 = scalar_lea.sflag [#allocation6], %s537
        %s539 = sand.u32 %s70, 1
        %s540 = smul.addr %s539, 8
        %s541 = scalar_lea.vmem [#allocation5], %s540
        %p542 = pneg %p83
        %p543 = pneg %p80
        %p544 = pneg %p104
        %p545 = pneg %p101
        %p546 = pneg %p125
        %p547 = pneg %p122
        %p548 = pneg %p146
        %p549 = pneg %p143
        %p550 = pneg %p167
        %p551 = pneg %p164
        %p552 = pneg %p188
        %p553 = pneg %p185
        %p554 = pneg %p209
        %p555 = pneg %p206
        %p556 = pneg %p230
        %p557 = pneg %p227
        %p558 = pneg %p251
        %p559 = pneg %p248
        %p560 = pneg %p272
        %p561 = pneg %p269
        %p562 = pneg %p293
        %p563 = pneg %p290
        %p564 = pneg %p314
        %p565 = pneg %p311
        %p566 = pneg %p335
        %p567 = pneg %p332
        %p568 = pneg %p361
        %p569 = pneg %p358
        %s570 = sand.u32 %s348, 1
        %s571 = scalar_lea.sflag [#allocation4], %s570
        %s572 = sand.u32 %s348, 1
        %s573 = scalar_lea.vmem [#allocation13], %s572
        %v575 = vld [vmem:[%s510] sm:$0xff]
        %v576 = vpack.c.bf16 %v575, %v575
        %v577 = vld [vmem:[%s501] sm:$0x1]
        %v578 = vsub.f32 %v577, 1.0
        %v579 = vmul.f32 %v578, 1e+09
        %v580 = vlaneseq
        %v581 = vand.u32 %v580, 127
        %vm582 = vcmp.lt.s32.totalorder %v581, 32
        %v583 = vsel %vm582, 1, 0
        %v584 = vcvt.s32.f32 %v583
        %v585 = vld [vmem:[#allocation7] sm:$0xff]
        %v586 = vld [vmem:[#allocation7 + $0x8] sm:$0xf]
        %v587 = vld [vmem:[#allocation7 + $0xc] sm:$0xff]
        %v588 = vld [vmem:[#allocation7 + $0x14] sm:$0xf]
        %v589 = vld [vmem:[#allocation7 + $0x18] sm:$0xff]
        %v590 = vld [vmem:[#allocation7 + $0x20] sm:$0xf]
        %v591 = vld [vmem:[#allocation7 + $0x24] sm:$0xff]
        %v592 = vld [vmem:[#allocation7 + $0x2c] sm:$0xf]
        %v593 = vld [vmem:[#allocation7 + $0x30] sm:$0xff]
        %v594 = vld [vmem:[#allocation7 + $0x38] sm:$0xf]
        %v595 = vld [vmem:[#allocation7 + $0x3c] sm:$0xff]
        %v596 = vld [vmem:[#allocation7 + $0x44] sm:$0xf]
        %v597 = vld [vmem:[#allocation7 + $0x48] sm:$0xff]
        %v598 = vld [vmem:[#allocation7 + $0x50] sm:$0xf]
        %v599 = vld [vmem:[#allocation7 + $0x54] sm:$0xff]
        %v600 = vld [vmem:[#allocation7 + $0x5c] sm:$0xf]
        %v601 = vld [vmem:[#allocation7 + $0x60] sm:$0xff]
        %v602 = vld [vmem:[#allocation7 + $0x68] sm:$0xf]
        %v603 = vld [vmem:[#allocation7 + $0x6c] sm:$0xff]
        %v604 = vld [vmem:[#allocation7 + $0x74] sm:$0xf]
        %v605 = vld [vmem:[#allocation7 + $0x78] sm:$0xff]
        %v606 = vld [vmem:[#allocation7 + $0x80] sm:$0xf]
        %v607 = vld [vmem:[#allocation7 + $0x84] sm:$0xff]
        %v608 = vld [vmem:[#allocation7 + $0x8c] sm:$0xf]
        %v609 = vld [vmem:[#allocation7 + $0x90] sm:$0xff]
        %v610 = vld [vmem:[#allocation7 + $0x98] sm:$0xf]
        %v611 = vld [vmem:[#allocation7 + $0x9c] sm:$0xff]
        %v612 = vld [vmem:[#allocation7 + $0xa4] sm:$0xf]
        %v613 = vld [vmem:[#allocation7 + $0xa8] sm:$0xff]
        %v614 = vld [vmem:[#allocation7 + $0xb0] sm:$0xf]
        %v615 = vld [vmem:[#allocation7 + $0xb4] sm:$0xff]
        %v616 = vld [vmem:[#allocation7 + $0xbc] sm:$0xf]
        %v617 = vld [vmem:[%s3] sm:$0x7]
        %v619 = vlaneseq
        %v620 = vshrl.u32 %v619, 7
        %v621 = vsub.s32 0, %v620
        %v622 = vrot.slane %v617, %v621
        %v623 = vlaneseq
        %v624 = vshrl.u32 %v623, 7
        %v625 = vsub.s32 1, %v624
        %v626 = vrot.slane %v617, %v625
        %v627 = vlaneseq
        %v628 = vshrl.u32 %v627, 7
        %v629 = vsub.s32 2, %v628
        %v630 = vrot.slane %v617, %v629
        %v666 = vunpack.c.l.b16 %v585
        %v667 = vunpack.c.h.b16 %v585
        %v668 = vunpack.c.l.b16 %v586
        %v669 = vunpack.c.l.b16 %v587
        %v670 = vunpack.c.h.b16 %v587
        %v671 = vunpack.c.l.b16 %v588
        %v672 = vunpack.c.l.b16 %v589
        %v673 = vunpack.c.h.b16 %v589
        %v674 = vunpack.c.l.b16 %v590
        %v675 = vunpack.c.l.b16 %v591
        %v676 = vunpack.c.h.b16 %v591
        %v677 = vunpack.c.l.b16 %v592
        %v678 = vunpack.c.l.b16 %v593
        %v679 = vunpack.c.h.b16 %v593
        %v680 = vunpack.c.l.b16 %v594
        %v681 = vunpack.c.l.b16 %v595
        %v682 = vunpack.c.h.b16 %v595
        %v683 = vunpack.c.l.b16 %v596
        %v684 = vunpack.c.l.b16 %v597
        %v685 = vunpack.c.h.b16 %v597
        %v686 = vunpack.c.l.b16 %v598
        %v687 = vunpack.c.l.b16 %v599
        %v688 = vunpack.c.h.b16 %v599
        %v689 = vunpack.c.l.b16 %v600
        %v690 = vunpack.c.l.b16 %v601
        %v691 = vunpack.c.h.b16 %v601
        %v692 = vunpack.c.l.b16 %v602
        %v693 = vunpack.c.l.b16 %v603
        %v694 = vunpack.c.h.b16 %v603
        %v695 = vunpack.c.l.b16 %v604
        %v696 = vunpack.c.l.b16 %v605
        %v697 = vunpack.c.h.b16 %v605
        %v698 = vunpack.c.l.b16 %v606
        %v699 = vunpack.c.l.b16 %v607
        %v700 = vunpack.c.h.b16 %v607
        %v701 = vunpack.c.l.b16 %v608
        %v702 = vunpack.c.l.b16 %v609
        %v703 = vunpack.c.h.b16 %v609
        %v704 = vunpack.c.l.b16 %v610
        %v705 = vunpack.c.l.b16 %v611
        %v706 = vunpack.c.h.b16 %v611
        %v707 = vunpack.c.l.b16 %v612
        %v708 = vunpack.c.l.b16 %v613
        %v709 = vunpack.c.h.b16 %v613
        %v710 = vunpack.c.l.b16 %v614
        %v711 = vunpack.c.l.b16 %v615
        %v712 = vunpack.c.h.b16 %v615
        %v713 = vunpack.c.l.b16 %v616
        %v714 = vpack.c.b16 %v669, %v666
        %v715 = vpack.c.b16 %v670, %v667
        %v716 = vpack.c.b16 %v671, %v668
        %v717 = vpack.c.b16 %v675, %v672
        %v718 = vpack.c.b16 %v676, %v673
        %v719 = vpack.c.b16 %v677, %v674
        %v720 = vpack.c.b16 %v681, %v678
        %v721 = vpack.c.b16 %v682, %v679
        %v722 = vpack.c.b16 %v683, %v680
        %v723 = vpack.c.b16 %v687, %v684
        %v724 = vpack.c.b16 %v688, %v685
        %v725 = vpack.c.b16 %v689, %v686
        %v726 = vpack.c.b16 %v693, %v690
        %v727 = vpack.c.b16 %v694, %v691
        %v728 = vpack.c.b16 %v695, %v692
        %v729 = vpack.c.b16 %v699, %v696
        %v730 = vpack.c.b16 %v700, %v697
        %v731 = vpack.c.b16 %v701, %v698
        %v732 = vpack.c.b16 %v705, %v702
        %v733 = vpack.c.b16 %v706, %v703
        %v734 = vpack.c.b16 %v707, %v704
        %v735 = vpack.c.b16 %v711, %v708
        %v736 = vpack.c.b16 %v712, %v709
        %v737 = vpack.c.b16 %v713, %v710
        %762 = vmatprep.subr.bf16.mxu0 %v736
        %763 = vmatpush1.bf16.msra.mxu0 %v735
        %764 = vmatprep.subr.bf16.mxu0 %v733
        %765 = vmatpush1.bf16.msra.mxu0 %v732
        %766 = vmatprep.subr.bf16.mxu0 %v730
        %767 = vmatpush1.bf16.msra.mxu0 %v729
        %768 = vmatprep.subr.bf16.mxu0 %v727
        %769 = vmatpush1.bf16.msra.mxu0 %v726
        %770 = vmatprep.subr.bf16.mxu0 %v724
        %771 = vmatpush1.bf16.msra.mxu0 %v723
        %772 = vmatprep.subr.bf16.mxu0 %v721
        %773 = vmatpush1.bf16.msra.mxu0 %v720
        %774 = vmatprep.subr.bf16.mxu0 %v718
        %775 = vmatpush1.bf16.msra.mxu0 %v717
        %776 = vmatprep.subr.bf16.mxu0 %v715
        %777 = vmatpush1.bf16.msra.mxu0 %v714
        %778 = vmatprep.subr.bf16.mxu0 0
        %779 = vmatpush2.bf16.msra.mxu0 0
        %780 = vmatprep.subr.bf16.mxu0 0
        %781 = vmatpush2.bf16.msra.mxu0 0
        %782 = vmatprep.subr.bf16.mxu0 0
        %783 = vmatpush2.bf16.msra.mxu0 0
        %784 = vmatprep.subr.bf16.mxu0 0
        %785 = vmatpush2.bf16.msra.mxu0 0
        %786 = vmatprep.subr.bf16.mxu0 0
        %787 = vmatpush2.bf16.msra.mxu0 0
        %788 = vmatprep.subr.bf16.mxu0 0
        %789 = vmatpush2.bf16.msra.mxu0 0
        %790 = vmatprep.subr.bf16.mxu0 0
        %791 = vmatpush2.bf16.msra.mxu0 0
        %792 = vmatprep.subr.bf16.mxu0 0
        %793 = vmatpush2.bf16.msra.mxu0 0
        %794 = vmatprep.mubr.bf16.mxu0 0
        %795 = vmatmul.mubr.bf16.gmra.mxu0 %v576
        %v796 = vpop.f32.mrf.mxu0
        %v797 = vadd.f32 %v622, %v796
        %v798 = vpop.f32.mrf.mxu0
        %v799 = vadd.f32 %v626, %v798
        %v800 = vpop.f32.mrf.mxu0
        %v801 = vpop.f32.mrf.mxu0
        %802 = vdwg.mxu0
        %803 = vmatprep.subr.bf16.mxu0 0
        %804 = vmatpush1.bf16.msra.mxu0 %v737
        %805 = vmatprep.subr.bf16.mxu0 0
        %806 = vmatpush1.bf16.msra.mxu0 %v734
        %807 = vmatprep.subr.bf16.mxu0 0
        %808 = vmatpush1.bf16.msra.mxu0 %v731
        %809 = vmatprep.subr.bf16.mxu0 0
        %810 = vmatpush1.bf16.msra.mxu0 %v728
        %811 = vmatprep.subr.bf16.mxu0 0
        %812 = vmatpush1.bf16.msra.mxu0 %v725
        %813 = vmatprep.subr.bf16.mxu0 0
        %814 = vmatpush1.bf16.msra.mxu0 %v722
        %815 = vmatprep.subr.bf16.mxu0 0
        %816 = vmatpush1.bf16.msra.mxu0 %v719
        %817 = vmatprep.subr.bf16.mxu0 0
        %818 = vmatpush1.bf16.msra.mxu0 %v716
        %819 = vmatprep.subr.bf16.mxu0 0
        %820 = vmatpush2.bf16.msra.mxu0 0
        %821 = vmatprep.subr.bf16.mxu0 0
        %822 = vmatpush2.bf16.msra.mxu0 0
        %823 = vmatprep.subr.bf16.mxu0 0
        %824 = vmatpush2.bf16.msra.mxu0 0
        %825 = vmatprep.subr.bf16.mxu0 0
        %826 = vmatpush2.bf16.msra.mxu0 0
        %827 = vmatprep.subr.bf16.mxu0 0
        %828 = vmatpush2.bf16.msra.mxu0 0
        %829 = vmatprep.subr.bf16.mxu0 0
        %830 = vmatpush2.bf16.msra.mxu0 0
        %831 = vmatprep.subr.bf16.mxu0 0
        %832 = vmatpush2.bf16.msra.mxu0 0
        %833 = vmatprep.subr.bf16.mxu0 0
        %834 = vmatpush2.bf16.msra.mxu0 0
        %835 = vmatprep.mubr.bf16.mxu0 0
        %836 = vmatmul.mubr.bf16.gmra.mxu0 %v576
        %v837 = vpop.f32.mrf.mxu0
        %v838 = vadd.f32 %v630, %v837
        %v839 = vpop.f32.mrf.mxu0
        %v840 = vpop.f32.mrf.mxu0
        %v841 = vpop.f32.mrf.mxu0
        %842 = vdwg.mxu0
        %v843 = vpack.c.bf16 %v797, %v797
        %v844 = vpack.c.bf16 %v799, %v799
        %845 = vmatprep.subr.bf16.mxu0 0
        %846 = vmatpush1.bf16.xpose.msra.mxu0 0
        %847 = vmatprep.subr.bf16.mxu0 0
        %848 = vmatpush1.bf16.xpose.msra.mxu0 0
        %849 = vmatprep.subr.bf16.mxu0 0
        %850 = vmatpush1.bf16.xpose.msra.mxu0 0
        %851 = vmatprep.subr.bf16.mxu0 0
        %852 = vmatpush1.bf16.xpose.msra.mxu0 0
        %853 = vmatprep.subr.bf16.mxu0 0
        %854 = vmatpush1.bf16.xpose.msra.mxu0 0
        %855 = vmatprep.subr.bf16.mxu0 0
        %856 = vmatpush1.bf16.xpose.msra.mxu0 0
        %857 = vmatprep.subr.bf16.mxu0 0
        %858 = vmatpush1.bf16.xpose.msra.mxu0 0
        %859 = vmatprep.subr.bf16.mxu0 0
        %860 = vmatpush1.bf16.xpose.msra.mxu0 %v844
        %861 = vmatprep.subr.bf16.mxu0 0
        %862 = vmatpush2.bf16.xpose.msra.mxu0 0
        %863 = vmatprep.subr.bf16.mxu0 0
        %864 = vmatpush2.bf16.xpose.msra.mxu0 0
        %865 = vmatprep.subr.bf16.mxu0 0
        %866 = vmatpush2.bf16.xpose.msra.mxu0 0
        %867 = vmatprep.subr.bf16.mxu0 0
        %868 = vmatpush2.bf16.xpose.msra.mxu0 0
        %869 = vmatprep.subr.bf16.mxu0 0
        %870 = vmatpush2.bf16.xpose.msra.mxu0 0
        %871 = vmatprep.subr.bf16.mxu0 0
        %872 = vmatpush2.bf16.xpose.msra.mxu0 0
        %873 = vmatprep.subr.bf16.mxu0 0
        %874 = vmatpush2.bf16.xpose.msra.mxu0 0
        %875 = vmatprep.subr.bf16.mxu0 0
        %876 = vmatpush2.bf16.xpose.msra.mxu0 0
        %877 = vmatprep.mubr.bf16.mxu0 0
        %878 = vmatmul.mubr.bf16.gmra.mxu0 %v843
        %v879 = vpop.f32.mrf.mxu0
        %v880 = vadd.f32 0.0, %v879
        %v881 = vpop.f32.mrf.mxu0
        %v882 = vpop.f32.mrf.mxu0
        %v883 = vpop.f32.mrf.mxu0
        %884 = vdwg.mxu0
        %v885 = vmul.f32 %v880, 0.17677669
        %v887 = vlaneseq
        %v888 = vshrl.u32 %v887, 7
        %v889 = vsub.s32 0, %v888
        %v890 = vrot.slane %v579, %v889
        %v892 = vadd.f32 %v885, %v890
        %vm893 = vcmask 64512
        %v894 = vsel %vm893, %v892, -inf
        %895 = vmax.xlane.f32.xlu0 %v894
        %v896 = vpop.xlane.xlu0 %895
        %v897 = vsub.f32 %v892, %v896
        %v898 = vmul.f32 %v897, 1.442695
        %v899 = vpow.pop %v898
        %v900 = vsel %vm893, %v899, 0.0
        %901 = vadd.xlane.f32.xlu0 %v900
        %v902 = vpop.xlane.xlu0 %901
        %v903 = vrcp.pop %v902
        %v904 = vmul.f32 %v899, %v903
        %v905 = vpack.c.bf16 %v904, %v904
        %v906 = vpack.c.bf16 %v838, %v838
        %v908 = vsel %vm893, %v905, 0
        %vm910 = vcmask 1043456
        %v912 = vsel %vm910, %v906, 0
        %914 = vmatprep.subr.bf16.mxu0 0
        %915 = vmatpush1.bf16.msra.mxu0 0
        %916 = vmatprep.subr.bf16.mxu0 0
        %917 = vmatpush1.bf16.msra.mxu0 0
        %918 = vmatprep.subr.bf16.mxu0 0
        %919 = vmatpush1.bf16.msra.mxu0 0
        %920 = vmatprep.subr.bf16.mxu0 0
        %921 = vmatpush1.bf16.msra.mxu0 0
        %922 = vmatprep.subr.bf16.mxu0 0
        %923 = vmatpush1.bf16.msra.mxu0 0
        %924 = vmatprep.subr.bf16.mxu0 0
        %925 = vmatpush1.bf16.msra.mxu0 0
        %926 = vmatprep.subr.bf16.mxu0 0
        %927 = vmatpush1.bf16.msra.mxu0 0
        %928 = vmatprep.subr.bf16.mxu0 0
        %929 = vmatpush1.bf16.msra.mxu0 %v912
        %930 = vmatprep.subr.bf16.mxu0 0
        %931 = vmatpush2.bf16.msra.mxu0 0
        %932 = vmatprep.subr.bf16.mxu0 0
        %933 = vmatpush2.bf16.msra.mxu0 0
        %934 = vmatprep.subr.bf16.mxu0 0
        %935 = vmatpush2.bf16.msra.mxu0 0
        %936 = vmatprep.subr.bf16.mxu0 0
        %937 = vmatpush2.bf16.msra.mxu0 0
        %938 = vmatprep.subr.bf16.mxu0 0
        %939 = vmatpush2.bf16.msra.mxu0 0
        %940 = vmatprep.subr.bf16.mxu0 0
        %941 = vmatpush2.bf16.msra.mxu0 0
        %942 = vmatprep.subr.bf16.mxu0 0
        %943 = vmatpush2.bf16.msra.mxu0 0
        %944 = vmatprep.subr.bf16.mxu0 0
        %945 = vmatpush2.bf16.msra.mxu0 0
        %946 = vmatprep.mubr.bf16.mxu0 0
        %947 = vmatmul.mubr.bf16.gmra.mxu0 %v908
        %v948 = vpop.f32.mrf.mxu0
        %v949 = vadd.f32 0.0, %v948
        %v950 = vpop.f32.mrf.mxu0
        %v951 = vpop.f32.mrf.mxu0
        %v952 = vpop.f32.mrf.mxu0
        %953 = vdwg.mxu0
        %v954 = vpack.c.bf16 %v949, %v949
        %v955 = vld [vmem:[#allocation8] sm:$0xf]
        %v956 = vld [vmem:[#allocation8 + $0x4] sm:$0xf]
        %v957 = vld [vmem:[#allocation8 + $0x8] sm:$0xf]
        %v958 = vld [vmem:[#allocation8 + $0xc] sm:$0xf]
        %v959 = vld [vmem:[#allocation8 + $0x10] sm:$0xf]
        %v960 = vld [vmem:[#allocation8 + $0x14] sm:$0xf]
        %v961 = vld [vmem:[#allocation8 + $0x18] sm:$0xf]
        %v962 = vld [vmem:[#allocation8 + $0x1c] sm:$0xf]
        %v963 = vld [vmem:[#allocation8 + $0x20] sm:$0xf]
        %v964 = vld [vmem:[#allocation8 + $0x24] sm:$0xf]
        %v965 = vld [vmem:[#allocation8 + $0x28] sm:$0xf]
        %v966 = vld [vmem:[#allocation8 + $0x2c] sm:$0xf]
        %v967 = vld [vmem:[#allocation8 + $0x30] sm:$0xf]
        %v968 = vld [vmem:[#allocation8 + $0x34] sm:$0xf]
        %v969 = vld [vmem:[#allocation8 + $0x38] sm:$0xf]
        %v970 = vld [vmem:[#allocation8 + $0x3c] sm:$0xf]
        %v971 = vld [vmem:[%s5] sm:$0x1]
        %v973 = vlaneseq
        %v974 = vshrl.u32 %v973, 7
        %v975 = vsub.s32 0, %v974
        %v976 = vrot.slane %v971, %v975
        %v994 = vunpack.c.l.b16 %v955
        %v995 = vunpack.c.l.b16 %v956
        %v996 = vunpack.c.l.b16 %v957
        %v997 = vunpack.c.l.b16 %v958
        %v998 = vunpack.c.l.b16 %v959
        %v999 = vunpack.c.l.b16 %v960
        %v1000 = vunpack.c.l.b16 %v961
        %v1001 = vunpack.c.l.b16 %v962
        %v1002 = vunpack.c.l.b16 %v963
        %v1003 = vunpack.c.l.b16 %v964
        %v1004 = vunpack.c.l.b16 %v965
        %v1005 = vunpack.c.l.b16 %v966
        %v1006 = vunpack.c.l.b16 %v967
        %v1007 = vunpack.c.l.b16 %v968
        %v1008 = vunpack.c.l.b16 %v969
        %v1009 = vunpack.c.l.b16 %v970
        %v1010 = vpack.c.b16 %v995, %v994
        %v1011 = vpack.c.b16 %v997, %v996
        %v1012 = vpack.c.b16 %v999, %v998
        %v1013 = vpack.c.b16 %v1001, %v1000
        %v1014 = vpack.c.b16 %v1003, %v1002
        %v1015 = vpack.c.b16 %v1005, %v1004
        %v1016 = vpack.c.b16 %v1007, %v1006
        %v1017 = vpack.c.b16 %v1009, %v1008
        %1026 = vmatprep.subr.bf16.mxu0 0
        %1027 = vmatpush1.bf16.msra.mxu0 %v1017
        %1028 = vmatprep.subr.bf16.mxu0 0
        %1029 = vmatpush1.bf16.msra.mxu0 %v1016
        %1030 = vmatprep.subr.bf16.mxu0 0
        %1031 = vmatpush1.bf16.msra.mxu0 %v1015
        %1032 = vmatprep.subr.bf16.mxu0 0
        %1033 = vmatpush1.bf16.msra.mxu0 %v1014
        %1034 = vmatprep.subr.bf16.mxu0 0
        %1035 = vmatpush1.bf16.msra.mxu0 %v1013
        %1036 = vmatprep.subr.bf16.mxu0 0
        %1037 = vmatpush1.bf16.msra.mxu0 %v1012
        %1038 = vmatprep.subr.bf16.mxu0 0
        %1039 = vmatpush1.bf16.msra.mxu0 %v1011
        %1040 = vmatprep.subr.bf16.mxu0 0
        %1041 = vmatpush1.bf16.msra.mxu0 %v1010
        %1042 = vmatprep.subr.bf16.mxu0 0
        %1043 = vmatpush2.bf16.msra.mxu0 0
        %1044 = vmatprep.subr.bf16.mxu0 0
        %1045 = vmatpush2.bf16.msra.mxu0 0
        %1046 = vmatprep.subr.bf16.mxu0 0
        %1047 = vmatpush2.bf16.msra.mxu0 0
        %1048 = vmatprep.subr.bf16.mxu0 0
        %1049 = vmatpush2.bf16.msra.mxu0 0
        %1050 = vmatprep.subr.bf16.mxu0 0
        %1051 = vmatpush2.bf16.msra.mxu0 0
        %1052 = vmatprep.subr.bf16.mxu0 0
        %1053 = vmatpush2.bf16.msra.mxu0 0
        %1054 = vmatprep.subr.bf16.mxu0 0
        %1055 = vmatpush2.bf16.msra.mxu0 0
        %1056 = vmatprep.subr.bf16.mxu0 0
        %1057 = vmatpush2.bf16.msra.mxu0 0
        %1058 = vmatprep.mubr.bf16.mxu0 0
        %1059 = vmatmul.mubr.bf16.gmra.mxu0 %v954
        %v1060 = vpop.f32.mrf.mxu0
        %v1061 = vadd.f32 %v976, %v1060
        %v1062 = vpop.f32.mrf.mxu0
        %v1063 = vpop.f32.mrf.mxu0
        %v1064 = vpop.f32.mrf.mxu0
        %1065 = vdwg.mxu0
        %v1066 = vadd.f32 %v575, %v1061
        %v1067 = vld [vmem:[%s6] sm:$0x1]
        %v1068 = vld [vmem:[%s7] sm:$0x1]
        %1069 = vadd.xlane.f32.xlu0 %v1066
        %v1070 = vpop.xlane.xlu0 %1069
        %v1071 = vmul.f32 %v1070, 0.03125
        %v1072 = vsub.f32 %v1066, %v1071
        %v1073 = vmul.f32 %v1072, %v584
        %v1074 = vmul.f32 %v1073, %v1073
        %1075 = vadd.xlane.f32.xlu0 %v1074
        %v1076 = vpop.xlane.xlu0 %1075
        %v1077 = vmul.f32 %v1076, 0.03125
        %v1078 = vadd.f32 %v1077, 1e-05
        %v1079 = vrsqrt.pop %v1078
        %v1080 = vmul.f32 %v1073, %v1079
        %v1082 = vlaneseq
        %v1083 = vshrl.u32 %v1082, 7
        %v1084 = vsub.s32 0, %v1083
        %v1085 = vrot.slane %v1067, %v1084
        %v1087 = vmul.f32 %v1080, %v1085
        %v1089 = vlaneseq
        %v1090 = vshrl.u32 %v1089, 7
        %v1091 = vsub.s32 0, %v1090
        %v1092 = vrot.slane %v1068, %v1091
        %v1094 = vadd.f32 %v1087, %v1092
        %v1095 = vpack.c.bf16 %v1094, %v1094
        %v1096 = vld [vmem:[#allocation10] sm:$0xf]
        %v1097 = vld [vmem:[#allocation10 + $0x4] sm:$0xf]
        %v1098 = vld [vmem:[#allocation10 + $0x8] sm:$0xf]
        %v1099 = vld [vmem:[#allocation10 + $0xc] sm:$0xf]
        %v1100 = vld [vmem:[#allocation10 + $0x10] sm:$0xf]
        %v1101 = vld [vmem:[#allocation10 + $0x14] sm:$0xf]
        %v1102 = vld [vmem:[#allocation10 + $0x18] sm:$0xf]
        %v1103 = vld [vmem:[#allocation10 + $0x1c] sm:$0xf]
        %v1104 = vld [vmem:[#allocation10 + $0x20] sm:$0xf]
        %v1105 = vld [vmem:[#allocation10 + $0x24] sm:$0xf]
        %v1106 = vld [vmem:[#allocation10 + $0x28] sm:$0xf]
        %v1107 = vld [vmem:[#allocation10 + $0x2c] sm:$0xf]
        %v1108 = vld [vmem:[#allocation10 + $0x30] sm:$0xf]
        %v1109 = vld [vmem:[#allocation10 + $0x34] sm:$0xf]
        %v1110 = vld [vmem:[#allocation10 + $0x38] sm:$0xf]
        %v1111 = vld [vmem:[#allocation10 + $0x3c] sm:$0xf]
        %v1112 = vld [vmem:[%s9] sm:$0x1]
        %v1114 = vlaneseq
        %v1115 = vshrl.u32 %v1114, 7
        %v1116 = vsub.s32 0, %v1115
        %v1117 = vrot.slane %v1112, %v1116
        %v1135 = vunpack.c.l.b16 %v1096
        %v1136 = vunpack.c.l.b16 %v1097
        %v1137 = vunpack.c.l.b16 %v1098
        %v1138 = vunpack.c.l.b16 %v1099
        %v1139 = vunpack.c.l.b16 %v1100
        %v1140 = vunpack.c.l.b16 %v1101
        %v1141 = vunpack.c.l.b16 %v1102
        %v1142 = vunpack.c.l.b16 %v1103
        %v1143 = vunpack.c.l.b16 %v1104
        %v1144 = vunpack.c.l.b16 %v1105
        %v1145 = vunpack.c.l.b16 %v1106
        %v1146 = vunpack.c.l.b16 %v1107
        %v1147 = vunpack.c.l.b16 %v1108
        %v1148 = vunpack.c.l.b16 %v1109
        %v1149 = vunpack.c.l.b16 %v1110
        %v1150 = vunpack.c.l.b16 %v1111
        %v1151 = vpack.c.b16 %v1136, %v1135
        %v1152 = vpack.c.b16 %v1138, %v1137
        %v1153 = vpack.c.b16 %v1140, %v1139
        %v1154 = vpack.c.b16 %v1142, %v1141
        %v1155 = vpack.c.b16 %v1144, %v1143
        %v1156 = vpack.c.b16 %v1146, %v1145
        %v1157 = vpack.c.b16 %v1148, %v1147
        %v1158 = vpack.c.b16 %v1150, %v1149
        %1167 = vmatprep.subr.bf16.mxu0 0
        %1168 = vmatpush1.bf16.msra.mxu0 %v1158
        %1169 = vmatprep.subr.bf16.mxu0 0
        %1170 = vmatpush1.bf16.msra.mxu0 %v1157
        %1171 = vmatprep.subr.bf16.mxu0 0
        %1172 = vmatpush1.bf16.msra.mxu0 %v1156
        %1173 = vmatprep.subr.bf16.mxu0 0
        %1174 = vmatpush1.bf16.msra.mxu0 %v1155
        %1175 = vmatprep.subr.bf16.mxu0 0
        %1176 = vmatpush1.bf16.msra.mxu0 %v1154
        %1177 = vmatprep.subr.bf16.mxu0 0
        %1178 = vmatpush1.bf16.msra.mxu0 %v1153
        %1179 = vmatprep.subr.bf16.mxu0 0
        %1180 = vmatpush1.bf16.msra.mxu0 %v1152
        %1181 = vmatprep.subr.bf16.mxu0 0
        %1182 = vmatpush1.bf16.msra.mxu0 %v1151
        %1183 = vmatprep.subr.bf16.mxu0 0
        %1184 = vmatpush2.bf16.msra.mxu0 0
        %1185 = vmatprep.subr.bf16.mxu0 0
        %1186 = vmatpush2.bf16.msra.mxu0 0
        %1187 = vmatprep.subr.bf16.mxu0 0
        %1188 = vmatpush2.bf16.msra.mxu0 0
        %1189 = vmatprep.subr.bf16.mxu0 0
        %1190 = vmatpush2.bf16.msra.mxu0 0
        %1191 = vmatprep.subr.bf16.mxu0 0
        %1192 = vmatpush2.bf16.msra.mxu0 0
        %1193 = vmatprep.subr.bf16.mxu0 0
        %1194 = vmatpush2.bf16.msra.mxu0 0
        %1195 = vmatprep.subr.bf16.mxu0 0
        %1196 = vmatpush2.bf16.msra.mxu0 0
        %1197 = vmatprep.subr.bf16.mxu0 0
        %1198 = vmatpush2.bf16.msra.mxu0 0
        %1199 = vmatprep.mubr.bf16.mxu0 0
        %1200 = vmatmul.mubr.bf16.gmra.mxu0 %v1095
        %v1201 = vpop.f32.mrf.mxu0
        %v1202 = vadd.f32 %v1117, %v1201
        %v1203 = vpop.f32.mrf.mxu0
        %v1204 = vpop.f32.mrf.mxu0
        %v1205 = vpop.f32.mrf.mxu0
        %1206 = vdwg.mxu0
        %v1207 = vmul.f32 %v1202, %v1202
        %v1208 = vmul.f32 %v1202, %v1207
        %v1209 = vmul.f32 %v1208, 0.044715
        %v1210 = vadd.f32 %v1202, %v1209
        %v1211 = vmul.f32 %v1210, 0.7978846
        %v1212 = vtanh.pop %v1211
        %v1213 = vadd.f32 %v1212, 1.0
        %v1214 = vmul.f32 %v1213, 0.5
        %v1215 = vmul.f32 %v1202, %v1214
        %v1216 = vpack.c.bf16 %v1215, %v1215
        %v1217 = vld [vmem:[#allocation11] sm:$0xf]
        %v1218 = vld [vmem:[#allocation11 + $0x4] sm:$0xf]
        %v1219 = vld [vmem:[#allocation11 + $0x8] sm:$0xf]
        %v1220 = vld [vmem:[#allocation11 + $0xc] sm:$0xf]
        %v1221 = vld [vmem:[#allocation11 + $0x10] sm:$0xf]
        %v1222 = vld [vmem:[#allocation11 + $0x14] sm:$0xf]
        %v1223 = vld [vmem:[#allocation11 + $0x18] sm:$0xf]
        %v1224 = vld [vmem:[#allocation11 + $0x1c] sm:$0xf]
        %v1225 = vld [vmem:[#allocation11 + $0x20] sm:$0xf]
        %v1226 = vld [vmem:[#allocation11 + $0x24] sm:$0xf]
        %v1227 = vld [vmem:[#allocation11 + $0x28] sm:$0xf]
        %v1228 = vld [vmem:[#allocation11 + $0x2c] sm:$0xf]
        %v1229 = vld [vmem:[#allocation11 + $0x30] sm:$0xf]
        %v1230 = vld [vmem:[#allocation11 + $0x34] sm:$0xf]
        %v1231 = vld [vmem:[#allocation11 + $0x38] sm:$0xf]
        %v1232 = vld [vmem:[#allocation11 + $0x3c] sm:$0xf]
        %v1233 = vld [vmem:[%s11] sm:$0x1]
        %v1235 = vlaneseq
        %v1236 = vshrl.u32 %v1235, 7
        %v1237 = vsub.s32 0, %v1236
        %v1238 = vrot.slane %v1233, %v1237
        %v1256 = vunpack.c.l.b16 %v1217
        %v1257 = vunpack.c.l.b16 %v1218
        %v1258 = vunpack.c.l.b16 %v1219
        %v1259 = vunpack.c.l.b16 %v1220
        %v1260 = vunpack.c.l.b16 %v1221
        %v1261 = vunpack.c.l.b16 %v1222
        %v1262 = vunpack.c.l.b16 %v1223
        %v1263 = vunpack.c.l.b16 %v1224
        %v1264 = vunpack.c.l.b16 %v1225
        %v1265 = vunpack.c.l.b16 %v1226
        %v1266 = vunpack.c.l.b16 %v1227
        %v1267 = vunpack.c.l.b16 %v1228
        %v1268 = vunpack.c.l.b16 %v1229
        %v1269 = vunpack.c.l.b16 %v1230
        %v1270 = vunpack.c.l.b16 %v1231
        %v1271 = vunpack.c.l.b16 %v1232
        %v1272 = vpack.c.b16 %v1257, %v1256
        %v1273 = vpack.c.b16 %v1259, %v1258
        %v1274 = vpack.c.b16 %v1261, %v1260
        %v1275 = vpack.c.b16 %v1263, %v1262
        %v1276 = vpack.c.b16 %v1265, %v1264
        %v1277 = vpack.c.b16 %v1267, %v1266
        %v1278 = vpack.c.b16 %v1269, %v1268
        %v1279 = vpack.c.b16 %v1271, %v1270
        %1288 = vmatprep.subr.bf16.mxu0 0
        %1289 = vmatpush1.bf16.msra.mxu0 %v1279
        %1290 = vmatprep.subr.bf16.mxu0 0
        %1291 = vmatpush1.bf16.msra.mxu0 %v1278
        %1292 = vmatprep.subr.bf16.mxu0 0
        %1293 = vmatpush1.bf16.msra.mxu0 %v1277
        %1294 = vmatprep.subr.bf16.mxu0 0
        %1295 = vmatpush1.bf16.msra.mxu0 %v1276
        %1296 = vmatprep.subr.bf16.mxu0 0
        %1297 = vmatpush1.bf16.msra.mxu0 %v1275
        %1298 = vmatprep.subr.bf16.mxu0 0
        %1299 = vmatpush1.bf16.msra.mxu0 %v1274
        %1300 = vmatprep.subr.bf16.mxu0 0
        %1301 = vmatpush1.bf16.msra.mxu0 %v1273
        %1302 = vmatprep.subr.bf16.mxu0 0
        %1303 = vmatpush1.bf16.msra.mxu0 %v1272
        %1304 = vmatprep.subr.bf16.mxu0 0
        %1305 = vmatpush2.bf16.msra.mxu0 0
        %1306 = vmatprep.subr.bf16.mxu0 0
        %1307 = vmatpush2.bf16.msra.mxu0 0
        %1308 = vmatprep.subr.bf16.mxu0 0
        %1309 = vmatpush2.bf16.msra.mxu0 0
        %1310 = vmatprep.subr.bf16.mxu0 0
        %1311 = vmatpush2.bf16.msra.mxu0 0
        %1312 = vmatprep.subr.bf16.mxu0 0
        %1313 = vmatpush2.bf16.msra.mxu0 0
        %1314 = vmatprep.subr.bf16.mxu0 0
        %1315 = vmatpush2.bf16.msra.mxu0 0
        %1316 = vmatprep.subr.bf16.mxu0 0
        %1317 = vmatpush2.bf16.msra.mxu0 0
        %1318 = vmatprep.subr.bf16.mxu0 0
        %1319 = vmatpush2.bf16.msra.mxu0 0
        %1320 = vmatprep.mubr.bf16.mxu0 0
        %1321 = vmatmul.mubr.bf16.gmra.mxu0 %v1216
        %v1322 = vpop.f32.mrf.mxu0
        %v1323 = vadd.f32 %v1238, %v1322
        %v1324 = vpop.f32.mrf.mxu0
        %v1325 = vpop.f32.mrf.mxu0
        %v1326 = vpop.f32.mrf.mxu0
        %1327 = vdwg.mxu0
        %v1328 = vadd.f32 %v1094, %v1323
        %v1329 = vld [vmem:[%s12] sm:$0x1]
        %v1330 = vld [vmem:[%s13] sm:$0x1]
        %1331 = vadd.xlane.f32.xlu0 %v1328
        %v1332 = vpop.xlane.xlu0 %1331
        %v1333 = vmul.f32 %v1332, 0.03125
        %v1334 = vsub.f32 %v1328, %v1333
        %v1335 = vmul.f32 %v1334, %v584
        %v1336 = vmul.f32 %v1335, %v1335
        %1337 = vadd.xlane.f32.xlu0 %v1336
        %v1338 = vpop.xlane.xlu0 %1337
        %v1339 = vmul.f32 %v1338, 0.03125
        %v1340 = vadd.f32 %v1339, 1e-05
        %v1341 = vrsqrt.pop %v1340
        %v1342 = vmul.f32 %v1335, %v1341
        %v1344 = vlaneseq
        %v1345 = vshrl.u32 %v1344, 7
        %v1346 = vsub.s32 0, %v1345
        %v1347 = vrot.slane %v1329, %v1346
        %v1349 = vmul.f32 %v1342, %v1347
        %v1351 = vlaneseq
        %v1352 = vshrl.u32 %v1351, 7
        %v1353 = vsub.s32 0, %v1352
        %v1354 = vrot.slane %v1330, %v1353
        %v1356 = vadd.f32 %v1349, %v1354
        %v1358 = vsel %vm893, %v577, 0
        %1360 = vmatprep.subr.mxu0 0.0
        %1361 = vmatpush1.msra.mxu0 0.0
        %1362 = vmatprep.subr.mxu0 0.0
        %1363 = vmatpush1.msra.mxu0 0.0
        %1364 = vmatprep.subr.mxu0 0.0
        %1365 = vmatpush1.msra.mxu0 0.0
        %1366 = vmatprep.subr.mxu0 0.0
        %1367 = vmatpush1.msra.mxu0 0.0
        %1368 = vmatprep.subr.mxu0 0.0
        %1369 = vmatpush1.msra.mxu0 0.0
        %1370 = vmatprep.subr.mxu0 0.0
        %1371 = vmatpush1.msra.mxu0 0.0
        %1372 = vmatprep.subr.mxu0 0.0
        %1373 = vmatpush1.msra.mxu0 0.0
        %1374 = vmatprep.subr.mxu0 0.0
        %1375 = vmatpush1.msra.mxu0 0.0
        %1376 = vmatprep.subr.mxu0 0.0
        %1377 = vmatpush1.msra.mxu0 0.0
        %1378 = vmatprep.subr.mxu0 0.0
        %1379 = vmatpush1.msra.mxu0 0.0
        %1380 = vmatprep.subr.mxu0 0.0
        %1381 = vmatpush1.msra.mxu0 0.0
        %1382 = vmatprep.subr.mxu0 0.0
        %1383 = vmatpush1.msra.mxu0 0.0
        %1384 = vmatprep.subr.mxu0 0.0
        %1385 = vmatpush1.msra.mxu0 0.0
        %1386 = vmatprep.subr.mxu0 0.0
        %1387 = vmatpush1.msra.mxu0 0.0
        %1388 = vmatprep.subr.mxu0 0.0
        %1389 = vmatpush1.msra.mxu0 0.0
        %1390 = vmatprep.subr.mxu0 0.0
        %1391 = vmatpush1.msra.mxu0 %v1356
        %1392 = vmatprep.subr.mxu0 0.0
        %1393 = vmatpush2.msra.mxu0 0.0
        %1394 = vmatprep.subr.mxu0 0.0
        %1395 = vmatpush2.msra.mxu0 0.0
        %1396 = vmatprep.subr.mxu0 0.0
        %1397 = vmatpush2.msra.mxu0 0.0
        %1398 = vmatprep.subr.mxu0 0.0
        %1399 = vmatpush2.msra.mxu0 0.0
        %1400 = vmatprep.subr.mxu0 0.0
        %1401 = vmatpush2.msra.mxu0 0.0
        %1402 = vmatprep.subr.mxu0 0.0
        %1403 = vmatpush2.msra.mxu0 0.0
        %1404 = vmatprep.subr.mxu0 0.0
        %1405 = vmatpush2.msra.mxu0 0.0
        %1406 = vmatprep.subr.mxu0 0.0
        %1407 = vmatpush2.msra.mxu0 0.0
        %1408 = vmatprep.subr.mxu0 0.0
        %1409 = vmatpush2.msra.mxu0 0.0
        %1410 = vmatprep.subr.mxu0 0.0
        %1411 = vmatpush2.msra.mxu0 0.0
        %1412 = vmatprep.subr.mxu0 0.0
        %1413 = vmatpush2.msra.mxu0 0.0
        %1414 = vmatprep.subr.mxu0 0.0
        %1415 = vmatpush2.msra.mxu0 0.0
        %1416 = vmatprep.subr.mxu0 0.0
        %1417 = vmatpush2.msra.mxu0 0.0
        %1418 = vmatprep.subr.mxu0 0.0
        %1419 = vmatpush2.msra.mxu0 0.0
        %1420 = vmatprep.subr.mxu0 0.0
        %1421 = vmatpush2.msra.mxu0 0.0
        %1422 = vmatprep.subr.mxu0 0.0
        %1423 = vmatpush2.msra.mxu0 0.0
        %1424 = vmatprep.mubr.f32.mxu0 0.0
        %1425 = vmatmul.mubr.f32.gmra.mxu0 %v1358
        %v1426 = vpop.f32.mrf.mxu0
        %v1427 = vadd.f32 0.0, %v1426
        %v1428 = vpop.f32.mrf.mxu0
        %1429 = vdwg.mxu0
        %vm1430 = vcmask 57344
        %v1431 = vsel %vm1430, %v577, 0.0
        %1432 = vadd.xlane.f32.xlu0 %v1431
        %v1433 = vpop.xlane.xlu0 %1432
        %v1434 = vmax.f32 %v1433, 1.0
        %v1435 = vrcp.pop %v1434
        %v1436 = vmul.f32 %v1427, %v1435
        %v1437 = vmul.f32 %v1436, %v1436
        %vm1438 = vcmask 1040384
        %v1439 = vsel %vm1438, %v1437, 0.0
        %1440 = vadd.xlane.f32.xlu0 %v1439
        %v1441 = vpop.xlane.xlu0 %1440
        %v1442 = vmax.f32 %v1441, 1e-24
        %v1443 = vrsqrt.pop %v1442
        %v1444 = vmul.f32 %v1436, %v1443
        %1445 = vst [vmem:[%s573] sm:$0x1] %v1444
        %s1446 = sand.u32 %s348, 1
        %s1447 = scalar_lea.sflag [#allocation4], %s1446
        %s1448 = sand.u32 %s348, 1
        %s1449 = scalar_lea.vmem [#allocation13], %s1448
        // Predicated region
        $region101: #{tpu_custom_call.1} parent=75 // pred_check
          %p1450 = pneg %p358
        $region102: #{tpu_custom_call.1} parent=75 // pred_check_branch
          %1452 = sbr.rel (%p1450) target = $region104
        $region103: #{tpu_custom_call.1} parent=75 // pred_region
          %s1454 = ssub.s32 16, 16
          %1455 = vsyncadd %s1447, %s1454
          %s1456 = smul.addr %s36, 16
          %s1457 = scalar_lea.hbm %s14, %s1456
          %s1459 = sshll.u32 %s1449, 4
          %s1460 = int_to_ptr.vmem [resolvable:$true] %s1459
          %1462 = dma.vmem_to_hbm [thread:$0]  %s1460, 16, %s1457, %s1447
        $region104: #{tpu_custom_call.1} parent=75 // pred_fallthru
          _
      $region76: #{tpu_custom_call.1} parent=5 // pred_fallthru
        _
      %p1463 = scmp.le.s32.totalorder 2, %s31
      // Predicated region
      $region105: #{tpu_custom_call.1} parent=5 // pred_check
        %p1464 = pneg %p1463
      $region106: #{tpu_custom_call.1} parent=5 // pred_check_branch
        %1466 = sbr.rel (%p1464) target = $region108
      $region107: #{tpu_custom_call.1} parent=5 // pred_region
        %s1467 = ssub.s32 %s31, 2
        // Predicated region
        $region109: #{tpu_custom_call.1} parent=107 // pred_check
          %p1468 = pneg %p364
        $region110: #{tpu_custom_call.1} parent=107 // pred_check_branch
          %1470 = sbr.rel (%p1468) target = $region112
        $region111: #{tpu_custom_call.1} parent=107 // pred_region
          %s1471 = sand.u32 %s349, 1
          %s1472 = scalar_lea.sflag [#allocation4], %s1471
          %s1473 = sand.u32 %s349, 1
          %s1474 = scalar_lea.vmem [#allocation13], %s1473
          %1475 = dma.done %s1472, 16
        $region112: #{tpu_custom_call.1} parent=107 // pred_fallthru
          _
      $region108: #{tpu_custom_call.1} parent=5 // pred_fallthru
        _
    $region6: #{tpu_custom_call.1} parent=1 // loop_footer
      %s35 = sadd.s32 1, %s31
    $region7: #{tpu_custom_call.1} parent=1 // loop_footer_branch
      %30 = sbr.rel target = $region3
    $region8: #{tpu_custom_call.1} parent=1 // loop_exit
      _
    %1476 = vsyncpa [#allocation3], 1
    %s1477 = scalar_lea.sflag [#allocation3], 1
    %1478 = vsyncpa %s1477, 1
    %1479 = vsyncpa [#allocation6], 1
    %s1480 = scalar_lea.sflag [#allocation6], 1
    %1481 = vsyncpa %s1480, 1
    %1482 = vsyncpa [#allocation9], 1
    %1483 = vsyncpa [#allocation12], 1
    %1484 = vsyncpa [#allocation4], 1
    %s1485 = scalar_lea.sflag [#allocation4], 1
    %1486 = vsyncpa %s1485, 1

// kernel: tpu_custom_call.1
$region0: #{tpu_custom_call.1}
  #allocation0 [shape = 'u32[]', space=smem, size = 0x4, offset = 0x4, fixed_abs, tag = 'smem constant byte address 0x4 - core index']
  #allocation1 [shape = 'u32[144,128]{1,0:T(1,128)}', space=vmem, size = 0x12000, scoped, tag = 'internal scratch']
  %s0 = inlined_call_operand.hbm [shape: f32[2,1,8], index: 0, kind: input, shape index: {}]
  %s1 = inlined_call_operand.hbm [shape: f32[2,8,128], index: 1, kind: input, shape index: {}]
  %s2 = inlined_call_operand.hbm [shape: bf16[128,384], index: 2, kind: input, shape index: {}]
  %s3 = inlined_call_operand.vmem [shape: f32[1,384], index: 3, kind: input, shape index: {}]
  %s4 = inlined_call_operand.hbm [shape: bf16[128,128], index: 4, kind: input, shape index: {}]
  %s5 = inlined_call_operand.vmem [shape: f32[1,128], index: 5, kind: input, shape index: {}]
  %s6 = inlined_call_operand.vmem [shape: f32[1,128], index: 6, kind: input, shape index: {}]
  %s7 = inlined_call_operand.vmem [shape: f32[1,128], index: 7, kind: input, shape index: {}]
  %s8 = inlined_call_operand.hbm [shape: bf16[128,128], index: 8, kind: input, shape index: {}]
  %s9 = inlined_call_operand.vmem [shape: f32[1,128], index: 9, kind: input, shape index: {}]
  %s10 = inlined_call_operand.hbm [shape: bf16[128,128], index: 10, kind: input, shape index: {}]
  %s11 = inlined_call_operand.vmem [shape: f32[1,128], index: 11, kind: input, shape index: {}]
  %s12 = inlined_call_operand.vmem [shape: f32[1,128], index: 12, kind: input, shape index: {}]
  %s13 = inlined_call_operand.vmem [shape: f32[1,128], index: 13, kind: input, shape index: {}]
  %s14 = inlined_call_operand.hbm [shape: f32[2,1,128], index: 14, kind: output, shape index: {}]
  %s15 = sld [smem:[#allocation0]]
  $region113: #{tpu_custom_call.1} parent=0
    _
  %s17 = ssub.s32 1, %s15
  %s18 = scalar_select 0, %s17, %s15
  $region1: #{tpu_custom_call.1} parent=0
    #allocation2 [shape = 'u8[1024]{0}', space=vmem, size = 0x400, scoped, tag = 'input window, operand 0']
    #allocation3 [shape = 's32[2]{0}', space=sflag, size = 0x8, scoped, tag = 'scoped memory for tpu_custom_call.1']
    #allocation4 [shape = 's32[2]{0}', space=sflag, size = 0x8, scoped, tag = 'scoped memory for tpu_custom_call.1']
    #allocation5 [shape = 'u8[8192]{0}', space=vmem, size = 0x2000, scoped, tag = 'input window, operand 1']
    #allocation6 [shape = 's32[2]{0}', space=sflag, size = 0x8, scoped, tag = 'scoped memory for tpu_custom_call.1']
    #allocation7 [shape = 'u8[98304]{0}', space=vmem, size = 0x18000, scoped, tag = 'input window, operand 2, single buffered']
    #allocation8 [shape = 'u8[32768]{0}', space=vmem, size = 0x8000, scoped, tag = 'input window, operand 4, single buffered']
    #allocation9 [shape = 's32[1]{0}', space=sflag, size = 0x4, scoped, tag = 'scoped memory for tpu_custom_call.1']
    #allocation10 [shape = 'u8[32768]{0}', space=vmem, size = 0x8000, scoped, tag = 'input window, operand 8, single buffered']
    #allocation11 [shape = 'u8[32768]{0}', space=vmem, size = 0x8000, scoped, tag = 'input window, operand 10, single buffered']
    #allocation12 [shape = 's32[1]{0}', space=sflag, size = 0x4, scoped, tag = 'scoped memory for tpu_custom_call.1']
    #allocation13 [shape = 'u8[1024]{0}', space=vmem, size = 0x400, scoped, tag = 'output window, operand 0']
    %19 = vsyncpa [#allocation3], 0
    %s20 = scalar_lea.sflag [#allocation3], 1
    %21 = vsyncpa %s20, 0
    %22 = vsyncpa [#allocation6], 0
    %s23 = scalar_lea.sflag [#allocation6], 1
    %24 = vsyncpa %s23, 0
    %25 = vsyncpa [#allocation9], 0
    %26 = vsyncpa [#allocation12], 0
    %27 = vsyncpa [#allocation4], 0
    %s28 = scalar_lea.sflag [#allocation4], 1
    %29 = vsyncpa %s28, 0
    loop: start=0, step=1, limit=4
    $region2: #{tpu_custom_call.1} parent=1 // loop_pre_header
      _
    $region3: #{tpu_custom_call.1} parent=1 // loop_header
      %s31 = sphi 0, %s35
      %p32 = scmp.ge.s32.totalorder %s31, 4
      %s41 = sphi 0, %s43
      %s44 = sphi 0, %s41
      %s45 = sphi 0, %s44
      %s61 = sphi 0, %s45
      %s67 = sphi 0, %s69
      %s70 = sphi 0, %s67
      %s71 = sphi 0, %s70
      %s87 = sphi 0, %s71
      %s91 = sphi 0, %s91
      %s93 = sphi 0, %s91
      %s94 = sphi 0, %s93
      %s108 = sphi 0, %s94
      %s112 = sphi 0, %s112
      %s114 = sphi 0, %s112
      %s115 = sphi 0, %s114
      %s129 = sphi 0, %s115
      %s133 = sphi 0, %s133
      %s135 = sphi 0, %s133
      %s136 = sphi 0, %s135
      %s150 = sphi 0, %s136
      %s154 = sphi 0, %s154
      %s156 = sphi 0, %s154
      %s157 = sphi 0, %s156
      %s171 = sphi 0, %s157
      %s175 = sphi 0, %s175
      %s177 = sphi 0, %s175
      %s178 = sphi 0, %s177
      %s192 = sphi 0, %s178
      %s196 = sphi 0, %s196
      %s198 = sphi 0, %s196
      %s199 = sphi 0, %s198
      %s213 = sphi 0, %s199
      %s217 = sphi 0, %s217
      %s219 = sphi 0, %s217
      %s220 = sphi 0, %s219
      %s234 = sphi 0, %s220
      %s238 = sphi 0, %s238
      %s240 = sphi 0, %s238
      %s241 = sphi 0, %s240
      %s255 = sphi 0, %s241
      %s259 = sphi 0, %s259
      %s261 = sphi 0, %s259
      %s262 = sphi 0, %s261
      %s276 = sphi 0, %s262
      %s280 = sphi 0, %s280
      %s282 = sphi 0, %s280
      %s283 = sphi 0, %s282
      %s297 = sphi 0, %s283
      %s301 = sphi 0, %s301
      %s303 = sphi 0, %s301
      %s304 = sphi 0, %s303
      %s318 = sphi 0, %s304
      %s322 = sphi 0, %s322
      %s324 = sphi 0, %s322
      %s325 = sphi 0, %s324
      %s339 = sphi 0, %s325
      %s345 = sphi 0, %s347
      %s348 = sphi 0, %s345
      %s349 = sphi 0, %s348
      %s365 = sphi 0, %s349
    $region4: #{tpu_custom_call.1} parent=1 // loop_header_branch
      %34 = sbr.rel (%p32) target = $region8
    $region5: #{tpu_custom_call.1} parent=1 // loop_body
      %s36 = ssub.s32 %s31, 1
      %s37 = ssub.s32 %s31, 2
      %s38 = sadd.s32 %s31, 1
      %s39 = ssub.s32 %s31, %s38
      %p40 = scmp.eq.s32.totalorder %s39, 0
      %s42 = sadd.s32 %s41, 1
      %s43 = scalar_select %p40, %s41, %s42
      %p46 = pneg %p40
      %p47 = scmp.eq.s32.totalorder %s31, 1
      %p48 = por %p46, %p47
      %p49 = scmp.ne.s32.totalorder %s41, %s44
      %p50 = scmp.eq.s32.totalorder %s31, 0
      %p51 = por %p49, %p50
      %p52 = scmp.ne.s32.totalorder %s41, %s44
      %p53 = scmp.eq.s32.totalorder %s36, 1
      %p54 = por %p52, %p53
      %p55 = scmp.ne.s32.totalorder %s44, %s45
      %p56 = scmp.eq.s32.totalorder %s36, 0
      %p57 = por %p55, %p56
      %p58 = scmp.ne.s32.totalorder %s44, %s45
      %p59 = scmp.eq.s32.totalorder %s37, 1
      %p60 = por %p58, %p59
      %p62 = scmp.ne.s32.totalorder %s45, %s61
      %p63 = scmp.eq.s32.totalorder %s37, 0
      %p64 = por %p62, %p63
      %s65 = ssub.s32 %s31, %s38
      %p66 = scmp.eq.s32.totalorder %s65, 0
      %s68 = sadd.s32 %s67, 1
      %s69 = scalar_select %p66, %s67, %s68
      %p72 = pneg %p66
      %p73 = scmp.eq.s32.totalorder %s31, 1
      %p74 = por %p72, %p73
      %p75 = scmp.ne.s32.totalorder %s67, %s70
      %p76 = scmp.eq.s32.totalorder %s31, 0
      %p77 = por %p75, %p76
      %p78 = scmp.ne.s32.totalorder %s67, %s70
      %p79 = scmp.eq.s32.totalorder %s36, 1
      %p80 = por %p78, %p79
      %p81 = scmp.ne.s32.totalorder %s70, %s71
      %p82 = scmp.eq.s32.totalorder %s36, 0
      %p83 = por %p81, %p82
      %p84 = scmp.ne.s32.totalorder %s70, %s71
      %p85 = scmp.eq.s32.totalorder %s37, 1
      %p86 = por %p84, %p85
      %p88 = scmp.ne.s32.totalorder %s71, %s87
      %p89 = scmp.eq.s32.totalorder %s37, 0
      %p90 = por %p88, %p89
      %s92 = sadd.s32 %s91, 1
      %p95 = scmp.eq.s32.totalorder %s31, 1
      %p96 = scmp.ne.s32.totalorder %s91, %s93
      %p97 = scmp.eq.s32.totalorder %s31, 0
      %p98 = por %p96, %p97
      %p99 = scmp.ne.s32.totalorder %s91, %s93
      %p100 = scmp.eq.s32.totalorder %s36, 1
      %p101 = por %p99, %p100
      %p102 = scmp.ne.s32.totalorder %s93, %s94
      %p103 = scmp.eq.s32.totalorder %s36, 0
      %p104 = por %p102, %p103
      %p105 = scmp.ne.s32.totalorder %s93, %s94
      %p106 = scmp.eq.s32.totalorder %s37, 1
      %p107 = por %p105, %p106
      %p109 = scmp.ne.s32.totalorder %s94, %s108
      %p110 = scmp.eq.s32.totalorder %s37, 0
      %p111 = por %p109, %p110
      %s113 = sadd.s32 %s112, 1
      %p116 = scmp.eq.s32.totalorder %s31, 1
      %p117 = scmp.ne.s32.totalorder %s112, %s114
      %p118 = scmp.eq.s32.totalorder %s31, 0
      %p119 = por %p117, %p118
      %p120 = scmp.ne.s32.totalorder %s112, %s114
      %p121 = scmp.eq.s32.totalorder %s36, 1
      %p122 = por %p120, %p121
      %p123 = scmp.ne.s32.totalorder %s114, %s115
      %p124 = scmp.eq.s32.totalorder %s36, 0
      %p125 = por %p123, %p124
      %p126 = scmp.ne.s32.totalorder %s114, %s115
      %p127 = scmp.eq.s32.totalorder %s37, 1
      %p128 = por %p126, %p127
      %p130 = scmp.ne.s32.totalorder %s115, %s129
      %p131 = scmp.eq.s32.totalorder %s37, 0
      %p132 = por %p130, %p131
      %s134 = sadd.s32 %s133, 1
      %p137 = scmp.eq.s32.totalorder %s31, 1
      %p138 = scmp.ne.s32.totalorder %s133, %s135
      %p139 = scmp.eq.s32.totalorder %s31, 0
      %p140 = por %p138, %p139
      %p141 = scmp.ne.s32.totalorder %s133, %s135
      %p142 = scmp.eq.s32.totalorder %s36, 1
      %p143 = por %p141, %p142
      %p144 = scmp.ne.s32.totalorder %s135, %s136
      %p145 = scmp.eq.s32.totalorder %s36, 0
      %p146 = por %p144, %p145
      %p147 = scmp.ne.s32.totalorder %s135, %s136
      %p148 = scmp.eq.s32.totalorder %s37, 1
      %p149 = por %p147, %p148
      %p151 = scmp.ne.s32.totalorder %s136, %s150
      %p152 = scmp.eq.s32.totalorder %s37, 0
      %p153 = por %p151, %p152
      %s155 = sadd.s32 %s154, 1
      %p158 = scmp.eq.s32.totalorder %s31, 1
      %p159 = scmp.ne.s32.totalorder %s154, %s156
      %p160 = scmp.eq.s32.totalorder %s31, 0
      %p161 = por %p159, %p160
      %p162 = scmp.ne.s32.totalorder %s154, %s156
      %p163 = scmp.eq.s32.totalorder %s36, 1
      %p164 = por %p162, %p163
      %p165 = scmp.ne.s32.totalorder %s156, %s157
      %p166 = scmp.eq.s32.totalorder %s36, 0
      %p167 = por %p165, %p166
      %p168 = scmp.ne.s32.totalorder %s156, %s157
      %p169 = scmp.eq.s32.totalorder %s37, 1
      %p170 = por %p168, %p169
      %p172 = scmp.ne.s32.totalorder %s157, %s171
      %p173 = scmp.eq.s32.totalorder %s37, 0
      %p174 = por %p172, %p173
      %s176 = sadd.s32 %s175, 1
      %p179 = scmp.eq.s32.totalorder %s31, 1
      %p180 = scmp.ne.s32.totalorder %s175, %s177
      %p181 = scmp.eq.s32.totalorder %s31, 0
      %p182 = por %p180, %p181
      %p183 = scmp.ne.s32.totalorder %s175, %s177
      %p184 = scmp.eq.s32.totalorder %s36, 1
      %p185 = por %p183, %p184
      %p186 = scmp.ne.s32.totalorder %s177, %s178
      %p187 = scmp.eq.s32.totalorder %s36, 0
      %p188 = por %p186, %p187
      %p189 = scmp.ne.s32.totalorder %s177, %s178
      %p190 = scmp.eq.s32.totalorder %s37, 1
      %p191 = por %p189, %p190
      %p193 = scmp.ne.s32.totalorder %s178, %s192
      %p194 = scmp.eq.s32.totalorder %s37, 0
      %p195 = por %p193, %p194
      %s197 = sadd.s32 %s196, 1
      %p200 = scmp.eq.s32.totalorder %s31, 1
      %p201 = scmp.ne.s32.totalorder %s196, %s198
      %p202 = scmp.eq.s32.totalorder %s31, 0
      %p203 = por %p201, %p202
      %p204 = scmp.ne.s32.totalorder %s196, %s198
      %p205 = scmp.eq.s32.totalorder %s36, 1
      %p206 = por %p204, %p205
      %p207 = scmp.ne.s32.totalorder %s198, %s199
      %p208 = scmp.eq.s32.totalorder %s36, 0
      %p209 = por %p207, %p208
      %p210 = scmp.ne.s32.totalorder %s198, %s199
      %p211 = scmp.eq.s32.totalorder %s37, 1
      %p212 = por %p210, %p211
      %p214 = scmp.ne.s32.totalorder %s199, %s213
      %p215 = scmp.eq.s32.totalorder %s37, 0
      %p216 = por %p214, %p215
      %s218 = sadd.s32 %s217, 1
      %p221 = scmp.eq.s32.totalorder %s31, 1
      %p222 = scmp.ne.s32.totalorder %s217, %s219
      %p223 = scmp.eq.s32.totalorder %s31, 0
      %p224 = por %p222, %p223
      %p225 = scmp.ne.s32.totalorder %s217, %s219
      %p226 = scmp.eq.s32.totalorder %s36, 1
      %p227 = por %p225, %p226
      %p228 = scmp.ne.s32.totalorder %s219, %s220
      %p229 = scmp.eq.s32.totalorder %s36, 0
      %p230 = por %p228, %p229
      %p231 = scmp.ne.s32.totalorder %s219, %s220
      %p232 = scmp.eq.s32.totalorder %s37, 1
      %p233 = por %p231, %p232
      %p235 = scmp.ne.s32.totalorder %s220, %s234
      %p236 = scmp.eq.s32.totalorder %s37, 0
      %p237 = por %p235, %p236
      %s239 = sadd.s32 %s238, 1
      %p242 = scmp.eq.s32.totalorder %s31, 1
      %p243 = scmp.ne.s32.totalorder %s238, %s240
      %p244 = scmp.eq.s32.totalorder %s31, 0
      %p245 = por %p243, %p244
      %p246 = scmp.ne.s32.totalorder %s238, %s240
      %p247 = scmp.eq.s32.totalorder %s36, 1
      %p248 = por %p246, %p247
      %p249 = scmp.ne.s32.totalorder %s240, %s241
      %p250 = scmp.eq.s32.totalorder %s36, 0
      %p251 = por %p249, %p250
      %p252 = scmp.ne.s32.totalorder %s240, %s241
      %p253 = scmp.eq.s32.totalorder %s37, 1
      %p254 = por %p252, %p253
      %p256 = scmp.ne.s32.totalorder %s241, %s255
      %p257 = scmp.eq.s32.totalorder %s37, 0
      %p258 = por %p256, %p257
      %s260 = sadd.s32 %s259, 1
      %p263 = scmp.eq.s32.totalorder %s31, 1
      %p264 = scmp.ne.s32.totalorder %s259, %s261
      %p265 = scmp.eq.s32.totalorder %s31, 0
      %p266 = por %p264, %p265
      %p267 = scmp.ne.s32.totalorder %s259, %s261
      %p268 = scmp.eq.s32.totalorder %s36, 1
      %p269 = por %p267, %p268
      %p270 = scmp.ne.s32.totalorder %s261, %s262
      %p271 = scmp.eq.s32.totalorder %s36, 0
      %p272 = por %p270, %p271
      %p273 = scmp.ne.s32.totalorder %s261, %s262
      %p274 = scmp.eq.s32.totalorder %s37, 1
      %p275 = por %p273, %p274
      %p277 = scmp.ne.s32.totalorder %s262, %s276
      %p278 = scmp.eq.s32.totalorder %s37, 0
      %p279 = por %p277, %p278
      %s281 = sadd.s32 %s280, 1
      %p284 = scmp.eq.s32.totalorder %s31, 1
      %p285 = scmp.ne.s32.totalorder %s280, %s282
      %p286 = scmp.eq.s32.totalorder %s31, 0
      %p287 = por %p285, %p286
      %p288 = scmp.ne.s32.totalorder %s280, %s282
      %p289 = scmp.eq.s32.totalorder %s36, 1
      %p290 = por %p288, %p289
      %p291 = scmp.ne.s32.totalorder %s282, %s283
      %p292 = scmp.eq.s32.totalorder %s36, 0
      %p293 = por %p291, %p292
      %p294 = scmp.ne.s32.totalorder %s282, %s283
      %p295 = scmp.eq.s32.totalorder %s37, 1
      %p296 = por %p294, %p295
      %p298 = scmp.ne.s32.totalorder %s283, %s297
      %p299 = scmp.eq.s32.totalorder %s37, 0
      %p300 = por %p298, %p299
      %s302 = sadd.s32 %s301, 1
      %p305 = scmp.eq.s32.totalorder %s31, 1
      %p306 = scmp.ne.s32.totalorder %s301, %s303
      %p307 = scmp.eq.s32.totalorder %s31, 0
      %p308 = por %p306, %p307
      %p309 = scmp.ne.s32.totalorder %s301, %s303
      %p310 = scmp.eq.s32.totalorder %s36, 1
      %p311 = por %p309, %p310
      %p312 = scmp.ne.s32.totalorder %s303, %s304
      %p313 = scmp.eq.s32.totalorder %s36, 0
      %p314 = por %p312, %p313
      %p315 = scmp.ne.s32.totalorder %s303, %s304
      %p316 = scmp.eq.s32.totalorder %s37, 1
      %p317 = por %p315, %p316
      %p319 = scmp.ne.s32.totalorder %s304, %s318
      %p320 = scmp.eq.s32.totalorder %s37, 0
      %p321 = por %p319, %p320
      %s323 = sadd.s32 %s322, 1
      %p326 = scmp.eq.s32.totalorder %s31, 1
      %p327 = scmp.ne.s32.totalorder %s322, %s324
      %p328 = scmp.eq.s32.totalorder %s31, 0
      %p329 = por %p327, %p328
      %p330 = scmp.ne.s32.totalorder %s322, %s324
      %p331 = scmp.eq.s32.totalorder %s36, 1
      %p332 = por %p330, %p331
      %p333 = scmp.ne.s32.totalorder %s324, %s325
      %p334 = scmp.eq.s32.totalorder %s36, 0
      %p335 = por %p333, %p334
      %p336 = scmp.ne.s32.totalorder %s324, %s325
      %p337 = scmp.eq.s32.totalorder %s37, 1
      %p338 = por %p336, %p337
      %p340 = scmp.ne.s32.totalorder %s325, %s339
      %p341 = scmp.eq.s32.totalorder %s37, 0
      %p342 = por %p340, %p341
      %s343 = ssub.s32 %s31, %s38
      %p344 = scmp.eq.s32.totalorder %s343, 0
      %s346 = sadd.s32 %s345, 1
      %s347 = scalar_select %p344, %s345, %s346
      %p350 = pneg %p344
      %p351 = scmp.eq.s32.totalorder %s31, 1
      %p352 = por %p350, %p351
      %p353 = scmp.ne.s32.totalorder %s345, %s348
      %p354 = scmp.eq.s32.totalorder %s31, 0
      %p355 = por %p353, %p354
      %p356 = scmp.ne.s32.totalorder %s345, %s348
      %p357 = scmp.eq.s32.totalorder %s36, 1
      %p358 = por %p356, %p357
      %p359 = scmp.ne.s32.totalorder %s348, %s349
      %p360 = scmp.eq.s32.totalorder %s36, 0
      %p361 = por %p359, %p360
      %p362 = scmp.ne.s32.totalorder %s348, %s349
      %p363 = scmp.eq.s32.totalorder %s37, 1
      %p364 = por %p362, %p363
      %p366 = scmp.ne.s32.totalorder %s349, %s365
      %p367 = scmp.eq.s32.totalorder %s37, 0
      %p368 = por %p366, %p367
      %p369 = scmp.le.s32.totalorder 1, %s31
      %p370 = scmp.lt.s32.totalorder %s31, 3
      %p371 = pnand %p369, %p370
      %p372 = pneg %p371
      // Predicated region
      $region9: #{tpu_custom_call.1} parent=5 // pred_check
        _
      $region10: #{tpu_custom_call.1} parent=5 // pred_check_branch
        %374 = sbr.rel (%p371) target = $region12
      $region11: #{tpu_custom_call.1} parent=5 // pred_region
        %s375 = ssub.s32 %s31, 1
        // Predicated region
        $region13: #{tpu_custom_call.1} parent=11 // pred_check
          %p376 = pneg %p104
        $region14: #{tpu_custom_call.1} parent=11 // pred_check_branch
          %378 = sbr.rel (%p376) target = $region16
        $region15: #{tpu_custom_call.1} parent=11 // pred_region
          %s380 = ssub.s32 3072, 3072
          %381 = vsyncadd [#allocation6], %s380
          %s382 = sshll.u32 [#allocation7], 4
          %s383 = int_to_ptr.vmem [resolvable:$true] %s382
          %388 = dma.hbm_to_vmem [thread:$0]  %s2, 3072, %s383, [#allocation6], 192, 192, 12
        $region16: #{tpu_custom_call.1} parent=11 // pred_fallthru
          _
        // Predicated region
        $region17: #{tpu_custom_call.1} parent=11 // pred_check
          %p389 = pneg %p125
        $region18: #{tpu_custom_call.1} parent=11 // pred_check_branch
          %391 = sbr.rel (%p389) target = $region20
        $region19: #{tpu_custom_call.1} parent=11 // pred_region
          _
        $region20: #{tpu_custom_call.1} parent=11 // pred_fallthru
          _
        // Predicated region
        $region21: #{tpu_custom_call.1} parent=11 // pred_check
          %p392 = pneg %p146
        $region22: #{tpu_custom_call.1} parent=11 // pred_check_branch
          %394 = sbr.rel (%p392) target = $region24
        $region23: #{tpu_custom_call.1} parent=11 // pred_region
          %s396 = ssub.s32 1024, 1024
          %397 = vsyncadd [#allocation9], %s396
          %s398 = sshll.u32 [#allocation8], 4
          %s399 = int_to_ptr.vmem [resolvable:$true] %s398
          %404 = dma.hbm_to_vmem [thread:$0]  %s4, 1024, %s399, [#allocation9], 64, 64, 4
        $region24: #{tpu_custom_call.1} parent=11 // pred_fallthru
          _
        // Predicated region
        $region25: #{tpu_custom_call.1} parent=11 // pred_check
          %p405 = pneg %p167
        $region26: #{tpu_custom_call.1} parent=11 // pred_check_branch
          %407 = sbr.rel (%p405) target = $region28
        $region27: #{tpu_custom_call.1} parent=11 // pred_region
          _
        $region28: #{tpu_custom_call.1} parent=11 // pred_fallthru
          _
        // Predicated region
        $region29: #{tpu_custom_call.1} parent=11 // pred_check
          %p408 = pneg %p188
        $region30: #{tpu_custom_call.1} parent=11 // pred_check_branch
          %410 = sbr.rel (%p408) target = $region32
        $region31: #{tpu_custom_call.1} parent=11 // pred_region
          _
        $region32: #{tpu_custom_call.1} parent=11 // pred_fallthru
          _
        // Predicated region
        $region33: #{tpu_custom_call.1} parent=11 // pred_check
          %p411 = pneg %p209
        $region34: #{tpu_custom_call.1} parent=11 // pred_check_branch
          %413 = sbr.rel (%p411) target = $region36
        $region35: #{tpu_custom_call.1} parent=11 // pred_region
          _
        $region36: #{tpu_custom_call.1} parent=11 // pred_fallthru
          _
        // Predicated region
        $region37: #{tpu_custom_call.1} parent=11 // pred_check
          %p414 = pneg %p230
        $region38: #{tpu_custom_call.1} parent=11 // pred_check_branch
          %416 = sbr.rel (%p414) target = $region40
        $region39: #{tpu_custom_call.1} parent=11 // pred_region
          %s418 = ssub.s32 1024, 1024
          %419 = vsyncadd [#allocation9], %s418
          %s420 = sshll.u32 [#allocation10], 4
          %s421 = int_to_ptr.vmem [resolvable:$true] %s420
          %426 = dma.hbm_to_vmem [thread:$0]  %s8, 1024, %s421, [#allocation9], 64, 64, 4
        $region40: #{tpu_custom_call.1} parent=11 // pred_fallthru
          _
        // Predicated region
        $region41: #{tpu_custom_call.1} parent=11 // pred_check
          %p427 = pneg %p251
        $region42: #{tpu_custom_call.1} parent=11 // pred_check_branch
          %429 = sbr.rel (%p427) target = $region44
        $region43: #{tpu_custom_call.1} parent=11 // pred_region
          _
        $region44: #{tpu_custom_call.1} parent=11 // pred_fallthru
          _
        // Predicated region
        $region45: #{tpu_custom_call.1} parent=11 // pred_check
          %p430 = pneg %p272
        $region46: #{tpu_custom_call.1} parent=11 // pred_check_branch
          %432 = sbr.rel (%p430) target = $region48
        $region47: #{tpu_custom_call.1} parent=11 // pred_region
          %s434 = ssub.s32 1024, 1024
          %435 = vsyncadd [#allocation12], %s434
          %s436 = sshll.u32 [#allocation11], 4
          %s437 = int_to_ptr.vmem [resolvable:$true] %s436
          %442 = dma.hbm_to_vmem [thread:$0]  %s10, 1024, %s437, [#allocation12], 64, 64, 4
        $region48: #{tpu_custom_call.1} parent=11 // pred_fallthru
          _
        // Predicated region
        $region49: #{tpu_custom_call.1} parent=11 // pred_check
          %p443 = pneg %p293
        $region50: #{tpu_custom_call.1} parent=11 // pred_check_branch
          %445 = sbr.rel (%p443) target = $region52
        $region51: #{tpu_custom_call.1} parent=11 // pred_region
          _
        $region52: #{tpu_custom_call.1} parent=11 // pred_fallthru
          _
        // Predicated region
        $region53: #{tpu_custom_call.1} parent=11 // pred_check
          %p446 = pneg %p314
        $region54: #{tpu_custom_call.1} parent=11 // pred_check_branch
          %448 = sbr.rel (%p446) target = $region56
        $region55: #{tpu_custom_call.1} parent=11 // pred_region
          _
        $region56: #{tpu_custom_call.1} parent=11 // pred_fallthru
          _
        // Predicated region
        $region57: #{tpu_custom_call.1} parent=11 // pred_check
          %p449 = pneg %p335
        $region58: #{tpu_custom_call.1} parent=11 // pred_check_branch
          %451 = sbr.rel (%p449) target = $region60
        $region59: #{tpu_custom_call.1} parent=11 // pred_region
          _
        $region60: #{tpu_custom_call.1} parent=11 // pred_fallthru
          _
      $region12: #{tpu_custom_call.1} parent=5 // pred_fallthru
        _
      %p452 = scmp.lt.s32.totalorder %s31, 2
      // Predicated region
      $region61: #{tpu_custom_call.1} parent=5 // pred_check
        %p453 = pneg %p452
      $region62: #{tpu_custom_call.1} parent=5 // pred_check_branch
        %455 = sbr.rel (%p453) target = $region64
      $region63: #{tpu_custom_call.1} parent=5 // pred_region
        // Predicated region
        $region65: #{tpu_custom_call.1} parent=63 // pred_check
          %p456 = pneg %p51
        $region66: #{tpu_custom_call.1} parent=63 // pred_check_branch
          %458 = sbr.rel (%p456) target = $region68
        $region67: #{tpu_custom_call.1} parent=63 // pred_region
          %s459 = sand.u32 %s41, 1
          %s460 = scalar_lea.sflag [#allocation3], %s459
          %s461 = sand.u32 %s41, 1
          %s462 = scalar_lea.vmem [#allocation2], %s461
          %s464 = ssub.s32 16, 16
          %465 = vsyncadd %s460, %s464
          %s466 = smul.addr %s31, 16
          %s467 = scalar_lea.hbm %s0, %s466
          %s469 = sshll.u32 %s462, 4
          %s470 = int_to_ptr.vmem [resolvable:$true] %s469
          %472 = dma.hbm_to_vmem [thread:$0]  %s467, 16, %s470, %s460
        $region68: #{tpu_custom_call.1} parent=63 // pred_fallthru
          _
        // Predicated region
        $region69: #{tpu_custom_call.1} parent=63 // pred_check
          %p473 = pneg %p77
        $region70: #{tpu_custom_call.1} parent=63 // pred_check_branch
          %475 = sbr.rel (%p473) target = $region72
        $region71: #{tpu_custom_call.1} parent=63 // pred_region
          %s476 = sand.u32 %s31, 1
          %s477 = scalar_lea.sflag [#allocation6], %s476
          %s478 = sand.u32 %s67, 1
          %s479 = smul.addr %s478, 8
          %s480 = scalar_lea.vmem [#allocation5], %s479
          %s482 = ssub.s32 128, 128
          %483 = vsyncadd %s477, %s482
          %s484 = smul.addr %s31, 128
          %s485 = scalar_lea.hbm %s1, %s484
          %s487 = sshll.u32 %s480, 4
          %s488 = int_to_ptr.vmem [resolvable:$true] %s487
          %490 = dma.hbm_to_vmem [thread:$0]  %s485, 128, %s488, %s477
        $region72: #{tpu_custom_call.1} parent=63 // pred_fallthru
          _
      $region64: #{tpu_custom_call.1} parent=5 // pred_fallthru
        _
      %p491 = scmp.le.s32.totalorder 1, %s31
      %p492 = scmp.lt.s32.totalorder %s31, 3
      %p493 = pnand %p491, %p492
      %p494 = pneg %p493
      // Predicated region
      $region73: #{tpu_custom_call.1} parent=5 // pred_check
        _
      $region74: #{tpu_custom_call.1} parent=5 // pred_check_branch
        %496 = sbr.rel (%p493) target = $region76
      $region75: #{tpu_custom_call.1} parent=5 // pred_region
        %s497 = ssub.s32 %s31, 1
        %s498 = sand.u32 %s44, 1
        %s499 = scalar_lea.sflag [#allocation3], %s498
        %s500 = sand.u32 %s44, 1
        %s501 = scalar_lea.vmem [#allocation2], %s500
        // Predicated region
        $region77: #{tpu_custom_call.1} parent=75 // pred_check
          %p502 = pneg %p57
        $region78: #{tpu_custom_call.1} parent=75 // pred_check_branch
          %504 = sbr.rel (%p502) target = $region80
        $region79: #{tpu_custom_call.1} parent=75 // pred_region
          %505 = dma.done %s499, 16
        $region80: #{tpu_custom_call.1} parent=75 // pred_fallthru
          _
        %s506 = sand.u32 %s36, 1
        %s507 = scalar_lea.sflag [#allocation6], %s506
        %s508 = sand.u32 %s70, 1
        %s509 = smul.addr %s508, 8
        %s510 = scalar_lea.vmem [#allocation5], %s509
        // Predicated region
        $region81: #{tpu_custom_call.1} parent=75 // pred_check
          %p511 = pneg %p83
        $region82: #{tpu_custom_call.1} parent=75 // pred_check_branch
          %513 = sbr.rel (%p511) target = $region84
        $region83: #{tpu_custom_call.1} parent=75 // pred_region
          %514 = dma.done %s507, 128
        $region84: #{tpu_custom_call.1} parent=75 // pred_fallthru
          _
        // Predicated region
        $region85: #{tpu_custom_call.1} parent=75 // pred_check
          %p515 = pneg %p104
        $region86: #{tpu_custom_call.1} parent=75 // pred_check_branch
          %517 = sbr.rel (%p515) target = $region88
        $region87: #{tpu_custom_call.1} parent=75 // pred_region
          %518 = dma.done [#allocation6], 3072
        $region88: #{tpu_custom_call.1} parent=75 // pred_fallthru
          _
        // Predicated region
        $region89: #{tpu_custom_call.1} parent=75 // pred_check
          %p519 = pneg %p146
        $region90: #{tpu_custom_call.1} parent=75 // pred_check_branch
          %521 = sbr.rel (%p519) target = $region92
        $region91: #{tpu_custom_call.1} parent=75 // pred_region
          %522 = dma.done [#allocation9], 1024
        $region92: #{tpu_custom_call.1} parent=75 // pred_fallthru
          _
        // Predicated region
        $region93: #{tpu_custom_call.1} parent=75 // pred_check
          %p523 = pneg %p230
        $region94: #{tpu_custom_call.1} parent=75 // pred_check_branch
          %525 = sbr.rel (%p523) target = $region96
        $region95: #{tpu_custom_call.1} parent=75 // pred_region
          %526 = dma.done [#allocation9], 1024
        $region96: #{tpu_custom_call.1} parent=75 // pred_fallthru
          _
        // Predicated region
        $region97: #{tpu_custom_call.1} parent=75 // pred_check
          %p527 = pneg %p272
        $region98: #{tpu_custom_call.1} parent=75 // pred_check_branch
          %529 = sbr.rel (%p527) target = $region100
        $region99: #{tpu_custom_call.1} parent=75 // pred_region
          %530 = dma.done [#allocation12], 1024
        $region100: #{tpu_custom_call.1} parent=75 // pred_fallthru
          _
        %s531 = sand.u32 %s44, 1
        %s532 = scalar_lea.sflag [#allocation3], %s531
        %s533 = sand.u32 %s44, 1
        %s534 = scalar_lea.vmem [#allocation2], %s533
        %p535 = pneg %p57
        %p536 = pneg %p54
        %s537 = sand.u32 %s36, 1
        %s538 = scalar_lea.sflag [#allocation6], %s537
        %s539 = sand.u32 %s70, 1
        %s540 = smul.addr %s539, 8
        %s541 = scalar_lea.vmem [#allocation5], %s540
        %p542 = pneg %p83
        %p543 = pneg %p80
        %p544 = pneg %p104
        %p545 = pneg %p101
        %p546 = pneg %p125
        %p547 = pneg %p122
        %p548 = pneg %p146
        %p549 = pneg %p143
        %p550 = pneg %p167
        %p551 = pneg %p164
        %p552 = pneg %p188
        %p553 = pneg %p185
        %p554 = pneg %p209
        %p555 = pneg %p206
        %p556 = pneg %p230
        %p557 = pneg %p227
        %p558 = pneg %p251
        %p559 = pneg %p248
        %p560 = pneg %p272
        %p561 = pneg %p269
        %p562 = pneg %p293
        %p563 = pneg %p290
        %p564 = pneg %p314
        %p565 = pneg %p311
        %p566 = pneg %p335
        %p567 = pneg %p332
        %p568 = pneg %p361
        %p569 = pneg %p358
        %s570 = sand.u32 %s348, 1
        %s571 = scalar_lea.sflag [#allocation4], %s570
        %s572 = sand.u32 %s348, 1
        %s573 = scalar_lea.vmem [#allocation13], %s572
        %v575 = vld [vmem:[%s510] sm:$0xff]
        %v576 = vpack.c.bf16 %v575, %v575
        %v577 = vld [vmem:[%s501] sm:$0x1]
        %v578 = vsub.f32 %v577, 1.0
        %v579 = vmul.f32 %v578, 1e+09
        %v580 = vlaneseq
        %v581 = vand.u32 %v580, 127
        %vm582 = vcmp.lt.s32.totalorder %v581, 32
        %v583 = vsel %vm582, 1, 0
        %v584 = vcvt.s32.f32 %v583
        %v585 = vld [vmem:[#allocation7] sm:$0xff]
        %v586 = vld [vmem:[#allocation7 + $0x8] sm:$0xf]
        %v587 = vld [vmem:[#allocation7 + $0xc] sm:$0xff]
        %v588 = vld [vmem:[#allocation7 + $0x14] sm:$0xf]
        %v589 = vld [vmem:[#allocation7 + $0x18] sm:$0xff]
        %v590 = vld [vmem:[#allocation7 + $0x20] sm:$0xf]
        %v591 = vld [vmem:[#allocation7 + $0x24] sm:$0xff]
        %v592 = vld [vmem:[#allocation7 + $0x2c] sm:$0xf]
        %v593 = vld [vmem:[#allocation7 + $0x30] sm:$0xff]
        %v594 = vld [vmem:[#allocation7 + $0x38] sm:$0xf]
        %v595 = vld [vmem:[#allocation7 + $0x3c] sm:$0xff]
        %v596 = vld [vmem:[#allocation7 + $0x44] sm:$0xf]
        %v597 = vld [vmem:[#allocation7 + $0x48] sm:$0xff]
        %v598 = vld [vmem:[#allocation7 + $0x50] sm:$0xf]
        %v599 = vld [vmem:[#allocation7 + $0x54] sm:$0xff]
        %v600 = vld [vmem:[#allocation7 + $0x5c] sm:$0xf]
        %v601 = vld [vmem:[#allocation7 + $0x60] sm:$0xff]
        %v602 = vld [vmem:[#allocation7 + $0x68] sm:$0xf]
        %v603 = vld [vmem:[#allocation7 + $0x6c] sm:$0xff]
        %v604 = vld [vmem:[#allocation7 + $0x74] sm:$0xf]
        %v605 = vld [vmem:[#allocation7 + $0x78] sm:$0xff]
        %v606 = vld [vmem:[#allocation7 + $0x80] sm:$0xf]
        %v607 = vld [vmem:[#allocation7 + $0x84] sm:$0xff]
        %v608 = vld [vmem:[#allocation7 + $0x8c] sm:$0xf]
        %v609 = vld [vmem:[#allocation7 + $0x90] sm:$0xff]
        %v610 = vld [vmem:[#allocation7 + $0x98] sm:$0xf]
        %v611 = vld [vmem:[#allocation7 + $0x9c] sm:$0xff]
        %v612 = vld [vmem:[#allocation7 + $0xa4] sm:$0xf]
        %v613 = vld [vmem:[#allocation7 + $0xa8] sm:$0xff]
        %v614 = vld [vmem:[#allocation7 + $0xb0] sm:$0xf]
        %v615 = vld [vmem:[#allocation7 + $0xb4] sm:$0xff]
        %v616 = vld [vmem:[#allocation7 + $0xbc] sm:$0xf]
        %v617 = vld [vmem:[%s3] sm:$0x7]
        %v619 = vlaneseq
        %v620 = vshrl.u32 %v619, 7
        %v621 = vsub.s32 0, %v620
        %v622 = vrot.slane %v617, %v621
        %v623 = vlaneseq
        %v624 = vshrl.u32 %v623, 7
        %v625 = vsub.s32 1, %v624
        %v626 = vrot.slane %v617, %v625
        %v627 = vlaneseq
        %v628 = vshrl.u32 %v627, 7
        %v629 = vsub.s32 2, %v628
        %v630 = vrot.slane %v617, %v629
        %v666 = vunpack.c.l.b16 %v585
        %v667 = vunpack.c.h.b16 %v585
        %v668 = vunpack.c.l.b16 %v586
        %v669 = vunpack.c.l.b16 %v587
        %v670 = vunpack.c.h.b16 %v587
        %v671 = vunpack.c.l.b16 %v588
        %v672 = vunpack.c.l.b16 %v589
        %v673 = vunpack.c.h.b16 %v589
        %v674 = vunpack.c.l.b16 %v590
        %v675 = vunpack.c.l.b16 %v591
        %v676 = vunpack.c.h.b16 %v591
        %v677 = vunpack.c.l.b16 %v592
        %v678 = vunpack.c.l.b16 %v593
        %v679 = vunpack.c.h.b16 %v593
        %v680 = vunpack.c.l.b16 %v594
        %v681 = vunpack.c.l.b16 %v595
        %v682 = vunpack.c.h.b16 %v595
        %v683 = vunpack.c.l.b16 %v596
        %v684 = vunpack.c.l.b16 %v597
        %v685 = vunpack.c.h.b16 %v597
        %v686 = vunpack.c.l.b16 %v598
        %v687 = vunpack.c.l.b16 %v599
        %v688 = vunpack.c.h.b16 %v599
        %v689 = vunpack.c.l.b16 %v600
        %v690 = vunpack.c.l.b16 %v601
        %v691 = vunpack.c.h.b16 %v601
        %v692 = vunpack.c.l.b16 %v602
        %v693 = vunpack.c.l.b16 %v603
        %v694 = vunpack.c.h.b16 %v603
        %v695 = vunpack.c.l.b16 %v604
        %v696 = vunpack.c.l.b16 %v605
        %v697 = vunpack.c.h.b16 %v605
        %v698 = vunpack.c.l.b16 %v606
        %v699 = vunpack.c.l.b16 %v607
        %v700 = vunpack.c.h.b16 %v607
        %v701 = vunpack.c.l.b16 %v608
        %v702 = vunpack.c.l.b16 %v609
        %v703 = vunpack.c.h.b16 %v609
        %v704 = vunpack.c.l.b16 %v610
        %v705 = vunpack.c.l.b16 %v611
        %v706 = vunpack.c.h.b16 %v611
        %v707 = vunpack.c.l.b16 %v612
        %v708 = vunpack.c.l.b16 %v613
        %v709 = vunpack.c.h.b16 %v613
        %v710 = vunpack.c.l.b16 %v614
        %v711 = vunpack.c.l.b16 %v615
        %v712 = vunpack.c.h.b16 %v615
        %v713 = vunpack.c.l.b16 %v616
        %v714 = vpack.c.b16 %v669, %v666
        %v715 = vpack.c.b16 %v670, %v667
        %v716 = vpack.c.b16 %v671, %v668
        %v717 = vpack.c.b16 %v675, %v672
        %v718 = vpack.c.b16 %v676, %v673
        %v719 = vpack.c.b16 %v677, %v674
        %v720 = vpack.c.b16 %v681, %v678
        %v721 = vpack.c.b16 %v682, %v679
        %v722 = vpack.c.b16 %v683, %v680
        %v723 = vpack.c.b16 %v687, %v684
        %v724 = vpack.c.b16 %v688, %v685
        %v725 = vpack.c.b16 %v689, %v686
        %v726 = vpack.c.b16 %v693, %v690
        %v727 = vpack.c.b16 %v694, %v691
        %v728 = vpack.c.b16 %v695, %v692
        %v729 = vpack.c.b16 %v699, %v696
        %v730 = vpack.c.b16 %v700, %v697
        %v731 = vpack.c.b16 %v701, %v698
        %v732 = vpack.c.b16 %v705, %v702
        %v733 = vpack.c.b16 %v706, %v703
        %v734 = vpack.c.b16 %v707, %v704
        %v735 = vpack.c.b16 %v711, %v708
        %v736 = vpack.c.b16 %v712, %v709
        %v737 = vpack.c.b16 %v713, %v710
        %762 = vmatprep.subr.bf16.mxu0 %v736
        %763 = vmatpush1.bf16.msra.mxu0 %v735
        %764 = vmatprep.subr.bf16.mxu0 %v733
        %765 = vmatpush1.bf16.msra.mxu0 %v732
        %766 = vmatprep.subr.bf16.mxu0 %v730
        %767 = vmatpush1.bf16.msra.mxu0 %v729
        %768 = vmatprep.subr.bf16.mxu0 %v727
        %769 = vmatpush1.bf16.msra.mxu0 %v726
        %770 = vmatprep.subr.bf16.mxu0 %v724
        %771 = vmatpush1.bf16.msra.mxu0 %v723
        %772 = vmatprep.subr.bf16.mxu0 %v721
        %773 = vmatpush1.bf16.msra.mxu0 %v720
        %774 = vmatprep.subr.bf16.mxu0 %v718
        %775 = vmatpush1.bf16.msra.mxu0 %v717
        %776 = vmatprep.subr.bf16.mxu0 %v715
        %777 = vmatpush1.bf16.msra.mxu0 %v714
        %778 = vmatprep.subr.bf16.mxu0 0
        %779 = vmatpush2.bf16.msra.mxu0 0
        %780 = vmatprep.subr.bf16.mxu0 0
        %781 = vmatpush2.bf16.msra.mxu0 0
        %782 = vmatprep.subr.bf16.mxu0 0
        %783 = vmatpush2.bf16.msra.mxu0 0
        %784 = vmatprep.subr.bf16.mxu0 0
        %785 = vmatpush2.bf16.msra.mxu0 0
        %786 = vmatprep.subr.bf16.mxu0 0
        %787 = vmatpush2.bf16.msra.mxu0 0
        %788 = vmatprep.subr.bf16.mxu0 0
        %789 = vmatpush2.bf16.msra.mxu0 0
        %790 = vmatprep.subr.bf16.mxu0 0
        %791 = vmatpush2.bf16.msra.mxu0 0
        %792 = vmatprep.subr.bf16.mxu0 0
        %793 = vmatpush2.bf16.msra.mxu0 0
        %794 = vmatprep.mubr.bf16.mxu0 0
        %795 = vmatmul.mubr.bf16.gmra.mxu0 %v576
        %v796 = vpop.f32.mrf.mxu0
        %v797 = vadd.f32 %v622, %v796
        %v798 = vpop.f32.mrf.mxu0
        %v799 = vadd.f32 %v626, %v798
        %v800 = vpop.f32.mrf.mxu0
        %v801 = vpop.f32.mrf.mxu0
        %802 = vdwg.mxu0
        %803 = vmatprep.subr.bf16.mxu0 0
        %804 = vmatpush1.bf16.msra.mxu0 %v737
        %805 = vmatprep.subr.bf16.mxu0 0
        %806 = vmatpush1.bf16.msra.mxu0 %v734
        %807 = vmatprep.subr.bf16.mxu0 0
        %808 = vmatpush1.bf16.msra.mxu0 %v731
        %809 = vmatprep.subr.bf16.mxu0 0
        %810 = vmatpush1.bf16.msra.mxu0 %v728
        %811 = vmatprep.subr.bf16.mxu0 0
        %812 = vmatpush1.bf16.msra.mxu0 %v725
        %813 = vmatprep.subr.bf16.mxu0 0
        %814 = vmatpush1.bf16.msra.mxu0 %v722
        %815 = vmatprep.subr.bf16.mxu0 0
        %816 = vmatpush1.bf16.msra.mxu0 %v719
        %817 = vmatprep.subr.bf16.mxu0 0
        %818 = vmatpush1.bf16.msra.mxu0 %v716
        %819 = vmatprep.subr.bf16.mxu0 0
        %820 = vmatpush2.bf16.msra.mxu0 0
        %821 = vmatprep.subr.bf16.mxu0 0
        %822 = vmatpush2.bf16.msra.mxu0 0
        %823 = vmatprep.subr.bf16.mxu0 0
        %824 = vmatpush2.bf16.msra.mxu0 0
        %825 = vmatprep.subr.bf16.mxu0 0
        %826 = vmatpush2.bf16.msra.mxu0 0
        %827 = vmatprep.subr.bf16.mxu0 0
        %828 = vmatpush2.bf16.msra.mxu0 0
        %829 = vmatprep.subr.bf16.mxu0 0
        %830 = vmatpush2.bf16.msra.mxu0 0
        %831 = vmatprep.subr.bf16.mxu0 0
        %832 = vmatpush2.bf16.msra.mxu0 0
        %833 = vmatprep.subr.bf16.mxu0 0
        %834 = vmatpush2.bf16.msra.mxu0 0
        %835 = vmatprep.mubr.bf16.mxu0 0
        %836 = vmatmul.mubr.bf16.gmra.mxu0 %v576
        %v837 = vpop.f32.mrf.mxu0
        %v838 = vadd.f32 %v630, %v837
        %v839 = vpop.f32.mrf.mxu0
        %v840 = vpop.f32.mrf.mxu0
        %v841 = vpop.f32.mrf.mxu0
        %842 = vdwg.mxu0
        %v843 = vpack.c.bf16 %v797, %v797
        %v844 = vpack.c.bf16 %v799, %v799
        %845 = vmatprep.subr.bf16.mxu0 0
        %846 = vmatpush1.bf16.xpose.msra.mxu0 0
        %847 = vmatprep.subr.bf16.mxu0 0
        %848 = vmatpush1.bf16.xpose.msra.mxu0 0
        %849 = vmatprep.subr.bf16.mxu0 0
        %850 = vmatpush1.bf16.xpose.msra.mxu0 0
        %851 = vmatprep.subr.bf16.mxu0 0
        %852 = vmatpush1.bf16.xpose.msra.mxu0 0
        %853 = vmatprep.subr.bf16.mxu0 0
        %854 = vmatpush1.bf16.xpose.msra.mxu0 0
        %855 = vmatprep.subr.bf16.mxu0 0
        %856 = vmatpush1.bf16.xpose.msra.mxu0 0
        %857 = vmatprep.subr.bf16.mxu0 0
        %858 = vmatpush1.bf16.xpose.msra.mxu0 0
        %859 = vmatprep.subr.bf16.mxu0 0
        %860 = vmatpush1.bf16.xpose.msra.mxu0 %v844
        %861 = vmatprep.subr.bf16.mxu0 0
        %862 = vmatpush2.bf16.xpose.msra.mxu0 0
        %863 = vmatprep.subr.bf16.mxu0 0
        %864 = vmatpush2.bf16.xpose.msra.mxu0 0
        %865 = vmatprep.subr.bf16.mxu0 0
        %866 = vmatpush2.bf16.xpose.msra.mxu0 0
        %867 = vmatprep.subr.bf16.mxu0 0
        %868 = vmatpush2.bf16.xpose.msra.mxu0 0
        %869 = vmatprep.subr.bf16.mxu0 0
        %870 = vmatpush2.bf16.xpose.msra.mxu0 0
        %871 = vmatprep.subr.bf16.mxu0 0
        %872 = vmatpush2.bf16.xpose.msra.mxu0 0
        %873 = vmatprep.subr.bf16.mxu0 0
        %874 = vmatpush2.bf16.xpose.msra.mxu0 0
        %875 = vmatprep.subr.bf16.mxu0 0
        %876 = vmatpush2.bf16.xpose.msra.mxu0 0
        %877 = vmatprep.mubr.bf16.mxu0 0
        %878 = vmatmul.mubr.bf16.gmra.mxu0 %v843
        %v879 = vpop.f32.mrf.mxu0
        %v880 = vadd.f32 0.0, %v879
        %v881 = vpop.f32.mrf.mxu0
        %v882 = vpop.f32.mrf.mxu0
        %v883 = vpop.f32.mrf.mxu0
        %884 = vdwg.mxu0
        %v885 = vmul.f32 %v880, 0.17677669
        %v887 = vlaneseq
        %v888 = vshrl.u32 %v887, 7
        %v889 = vsub.s32 0, %v888
        %v890 = vrot.slane %v579, %v889
        %v892 = vadd.f32 %v885, %v890
        %vm893 = vcmask 64512
        %v894 = vsel %vm893, %v892, -inf
        %895 = vmax.xlane.f32.xlu0 %v894
        %v896 = vpop.xlane.xlu0 %895
        %v897 = vsub.f32 %v892, %v896
        %v898 = vmul.f32 %v897, 1.442695
        %v899 = vpow.pop %v898
        %v900 = vsel %vm893, %v899, 0.0
        %901 = vadd.xlane.f32.xlu0 %v900
        %v902 = vpop.xlane.xlu0 %901
        %v903 = vrcp.pop %v902
        %v904 = vmul.f32 %v899, %v903
        %v905 = vpack.c.bf16 %v904, %v904
        %v906 = vpack.c.bf16 %v838, %v838
        %v908 = vsel %vm893, %v905, 0
        %vm910 = vcmask 1043456
        %v912 = vsel %vm910, %v906, 0
        %914 = vmatprep.subr.bf16.mxu0 0
        %915 = vmatpush1.bf16.msra.mxu0 0
        %916 = vmatprep.subr.bf16.mxu0 0
        %917 = vmatpush1.bf16.msra.mxu0 0
        %918 = vmatprep.subr.bf16.mxu0 0
        %919 = vmatpush1.bf16.msra.mxu0 0
        %920 = vmatprep.subr.bf16.mxu0 0
        %921 = vmatpush1.bf16.msra.mxu0 0
        %922 = vmatprep.subr.bf16.mxu0 0
        %923 = vmatpush1.bf16.msra.mxu0 0
        %924 = vmatprep.subr.bf16.mxu0 0
        %925 = vmatpush1.bf16.msra.mxu0 0
        %926 = vmatprep.subr.bf16.mxu0 0
        %927 = vmatpush1.bf16.msra.mxu0 0
        %928 = vmatprep.subr.bf16.mxu0 0
        %929 = vmatpush1.bf16.msra.mxu0 %v912
        %930 = vmatprep.subr.bf16.mxu0 0
        %931 = vmatpush2.bf16.msra.mxu0 0
        %932 = vmatprep.subr.bf16.mxu0 0
        %933 = vmatpush2.bf16.msra.mxu0 0
        %934 = vmatprep.subr.bf16.mxu0 0
        %935 = vmatpush2.bf16.msra.mxu0 0
        %936 = vmatprep.subr.bf16.mxu0 0
        %937 = vmatpush2.bf16.msra.mxu0 0
        %938 = vmatprep.subr.bf16.mxu0 0
        %939 = vmatpush2.bf16.msra.mxu0 0
        %940 = vmatprep.subr.bf16.mxu0 0
        %941 = vmatpush2.bf16.msra.mxu0 0
        %942 = vmatprep.subr.bf16.mxu0 0
        %943 = vmatpush2.bf16.msra.mxu0 0
        %944 = vmatprep.subr.bf16.mxu0 0
        %945 = vmatpush2.bf16.msra.mxu0 0
        %946 = vmatprep.mubr.bf16.mxu0 0
        %947 = vmatmul.mubr.bf16.gmra.mxu0 %v908
        %v948 = vpop.f32.mrf.mxu0
        %v949 = vadd.f32 0.0, %v948
        %v950 = vpop.f32.mrf.mxu0
        %v951 = vpop.f32.mrf.mxu0
        %v952 = vpop.f32.mrf.mxu0
        %953 = vdwg.mxu0
        %v954 = vpack.c.bf16 %v949, %v949
        %v955 = vld [vmem:[#allocation8] sm:$0xf]
        %v956 = vld [vmem:[#allocation8 + $0x4] sm:$0xf]
        %v957 = vld [vmem:[#allocation8 + $0x8] sm:$0xf]
        %v958 = vld [vmem:[#allocation8 + $0xc] sm:$0xf]
        %v959 = vld [vmem:[#allocation8 + $0x10] sm:$0xf]
        %v960 = vld [vmem:[#allocation8 + $0x14] sm:$0xf]
        %v961 = vld [vmem:[#allocation8 + $0x18] sm:$0xf]
        %v962 = vld [vmem:[#allocation8 + $0x1c] sm:$0xf]
        %v963 = vld [vmem:[#allocation8 + $0x20] sm:$0xf]
        %v964 = vld [vmem:[#allocation8 + $0x24] sm:$0xf]
        %v965 = vld [vmem:[#allocation8 + $0x28] sm:$0xf]
        %v966 = vld [vmem:[#allocation8 + $0x2c] sm:$0xf]
        %v967 = vld [vmem:[#allocation8 + $0x30] sm:$0xf]
        %v968 = vld [vmem:[#allocation8 + $0x34] sm:$0xf]
        %v969 = vld [vmem:[#allocation8 + $0x38] sm:$0xf]
        %v970 = vld [vmem:[#allocation8 + $0x3c] sm:$0xf]
        %v971 = vld [vmem:[%s5] sm:$0x1]
        %v973 = vlaneseq
        %v974 = vshrl.u32 %v973, 7
        %v975 = vsub.s32 0, %v974
        %v976 = vrot.slane %v971, %v975
        %v994 = vunpack.c.l.b16 %v955
        %v995 = vunpack.c.l.b16 %v956
        %v996 = vunpack.c.l.b16 %v957
        %v997 = vunpack.c.l.b16 %v958
        %v998 = vunpack.c.l.b16 %v959
        %v999 = vunpack.c.l.b16 %v960
        %v1000 = vunpack.c.l.b16 %v961
        %v1001 = vunpack.c.l.b16 %v962
        %v1002 = vunpack.c.l.b16 %v963
        %v1003 = vunpack.c.l.b16 %v964
        %v1004 = vunpack.c.l.b16 %v965
        %v1005 = vunpack.c.l.b16 %v966
        %v1006 = vunpack.c.l.b16 %v967
        %v1007 = vunpack.c.l.b16 %v968
        %v1008 = vunpack.c.l.b16 %v969
        %v1009 = vunpack.c.l.b16 %v970
        %v1010 = vpack.c.b16 %v995, %v994
        %v1011 = vpack.c.b16 %v997, %v996
        %v1012 = vpack.c.b16 %v999, %v998
        %v1013 = vpack.c.b16 %v1001, %v1000
        %v1014 = vpack.c.b16 %v1003, %v1002
        %v1015 = vpack.c.b16 %v1005, %v1004
        %v1016 = vpack.c.b16 %v1007, %v1006
        %v1017 = vpack.c.b16 %v1009, %v1008
        %1026 = vmatprep.subr.bf16.mxu0 0
        %1027 = vmatpush1.bf16.msra.mxu0 %v1017
        %1028 = vmatprep.subr.bf16.mxu0 0
        %1029 = vmatpush1.bf16.msra.mxu0 %v1016
        %1030 = vmatprep.subr.bf16.mxu0 0
        %1031 = vmatpush1.bf16.msra.mxu0 %v1015
        %1032 = vmatprep.subr.bf16.mxu0 0
        %1033 = vmatpush1.bf16.msra.mxu0 %v1014
        %1034 = vmatprep.subr.bf16.mxu0 0
        %1035 = vmatpush1.bf16.msra.mxu0 %v1013
        %1036 = vmatprep.subr.bf16.mxu0 0
        %1037 = vmatpush1.bf16.msra.mxu0 %v1012
        %1038 = vmatprep.subr.bf16.mxu0 0
        %1039 = vmatpush1.bf16.msra.mxu0 %v1011
        %1040 = vmatprep.subr.bf16.mxu0 0
        %1041 = vmatpush1.bf16.msra.mxu0 %v1010
        %1042 = vmatprep.subr.bf16.mxu0 0
        %1043 = vmatpush2.bf16.msra.mxu0 0
        %1044 = vmatprep.subr.bf16.mxu0 0
        %1045 = vmatpush2.bf16.msra.mxu0 0
        %1046 = vmatprep.subr.bf16.mxu0 0
        %1047 = vmatpush2.bf16.msra.mxu0 0
        %1048 = vmatprep.subr.bf16.mxu0 0
        %1049 = vmatpush2.bf16.msra.mxu0 0
        %1050 = vmatprep.subr.bf16.mxu0 0
        %1051 = vmatpush2.bf16.msra.mxu0 0
        %1052 = vmatprep.subr.bf16.mxu0 0
        %1053 = vmatpush2.bf16.msra.mxu0 0
        %1054 = vmatprep.subr.bf16.mxu0 0
        %1055 = vmatpush2.bf16.msra.mxu0 0
        %1056 = vmatprep.subr.bf16.mxu0 0
        %1057 = vmatpush2.bf16.msra.mxu0 0
        %1058 = vmatprep.mubr.bf16.mxu0 0
        %1059 = vmatmul.mubr.bf16.gmra.mxu0 %v954
        %v1060 = vpop.f32.mrf.mxu0
        %v1061 = vadd.f32 %v976, %v1060
        %v1062 = vpop.f32.mrf.mxu0
        %v1063 = vpop.f32.mrf.mxu0
        %v1064 = vpop.f32.mrf.mxu0
        %1065 = vdwg.mxu0
        %v1066 = vadd.f32 %v575, %v1061
        %v1067 = vld [vmem:[%s6] sm:$0x1]
        %v1068 = vld [vmem:[%s7] sm:$0x1]
        %1069 = vadd.xlane.f32.xlu0 %v1066
        %v1070 = vpop.xlane.xlu0 %1069
        %v1071 = vmul.f32 %v1070, 0.03125
        %v1072 = vsub.f32 %v1066, %v1071
        %v1073 = vmul.f32 %v1072, %v584
        %v1074 = vmul.f32 %v1073, %v1073
        %1075 = vadd.xlane.f32.xlu0 %v1074
        %v1076 = vpop.xlane.xlu0 %1075
        %v1077 = vmul.f32 %v1076, 0.03125
        %v1078 = vadd.f32 %v1077, 1e-05
        %v1079 = vrsqrt.pop %v1078
        %v1080 = vmul.f32 %v1073, %v1079
        %v1082 = vlaneseq
        %v1083 = vshrl.u32 %v1082, 7
        %v1084 = vsub.s32 0, %v1083
        %v1085 = vrot.slane %v1067, %v1084
        %v1087 = vmul.f32 %v1080, %v1085
        %v1089 = vlaneseq
        %v1090 = vshrl.u32 %v1089, 7
        %v1091 = vsub.s32 0, %v1090
        %v1092 = vrot.slane %v1068, %v1091
        %v1094 = vadd.f32 %v1087, %v1092
        %v1095 = vpack.c.bf16 %v1094, %v1094
        %v1096 = vld [vmem:[#allocation10] sm:$0xf]
        %v1097 = vld [vmem:[#allocation10 + $0x4] sm:$0xf]
        %v1098 = vld [vmem:[#allocation10 + $0x8] sm:$0xf]
        %v1099 = vld [vmem:[#allocation10 + $0xc] sm:$0xf]
        %v1100 = vld [vmem:[#allocation10 + $0x10] sm:$0xf]
        %v1101 = vld [vmem:[#allocation10 + $0x14] sm:$0xf]
        %v1102 = vld [vmem:[#allocation10 + $0x18] sm:$0xf]
        %v1103 = vld [vmem:[#allocation10 + $0x1c] sm:$0xf]
        %v1104 = vld [vmem:[#allocation10 + $0x20] sm:$0xf]
        %v1105 = vld [vmem:[#allocation10 + $0x24] sm:$0xf]
        %v1106 = vld [vmem:[#allocation10 + $0x28] sm:$0xf]
        %v1107 = vld [vmem:[#allocation10 + $0x2c] sm:$0xf]
        %v1108 = vld [vmem:[#allocation10 + $0x30] sm:$0xf]
        %v1109 = vld [vmem:[#allocation10 + $0x34] sm:$0xf]
        %v1110 = vld [vmem:[#allocation10 + $0x38] sm:$0xf]
        %v1111 = vld [vmem:[#allocation10 + $0x3c] sm:$0xf]
        %v1112 = vld [vmem:[%s9] sm:$0x1]
        %v1114 = vlaneseq
        %v1115 = vshrl.u32 %v1114, 7
        %v1116 = vsub.s32 0, %v1115
        %v1117 = vrot.slane %v1112, %v1116
        %v1135 = vunpack.c.l.b16 %v1096
        %v1136 = vunpack.c.l.b16 %v1097
        %v1137 = vunpack.c.l.b16 %v1098
        %v1138 = vunpack.c.l.b16 %v1099
        %v1139 = vunpack.c.l.b16 %v1100
        %v1140 = vunpack.c.l.b16 %v1101
        %v1141 = vunpack.c.l.b16 %v1102
        %v1142 = vunpack.c.l.b16 %v1103
        %v1143 = vunpack.c.l.b16 %v1104
        %v1144 = vunpack.c.l.b16 %v1105
        %v1145 = vunpack.c.l.b16 %v1106
        %v1146 = vunpack.c.l.b16 %v1107
        %v1147 = vunpack.c.l.b16 %v1108
        %v1148 = vunpack.c.l.b16 %v1109
        %v1149 = vunpack.c.l.b16 %v1110
        %v1150 = vunpack.c.l.b16 %v1111
        %v1151 = vpack.c.b16 %v1136, %v1135
        %v1152 = vpack.c.b16 %v1138, %v1137
        %v1153 = vpack.c.b16 %v1140, %v1139
        %v1154 = vpack.c.b16 %v1142, %v1141
        %v1155 = vpack.c.b16 %v1144, %v1143
        %v1156 = vpack.c.b16 %v1146, %v1145
        %v1157 = vpack.c.b16 %v1148, %v1147
        %v1158 = vpack.c.b16 %v1150, %v1149
        %1167 = vmatprep.subr.bf16.mxu0 0
        %1168 = vmatpush1.bf16.msra.mxu0 %v1158
        %1169 = vmatprep.subr.bf16.mxu0 0
        %1170 = vmatpush1.bf16.msra.mxu0 %v1157
        %1171 = vmatprep.subr.bf16.mxu0 0
        %1172 = vmatpush1.bf16.msra.mxu0 %v1156
        %1173 = vmatprep.subr.bf16.mxu0 0
        %1174 = vmatpush1.bf16.msra.mxu0 %v1155
        %1175 = vmatprep.subr.bf16.mxu0 0
        %1176 = vmatpush1.bf16.msra.mxu0 %v1154
        %1177 = vmatprep.subr.bf16.mxu0 0
        %1178 = vmatpush1.bf16.msra.mxu0 %v1153
        %1179 = vmatprep.subr.bf16.mxu0 0
        %1180 = vmatpush1.bf16.msra.mxu0 %v1152
        %1181 = vmatprep.subr.bf16.mxu0 0
        %1182 = vmatpush1.bf16.msra.mxu0 %v1151
        %1183 = vmatprep.subr.bf16.mxu0 0
        %1184 = vmatpush2.bf16.msra.mxu0 0
        %1185 = vmatprep.subr.bf16.mxu0 0
        %1186 = vmatpush2.bf16.msra.mxu0 0
        %1187 = vmatprep.subr.bf16.mxu0 0
        %1188 = vmatpush2.bf16.msra.mxu0 0
        %1189 = vmatprep.subr.bf16.mxu0 0
        %1190 = vmatpush2.bf16.msra.mxu0 0
        %1191 = vmatprep.subr.bf16.mxu0 0
        %1192 = vmatpush2.bf16.msra.mxu0 0
        %1193 = vmatprep.subr.bf16.mxu0 0
        %1194 = vmatpush2.bf16.msra.mxu0 0
        %1195 = vmatprep.subr.bf16.mxu0 0
        %1196 = vmatpush2.bf16.msra.mxu0 0
        %1197 = vmatprep.subr.bf16.mxu0 0
        %1198 = vmatpush2.bf16.msra.mxu0 0
        %1199 = vmatprep.mubr.bf16.mxu0 0
        %1200 = vmatmul.mubr.bf16.gmra.mxu0 %v1095
        %v1201 = vpop.f32.mrf.mxu0
        %v1202 = vadd.f32 %v1117, %v1201
        %v1203 = vpop.f32.mrf.mxu0
        %v1204 = vpop.f32.mrf.mxu0
        %v1205 = vpop.f32.mrf.mxu0
        %1206 = vdwg.mxu0
        %v1207 = vmul.f32 %v1202, %v1202
        %v1208 = vmul.f32 %v1202, %v1207
        %v1209 = vmul.f32 %v1208, 0.044715
        %v1210 = vadd.f32 %v1202, %v1209
        %v1211 = vmul.f32 %v1210, 0.7978846
        %v1212 = vtanh.pop %v1211
        %v1213 = vadd.f32 %v1212, 1.0
        %v1214 = vmul.f32 %v1213, 0.5
        %v1215 = vmul.f32 %v1202, %v1214
        %v1216 = vpack.c.bf16 %v1215, %v1215
        %v1217 = vld [vmem:[#allocation11] sm:$0xf]
        %v1218 = vld [vmem:[#allocation11 + $0x4] sm:$0xf]
        %v1219 = vld [vmem:[#allocation11 + $0x8] sm:$0xf]
        %v1220 = vld [vmem:[#allocation11 + $0xc] sm:$0xf]
        %v1221 = vld [vmem:[#allocation11 + $0x10] sm:$0xf]
        %v1222 = vld [vmem:[#allocation11 + $0x14] sm:$0xf]
        %v1223 = vld [vmem:[#allocation11 + $0x18] sm:$0xf]
        %v1224 = vld [vmem:[#allocation11 + $0x1c] sm:$0xf]
        %v1225 = vld [vmem:[#allocation11 + $0x20] sm:$0xf]
        %v1226 = vld [vmem:[#allocation11 + $0x24] sm:$0xf]
        %v1227 = vld [vmem:[#allocation11 + $0x28] sm:$0xf]
        %v1228 = vld [vmem:[#allocation11 + $0x2c] sm:$0xf]
        %v1229 = vld [vmem:[#allocation11 + $0x30] sm:$0xf]
        %v1230 = vld [vmem:[#allocation11 + $0x34] sm:$0xf]
        %v1231 = vld [vmem:[#allocation11 + $0x38] sm:$0xf]
        %v1232 = vld [vmem:[#allocation11 + $0x3c] sm:$0xf]
        %v1233 = vld [vmem:[%s11] sm:$0x1]
        %v1235 = vlaneseq
        %v1236 = vshrl.u32 %v1235, 7
        %v1237 = vsub.s32 0, %v1236
        %v1238 = vrot.slane %v1233, %v1237
        %v1256 = vunpack.c.l.b16 %v1217
        %v1257 = vunpack.c.l.b16 %v1218
        %v1258 = vunpack.c.l.b16 %v1219
        %v1259 = vunpack.c.l.b16 %v1220
        %v1260 = vunpack.c.l.b16 %v1221
        %v1261 = vunpack.c.l.b16 %v1222
        %v1262 = vunpack.c.l.b16 %v1223
        %v1263 = vunpack.c.l.b16 %v1224
        %v1264 = vunpack.c.l.b16 %v1225
        %v1265 = vunpack.c.l.b16 %v1226
        %v1266 = vunpack.c.l.b16 %v1227
        %v1267 = vunpack.c.l.b16 %v1228
        %v1268 = vunpack.c.l.b16 %v1229
        %v1269 = vunpack.c.l.b16 %v1230
        %v1270 = vunpack.c.l.b16 %v1231
        %v1271 = vunpack.c.l.b16 %v1232
        %v1272 = vpack.c.b16 %v1257, %v1256
        %v1273 = vpack.c.b16 %v1259, %v1258
        %v1274 = vpack.c.b16 %v1261, %v1260
        %v1275 = vpack.c.b16 %v1263, %v1262
        %v1276 = vpack.c.b16 %v1265, %v1264
        %v1277 = vpack.c.b16 %v1267, %v1266
        %v1278 = vpack.c.b16 %v1269, %v1268
        %v1279 = vpack.c.b16 %v1271, %v1270
        %1288 = vmatprep.subr.bf16.mxu0 0
        %1289 = vmatpush1.bf16.msra.mxu0 %v1279
        %1290 = vmatprep.subr.bf16.mxu0 0
        %1291 = vmatpush1.bf16.msra.mxu0 %v1278
        %1292 = vmatprep.subr.bf16.mxu0 0
        %1293 = vmatpush1.bf16.msra.mxu0 %v1277
        %1294 = vmatprep.subr.bf16.mxu0 0
        %1295 = vmatpush1.bf16.msra.mxu0 %v1276
        %1296 = vmatprep.subr.bf16.mxu0 0
        %1297 = vmatpush1.bf16.msra.mxu0 %v1275
        %1298 = vmatprep.subr.bf16.mxu0 0
        %1299 = vmatpush1.bf16.msra.mxu0 %v1274
        %1300 = vmatprep.subr.bf16.mxu0 0
        %1301 = vmatpush1.bf16.msra.mxu0 %v1273
        %1302 = vmatprep.subr.bf16.mxu0 0
        %1303 = vmatpush1.bf16.msra.mxu0 %v1272
        %1304 = vmatprep.subr.bf16.mxu0 0
        %1305 = vmatpush2.bf16.msra.mxu0 0
        %1306 = vmatprep.subr.bf16.mxu0 0
        %1307 = vmatpush2.bf16.msra.mxu0 0
        %1308 = vmatprep.subr.bf16.mxu0 0
        %1309 = vmatpush2.bf16.msra.mxu0 0
        %1310 = vmatprep.subr.bf16.mxu0 0
        %1311 = vmatpush2.bf16.msra.mxu0 0
        %1312 = vmatprep.subr.bf16.mxu0 0
        %1313 = vmatpush2.bf16.msra.mxu0 0
        %1314 = vmatprep.subr.bf16.mxu0 0
        %1315 = vmatpush2.bf16.msra.mxu0 0
        %1316 = vmatprep.subr.bf16.mxu0 0
        %1317 = vmatpush2.bf16.msra.mxu0 0
        %1318 = vmatprep.subr.bf16.mxu0 0
        %1319 = vmatpush2.bf16.msra.mxu0 0
        %1320 = vmatprep.mubr.bf16.mxu0 0
        %1321 = vmatmul.mubr.bf16.gmra.mxu0 %v1216
        %v1322 = vpop.f32.mrf.mxu0
        %v1323 = vadd.f32 %v1238, %v1322
        %v1324 = vpop.f32.mrf.mxu0
        %v1325 = vpop.f32.mrf.mxu0
        %v1326 = vpop.f32.mrf.mxu0
        %1327 = vdwg.mxu0
        %v1328 = vadd.f32 %v1094, %v1323
        %v1329 = vld [vmem:[%s12] sm:$0x1]
        %v1330 = vld [vmem:[%s13] sm:$0x1]
        %1331 = vadd.xlane.f32.xlu0 %v1328
        %v1332 = vpop.xlane.xlu0 %1331
        %v1333 = vmul.f32 %v1332, 0.03125
        %v1334 = vsub.f32 %v1328, %v1333
        %v1335 = vmul.f32 %v1334, %v584
        %v1336 = vmul.f32 %v1335, %v1335
        %1337 = vadd.xlane.f32.xlu0 %v1336
        %v1338 = vpop.xlane.xlu0 %1337
        %v1339 = vmul.f32 %v1338, 0.03125
        %v1340 = vadd.f32 %v1339, 1e-05
        %v1341 = vrsqrt.pop %v1340
        %v1342 = vmul.f32 %v1335, %v1341
        %v1344 = vlaneseq
        %v1345 = vshrl.u32 %v1344, 7
        %v1346 = vsub.s32 0, %v1345
        %v1347 = vrot.slane %v1329, %v1346
        %v1349 = vmul.f32 %v1342, %v1347
        %v1351 = vlaneseq
        %v1352 = vshrl.u32 %v1351, 7
        %v1353 = vsub.s32 0, %v1352
        %v1354 = vrot.slane %v1330, %v1353
        %v1356 = vadd.f32 %v1349, %v1354
        %v1358 = vsel %vm893, %v577, 0
        %1360 = vmatprep.subr.mxu0 0.0
        %1361 = vmatpush1.msra.mxu0 0.0
        %1362 = vmatprep.subr.mxu0 0.0
        %1363 = vmatpush1.msra.mxu0 0.0
        %1364 = vmatprep.subr.mxu0 0.0
        %1365 = vmatpush1.msra.mxu0 0.0
        %1366 = vmatprep.subr.mxu0 0.0
        %1367 = vmatpush1.msra.mxu0 0.0
        %1368 = vmatprep.subr.mxu0 0.0
        %1369 = vmatpush1.msra.mxu0 0.0
        %1370 = vmatprep.subr.mxu0 0.0
        %1371 = vmatpush1.msra.mxu0 0.0
        %1372 = vmatprep.subr.mxu0 0.0
        %1373 = vmatpush1.msra.mxu0 0.0
        %1374 = vmatprep.subr.mxu0 0.0
        %1375 = vmatpush1.msra.mxu0 0.0
        %1376 = vmatprep.subr.mxu0 0.0
        %1377 = vmatpush1.msra.mxu0 0.0
        %1378 = vmatprep.subr.mxu0 0.0
        %1379 = vmatpush1.msra.mxu0 0.0
        %1380 = vmatprep.subr.mxu0 0.0
        %1381 = vmatpush1.msra.mxu0 0.0
        %1382 = vmatprep.subr.mxu0 0.0
        %1383 = vmatpush1.msra.mxu0 0.0
        %1384 = vmatprep.subr.mxu0 0.0
        %1385 = vmatpush1.msra.mxu0 0.0
        %1386 = vmatprep.subr.mxu0 0.0
        %1387 = vmatpush1.msra.mxu0 0.0
        %1388 = vmatprep.subr.mxu0 0.0
        %1389 = vmatpush1.msra.mxu0 0.0
        %1390 = vmatprep.subr.mxu0 0.0
        %1391 = vmatpush1.msra.mxu0 %v1356
        %1392 = vmatprep.subr.mxu0 0.0
        %1393 = vmatpush2.msra.mxu0 0.0
        %1394 = vmatprep.subr.mxu0 0.0
        %1395 = vmatpush2.msra.mxu0 0.0
        %1396 = vmatprep.subr.mxu0 0.0
        %1397 = vmatpush2.msra.mxu0 0.0
        %1398 = vmatprep.subr.mxu0 0.0
        %1399 = vmatpush2.msra.mxu0 0.0
        %1400 = vmatprep.subr.mxu0 0.0
        %1401 = vmatpush2.msra.mxu0 0.0
        %1402 = vmatprep.subr.mxu0 0.0
        %1403 = vmatpush2.msra.mxu0 0.0
        %1404 = vmatprep.subr.mxu0 0.0
        %1405 = vmatpush2.msra.mxu0 0.0
        %1406 = vmatprep.subr.mxu0 0.0
        %1407 = vmatpush2.msra.mxu0 0.0
        %1408 = vmatprep.subr.mxu0 0.0
        %1409 = vmatpush2.msra.mxu0 0.0
        %1410 = vmatprep.subr.mxu0 0.0
        %1411 = vmatpush2.msra.mxu0 0.0
        %1412 = vmatprep.subr.mxu0 0.0
        %1413 = vmatpush2.msra.mxu0 0.0
        %1414 = vmatprep.subr.mxu0 0.0
        %1415 = vmatpush2.msra.mxu0 0.0
        %1416 = vmatprep.subr.mxu0 0.0
        %1417 = vmatpush2.msra.mxu0 0.0
        %1418 = vmatprep.subr.mxu0 0.0
        %1419 = vmatpush2.msra.mxu0 0.0
        %1420 = vmatprep.subr.mxu0 0.0
        %1421 = vmatpush2.msra.mxu0 0.0
        %1422 = vmatprep.subr.mxu0 0.0
        %1423 = vmatpush2.msra.mxu0 0.0
        %1424 = vmatprep.mubr.f32.mxu0 0.0
        %1425 = vmatmul.mubr.f32.gmra.mxu0 %v1358
        %v1426 = vpop.f32.mrf.mxu0
        %v1427 = vadd.f32 0.0, %v1426
        %v1428 = vpop.f32.mrf.mxu0
        %1429 = vdwg.mxu0
        %vm1430 = vcmask 57344
        %v1431 = vsel %vm1430, %v577, 0.0
        %1432 = vadd.xlane.f32.xlu0 %v1431
        %v1433 = vpop.xlane.xlu0 %1432
        %v1434 = vmax.f32 %v1433, 1.0
        %v1435 = vrcp.pop %v1434
        %v1436 = vmul.f32 %v1427, %v1435
        %v1437 = vmul.f32 %v1436, %v1436
        %vm1438 = vcmask 1040384
        %v1439 = vsel %vm1438, %v1437, 0.0
        %1440 = vadd.xlane.f32.xlu0 %v1439
        %v1441 = vpop.xlane.xlu0 %1440
        %v1442 = vmax.f32 %v1441, 1e-24
        %v1443 = vrsqrt.pop %v1442
        %v1444 = vmul.f32 %v1436, %v1443
        %1445 = vst [vmem:[%s573] sm:$0x1] %v1444
        %s1446 = sand.u32 %s348, 1
        %s1447 = scalar_lea.sflag [#allocation4], %s1446
        %s1448 = sand.u32 %s348, 1
        %s1449 = scalar_lea.vmem [#allocation13], %s1448
        // Predicated region
        $region101: #{tpu_custom_call.1} parent=75 // pred_check
          %p1450 = pneg %p358
        $region102: #{tpu_custom_call.1} parent=75 // pred_check_branch
          %1452 = sbr.rel (%p1450) target = $region104
        $region103: #{tpu_custom_call.1} parent=75 // pred_region
          %s1454 = ssub.s32 16, 16
          %1455 = vsyncadd %s1447, %s1454
          %s1456 = smul.addr %s36, 16
          %s1457 = scalar_lea.hbm %s14, %s1456
          %s1459 = sshll.u32 %s1449, 4
          %s1460 = int_to_ptr.vmem [resolvable:$true] %s1459
          %1462 = dma.vmem_to_hbm [thread:$0]  %s1460, 16, %s1457, %s1447
        $region104: #{tpu_custom_call.1} parent=75 // pred_fallthru
          _
      $region76: #{tpu_custom_call.1} parent=5 // pred_fallthru
        _
      %p1463 = scmp.le.s32.totalorder 2, %s31
      // Predicated region
      $region105: #{tpu_custom_call.1} parent=5 // pred_check
        %p1464 = pneg %p1463
      $region106: #{tpu_custom_call.1} parent=5 // pred_check_branch
        %1466 = sbr.rel (%p1464) target = $region108
      $region107: #{tpu_custom_call.1} parent=5 // pred_region
        %s1467 = ssub.s32 %s31, 2
        // Predicated region
        $region109: #{tpu_custom_call.1} parent=107 // pred_check
          %p1468 = pneg %p364
        $region110: #{tpu_custom_call.1} parent=107 // pred_check_branch
          %1470 = sbr.rel (%p1468) target = $region112
        $region111: #{tpu_custom_call.1} parent=107 // pred_region
          %s1471 = sand.u32 %s349, 1
          %s1472 = scalar_lea.sflag [#allocation4], %s1471
          %s1473 = sand.u32 %s349, 1
          %s1474 = scalar_lea.vmem [#allocation13], %s1473
          %1475 = dma.done %s1472, 16
        $region112: #{tpu_custom_call.1} parent=107 // pred_fallthru
          _
      $region108: #{tpu_custom_call.1} parent=5 // pred_fallthru
        _
    $region6: #{tpu_custom_call.1} parent=1 // loop_footer
      %s35 = sadd.s32 1, %s31
    $region7: #{tpu_custom_call.1} parent=1 // loop_footer_branch
      %30 = sbr.rel target = $region3
    $region8: #{tpu_custom_call.1} parent=1 // loop_exit
      _
    %1476 = vsyncpa [#allocation3], 1
    %s1477 = scalar_lea.sflag [#allocation3], 1
    %1478 = vsyncpa %s1477, 1
    %1479 = vsyncpa [#allocation6], 1
    %s1480 = scalar_lea.sflag [#allocation6], 1
    %1481 = vsyncpa %s1480, 1
    %1482 = vsyncpa [#allocation9], 1
    %1483 = vsyncpa [#allocation12], 1
    %1484 = vsyncpa [#allocation4], 1
    %s1485 = scalar_lea.sflag [#allocation4], 1
    %1486 = vsyncpa %s1485, 1

</llo_original>
